<compile_context>
chip_gen: v7x
topology: tpu7x:2x2x1
jax: 0.10.0
libtpu: 0.0.40
codegen_flags: <defaults>
</compile_context>

<pallas_src>
import jax
import jax.numpy as jnp
from jax import lax
from jax.experimental import pallas as pl
from jax.experimental.pallas import tpu as pltpu


def _mlp_kernel(x_ref, w1_ref, b1_ref, w2_ref, b2_ref, w3_ref, b3_ref, o_ref):
    """One batch tile: (TB, 100) -> (TB, 1), all three layers fused."""
    x = x_ref[...]                                            # f32 (TB, 100)

    # L1 + ReLU (MXU)
    h1 = jnp.dot(x, w1_ref[...], preferred_element_type=jnp.float32,
                 precision=lax.Precision.HIGHEST) + b1_ref[...]
    h1 = jnp.maximum(h1, 0.0)

    # L2 + ReLU (MXU)
    h2 = jnp.dot(h1, w2_ref[...], preferred_element_type=jnp.float32,
                 precision=lax.Precision.HIGHEST) + b2_ref[...]
    h2 = jnp.maximum(h2, 0.0)

    # L3 (10 -> 1): VPU multiply + lane reduce; w3_ref is a (1, 10) row.
    h3 = jnp.sum(h2 * w3_ref[...], axis=-1, keepdims=True) + b3_ref[...]

    o_ref[...] = h3.astype(o_ref.dtype)


def mlp_forward(x, params, *, tb=None):
    """x: (B, 100) float32 -> (B, 1) float32."""
    w1, b1, w2, b2, w3, b3 = params
    B, F = x.shape
    assert F == 100, "linearRegressionOLS expects 100 input features"

    if tb is None:
        # Target >= 4 tiles (keeps both v7x TensorCores busy under "parallel"
        # semantics) but cap at 16384 rows: the lane-padded f32 x block is
        # tb*128*4 bytes, x2 pipeline buffers -> <= ~16 MiB, safe everywhere.
        tb = max(8, min(16384, -(-pl.cdiv(B, 4) // 8) * 8))
    tb = max(8, (tb // 8) * 8)
    num_tiles = pl.cdiv(B, tb)

    w3_row = jnp.reshape(w3, (1, -1))   # (10, 1) -> (1, 10) row for VPU layer 3

    # Weights/biases: full-array blocks, constant index_map -> VMEM-resident.
    def resident(a):
        return pl.BlockSpec(a.shape, lambda i: (0,) * a.ndim)

    weight_bytes = sum(int(a.size) * a.dtype.itemsize
                       for a in (w1, b1, w2, b2, w3_row, b3))
    cost = pl.CostEstimate(
        flops=2 * B * (100 * 20 + 20 * 10 + 10),
        transcendentals=0,
        bytes_accessed=B * (F * 4 + 4) + weight_bytes,
    )

    y = pl.pallas_call(
        _mlp_kernel,
        out_shape=jax.ShapeDtypeStruct((B, 1), jnp.float32),
        grid=(num_tiles,),
        in_specs=[
            # x tile: (TB, 100) — K stays 100 (no pad to 128).  Ragged last
            # block handled by Pallas (rows are independent; output masked).
            pl.BlockSpec((tb, F), lambda i: (i, 0)),
            resident(w1), resident(b1),
            resident(w2), resident(b2),
            resident(w3_row), resident(b3),
        ],
        out_specs=pl.BlockSpec((tb, 1), lambda i: (i, 0)),
        compiler_params=pltpu.CompilerParams(
            dimension_semantics=("parallel",),          # shard tiles across TCs (v7x)
            vmem_limit_bytes=32 * 1024 * 1024,          # portable across v5e/v6e/v7x
        ),
        cost_estimate=cost,
    )(x, w1, b1, w2, b2, w3_row, b3)

    return y


def init_params(key):
    """Deterministic init mimicking torch.nn.Linear default (U[-1/sqrt(fan_in), +])."""
    def linear(key, fan_in, fan_out):
        kw, kb = jax.random.split(key)
        bound = 1.0 / jnp.sqrt(fan_in)
        w = jax.random.uniform(kw, (fan_in, fan_out), jnp.float32, -bound, bound)
        b = jax.random.uniform(kb, (1, fan_out), jnp.float32, -bound, bound)
        return w, b

    k1, k2, k3 = jax.random.split(key, 3)
    w1, b1 = linear(k1, 100, 20)
    w2, b2 = linear(k2, 20, 10)
    w3, b3 = linear(k3, 10, 1)
    return (w1, b1, w2, b2, w3, b3)


if __name__ == "__main__":
    key = jax.random.PRNGKey(0)
    kp, kx = jax.random.split(key)

    params = init_params(kp)
    B = 300                                   # non-multiple of tile -> exercises ragged last block
    x = jax.random.normal(kx, (B, 100), jnp.float32)

    # Small tile so the test runs a multi-step pipelined grid (3 tiles, last ragged).
    y = mlp_forward(x, params, tb=128)
    jax.block_until_ready(y)

    # Also exercise the default tile-size path once.
    y2 = mlp_forward(x, params)
    jax.block_until_ready(y2)

    # Reference in plain JAX (same math, full precision).
    w1, b1, w2, b2, w3, b3 = params
    ref = jnp.maximum(jnp.dot(x, w1, precision=lax.Precision.HIGHEST) + b1, 0.0)
    ref = jnp.maximum(jnp.dot(ref, w2, precision=lax.Precision.HIGHEST) + b2, 0.0)
    ref = jnp.dot(ref, w3, precision=lax.Precision.HIGHEST) + b3

    assert y.shape == (B, 1)
    assert jnp.allclose(y, ref, atol=1e-4, rtol=1e-4), float(jnp.max(jnp.abs(y - ref)))
    assert jnp.allclose(y2, ref, atol=1e-4, rtol=1e-4), float(jnp.max(jnp.abs(y2 - ref)))

    print("KERNEL_OK")
</pallas_src>

<mosaic_0001>
module attributes {stable_mosaic.version = 11 : i64} {
  func.func @_mlp_kernel(%arg0: i32, %arg1: memref<128x100xf32, #tpu.memory_space<vmem>>, %arg2: memref<100x20xf32, #tpu.memory_space<vmem>>, %arg3: memref<1x20xf32, #tpu.memory_space<vmem>>, %arg4: memref<20x10xf32, #tpu.memory_space<vmem>>, %arg5: memref<1x10xf32, #tpu.memory_space<vmem>>, %arg6: memref<1x10xf32, #tpu.memory_space<vmem>>, %arg7: memref<1x1xf32, #tpu.memory_space<vmem>>, %arg8: memref<128x1xf32, #tpu.memory_space<vmem>>) attributes {dimension_semantics = [#tpu.dimension_semantics<parallel>], iteration_bounds = array<i64: 3>, scalar_prefetch = 0 : i64, scratch_operands = 0 : i64, tpu.core_type = #tpu.core_type<tc>, window_params = [{transform_indices = @transform_0, window_bounds = array<i64: 128, 100>}, {pipeline_mode = #tpu.pipeline_mode<synchronous>, transform_indices = @transform_1, window_bounds = array<i64: 100, 20>}, {pipeline_mode = #tpu.pipeline_mode<synchronous>, transform_indices = @transform_2, window_bounds = array<i64: 1, 20>}, {pipeline_mode = #tpu.pipeline_mode<synchronous>, transform_indices = @transform_3, window_bounds = array<i64: 20, 10>}, {pipeline_mode = #tpu.pipeline_mode<synchronous>, transform_indices = @transform_4, window_bounds = array<i64: 1, 10>}, {pipeline_mode = #tpu.pipeline_mode<synchronous>, transform_indices = @transform_5, window_bounds = array<i64: 1, 10>}, {pipeline_mode = #tpu.pipeline_mode<synchronous>, transform_indices = @transform_6, window_bounds = array<i64: 1, 1>}, {transform_indices = @transform_7, window_bounds = array<i64: 128, 1>}]} {
    %c0 = arith.constant 0 : index
    %c0_0 = arith.constant 0 : index
    %0 = vector.load %arg1[%c0, %c0_0] : memref<128x100xf32, #tpu.memory_space<vmem>>, vector<128x100xf32>
    %c0_1 = arith.constant 0 : index
    %c0_2 = arith.constant 0 : index
    %1 = vector.load %arg2[%c0_1, %c0_2] : memref<100x20xf32, #tpu.memory_space<vmem>>, vector<100x20xf32>
    %cst = arith.constant dense<0.000000e+00> : vector<128x20xf32>
    %2 = tpu.matmul %0, %1, %cst {dimension_numbers = #tpu.dot_dimension_numbers<[1], [0], [0], [1], [0, 0, 1, 1], [], []>, precision = #tpu.contract_precision<fp32>} : vector<128x100xf32>, vector<100x20xf32>, vector<128x20xf32> -> vector<128x20xf32>
    %c0_3 = arith.constant 0 : index
    %c0_4 = arith.constant 0 : index
    %3 = vector.load %arg3[%c0_3, %c0_4] : memref<1x20xf32, #tpu.memory_space<vmem>>, vector<1x20xf32>
    %4 = vector.broadcast %3 : vector<1x20xf32> to vector<128x20xf32>
    %5 = arith.addf %2, %4 : vector<128x20xf32>
    %cst_5 = arith.constant 0.000000e+00 : f32
    %6 = vector.broadcast %cst_5 : f32 to vector<128x20xf32>
    %7 = arith.maximumf %5, %6 : vector<128x20xf32>
    %c0_6 = arith.constant 0 : index
    %c0_7 = arith.constant 0 : index
    %8 = vector.load %arg4[%c0_6, %c0_7] : memref<20x10xf32, #tpu.memory_space<vmem>>, vector<20x10xf32>
    %cst_8 = arith.constant dense<0.000000e+00> : vector<128x10xf32>
    %9 = tpu.matmul %7, %8, %cst_8 {dimension_numbers = #tpu.dot_dimension_numbers<[1], [0], [0], [1], [0, 0, 1, 1], [], []>, precision = #tpu.contract_precision<fp32>} : vector<128x20xf32>, vector<20x10xf32>, vector<128x10xf32> -> vector<128x10xf32>
    %c0_9 = arith.constant 0 : index
    %c0_10 = arith.constant 0 : index
    %10 = vector.load %arg5[%c0_9, %c0_10] : memref<1x10xf32, #tpu.memory_space<vmem>>, vector<1x10xf32>
    %11 = vector.broadcast %10 : vector<1x10xf32> to vector<128x10xf32>
    %12 = arith.addf %9, %11 : vector<128x10xf32>
    %cst_11 = arith.constant 0.000000e+00 : f32
    %13 = vector.broadcast %cst_11 : f32 to vector<128x10xf32>
    %14 = arith.maximumf %12, %13 : vector<128x10xf32>
    %c0_12 = arith.constant 0 : index
    %c0_13 = arith.constant 0 : index
    %15 = vector.load %arg6[%c0_12, %c0_13] : memref<1x10xf32, #tpu.memory_space<vmem>>, vector<1x10xf32>
    %16 = vector.broadcast %15 : vector<1x10xf32> to vector<128x10xf32>
    %17 = arith.mulf %14, %16 : vector<128x10xf32>
    %cst_14 = arith.constant dense<0.000000e+00> : vector<128xf32>
    %18 = vector.multi_reduction <add>, %17, %cst_14 [1] : vector<128x10xf32> to vector<128xf32>
    %19 = vector.shape_cast %18 : vector<128xf32> to vector<128x1xf32>
    %c0_15 = arith.constant 0 : index
    %c0_16 = arith.constant 0 : index
    %20 = vector.load %arg7[%c0_15, %c0_16] : memref<1x1xf32, #tpu.memory_space<vmem>>, vector<1x1xf32>
    %21 = vector.broadcast %20 : vector<1x1xf32> to vector<128x1xf32>
    %22 = arith.addf %19, %21 : vector<128x1xf32>
    %c0_17 = arith.constant 0 : index
    %c0_18 = arith.constant 0 : index
    %23 = vector.load %arg8[%c0_17, %c0_18] : memref<128x1xf32, #tpu.memory_space<vmem>>, vector<128x1xf32>
    tpu.vector_store %arg8[%c0_17, %c0_18], %22 {strides = array<i32>} : memref<128x1xf32, #tpu.memory_space<vmem>>, vector<128x1xf32>,
    return
  }
  func.func @transform_0(%arg0: i32) -> (i32, i32) {
    %c0_i32 = arith.constant 0 : i32
    %c0_i32_0 = arith.constant 0 : i32
    return %arg0, %c0_i32 : i32, i32
  }
  func.func @transform_1(%arg0: i32) -> (i32, i32) {
    %c0_i32 = arith.constant 0 : i32
    %c0_i32_0 = arith.constant 0 : i32
    %c0_i32_1 = arith.constant 0 : i32
    return %c0_i32, %c0_i32_0 : i32, i32
  }
  func.func @transform_2(%arg0: i32) -> (i32, i32) {
    %c0_i32 = arith.constant 0 : i32
    %c0_i32_0 = arith.constant 0 : i32
    %c0_i32_1 = arith.constant 0 : i32
    return %c0_i32, %c0_i32_0 : i32, i32
  }
  func.func @transform_3(%arg0: i32) -> (i32, i32) {
    %c0_i32 = arith.constant 0 : i32
    %c0_i32_0 = arith.constant 0 : i32
    %c0_i32_1 = arith.constant 0 : i32
    return %c0_i32, %c0_i32_0 : i32, i32
  }
  func.func @transform_4(%arg0: i32) -> (i32, i32) {
    %c0_i32 = arith.constant 0 : i32
    %c0_i32_0 = arith.constant 0 : i32
    %c0_i32_1 = arith.constant 0 : i32
    return %c0_i32, %c0_i32_0 : i32, i32
  }
  func.func @transform_5(%arg0: i32) -> (i32, i32) {
    %c0_i32 = arith.constant 0 : i32
    %c0_i32_0 = arith.constant 0 : i32
    %c0_i32_1 = arith.constant 0 : i32
    return %c0_i32, %c0_i32_0 : i32, i32
  }
  func.func @transform_6(%arg0: i32) -> (i32, i32) {
    %c0_i32 = arith.constant 0 : i32
    %c0_i32_0 = arith.constant 0 : i32
    %c0_i32_1 = arith.constant 0 : i32
    return %c0_i32, %c0_i32_0 : i32, i32
  }
  func.func @transform_7(%arg0: i32) -> (i32, i32) {
    %c0_i32 = arith.constant 0 : i32
    %c0_i32_0 = arith.constant 0 : i32
    return %arg0, %c0_i32 : i32, i32
  }
}

</mosaic_0001>

<llo_original>
// kernel: tpu_custom_call.1
$region0: #{tpu_custom_call.1}
  #allocation0 [shape = 'u32[]', space=smem, size = 0x4, offset = 0x4, fixed_abs, tag = 'smem constant byte address 0x4 - core index']
  #allocation1 [shape = 'u32[144,128]{1,0:T(1,128)}', space=vmem, size = 0x12000, scoped, tag = 'internal scratch']
  #allocation2 [shape = 'f32[1,1]{1,0:T(1,128)S(1)}', space=vmem, size = 0x200, scoped, tag = 'scoped memory for tpu_custom_call.1']
  %s0 = inlined_call_operand.hbm [shape: f32[300,100], index: 0, kind: input, shape index: {}]
  %s1 = inlined_call_operand.vmem [shape: f32[100,20], index: 1, kind: input, shape index: {}]
  %s2 = inlined_call_operand.vmem [shape: f32[1,20], index: 2, kind: input, shape index: {}]
  %s3 = inlined_call_operand.vmem [shape: f32[20,10], index: 3, kind: input, shape index: {}]
  %s4 = inlined_call_operand.vmem [shape: f32[1,10], index: 4, kind: input, shape index: {}]
  %s5 = inlined_call_operand.vmem [shape: f32[1,10], index: 5, kind: input, shape index: {}]
  %s6 = inlined_call_operand.<no memory space> [shape: f32[1,1], index: 6, kind: input, shape index: {}]
  %s7 = inlined_call_operand.vmem [shape: f32[300,1], index: 7, kind: output, shape index: {}]
  %s8 = sld [smem:[#allocation0]]
  $region113: #{tpu_custom_call.1} parent=0
    _
  %s10 = ssub.s32 1, %s8
  %s11 = scalar_select 0, %s10, %s8
  %v12 = vstv %s6
  %13 = vst [vmem:[#allocation2] sm:$0x1] %v12
  $region1: #{tpu_custom_call.1} parent=0
    #allocation3 [shape = 'u8[131072]{0}', space=vmem, size = 0x20000, scoped, tag = 'input window, operand 0']
    #allocation4 [shape = 's32[2]{0}', space=sflag, size = 0x8, scoped, tag = 'scoped memory for tpu_custom_call.1']
    #allocation5 [shape = 'u8[131072]{0}', space=vmem, size = 0x20000, scoped, tag = 'output window, operand 0']
    %14 = vsyncpa [#allocation4], 0
    %s15 = scalar_lea.sflag [#allocation4], 1
    %16 = vsyncpa %s15, 0
    loop: start=0, step=1, limit=5
    $region2: #{tpu_custom_call.1} parent=1 // loop_pre_header
      _
    $region3: #{tpu_custom_call.1} parent=1 // loop_header
      %s18 = sphi 0, %s22
      %p19 = scmp.ge.s32.totalorder %s18, 5
      %s28 = sphi 0, %s30
      %s31 = sphi 0, %s28
      %s32 = sphi 0, %s31
      %s48 = sphi 0, %s32
      %s52 = sphi 0, %s52
      %s54 = sphi 0, %s52
      %s55 = sphi 0, %s54
      %s69 = sphi 0, %s55
      %s73 = sphi 0, %s73
      %s75 = sphi 0, %s73
      %s76 = sphi 0, %s75
      %s90 = sphi 0, %s76
      %s94 = sphi 0, %s94
      %s96 = sphi 0, %s94
      %s97 = sphi 0, %s96
      %s111 = sphi 0, %s97
      %s115 = sphi 0, %s115
      %s117 = sphi 0, %s115
      %s118 = sphi 0, %s117
      %s132 = sphi 0, %s118
      %s136 = sphi 0, %s136
      %s138 = sphi 0, %s136
      %s139 = sphi 0, %s138
      %s153 = sphi 0, %s139
      %s157 = sphi 0, %s157
      %s159 = sphi 0, %s157
      %s160 = sphi 0, %s159
      %s174 = sphi 0, %s160
      %s180 = sphi 0, %s182
      %s183 = sphi 0, %s180
      %s184 = sphi 0, %s183
      %s200 = sphi 0, %s184
    $region4: #{tpu_custom_call.1} parent=1 // loop_header_branch
      %21 = sbr.rel (%p19) target = $region8
    $region5: #{tpu_custom_call.1} parent=1 // loop_body
      %s23 = ssub.s32 %s18, 1
      %s24 = ssub.s32 %s18, 2
      %s25 = sadd.s32 %s18, 1
      %s26 = ssub.s32 %s18, %s25
      %p27 = scmp.eq.s32.totalorder %s26, 0
      %s29 = sadd.s32 %s28, 1
      %s30 = scalar_select %p27, %s28, %s29
      %p33 = pneg %p27
      %p34 = scmp.eq.s32.totalorder %s18, 2
      %p35 = por %p33, %p34
      %p36 = scmp.ne.s32.totalorder %s28, %s31
      %p37 = scmp.eq.s32.totalorder %s18, 0
      %p38 = por %p36, %p37
      %p39 = scmp.ne.s32.totalorder %s28, %s31
      %p40 = scmp.eq.s32.totalorder %s23, 2
      %p41 = por %p39, %p40
      %p42 = scmp.ne.s32.totalorder %s31, %s32
      %p43 = scmp.eq.s32.totalorder %s23, 0
      %p44 = por %p42, %p43
      %p45 = scmp.ne.s32.totalorder %s31, %s32
      %p46 = scmp.eq.s32.totalorder %s24, 2
      %p47 = por %p45, %p46
      %p49 = scmp.ne.s32.totalorder %s32, %s48
      %p50 = scmp.eq.s32.totalorder %s24, 0
      %p51 = por %p49, %p50
      %s53 = sadd.s32 %s52, 1
      %p56 = scmp.eq.s32.totalorder %s18, 2
      %p57 = scmp.ne.s32.totalorder %s52, %s54
      %p58 = scmp.eq.s32.totalorder %s18, 0
      %p59 = por %p57, %p58
      %p60 = scmp.ne.s32.totalorder %s52, %s54
      %p61 = scmp.eq.s32.totalorder %s23, 2
      %p62 = por %p60, %p61
      %p63 = scmp.ne.s32.totalorder %s54, %s55
      %p64 = scmp.eq.s32.totalorder %s23, 0
      %p65 = por %p63, %p64
      %p66 = scmp.ne.s32.totalorder %s54, %s55
      %p67 = scmp.eq.s32.totalorder %s24, 2
      %p68 = por %p66, %p67
      %p70 = scmp.ne.s32.totalorder %s55, %s69
      %p71 = scmp.eq.s32.totalorder %s24, 0
      %p72 = por %p70, %p71
      %s74 = sadd.s32 %s73, 1
      %p77 = scmp.eq.s32.totalorder %s18, 2
      %p78 = scmp.ne.s32.totalorder %s73, %s75
      %p79 = scmp.eq.s32.totalorder %s18, 0
      %p80 = por %p78, %p79
      %p81 = scmp.ne.s32.totalorder %s73, %s75
      %p82 = scmp.eq.s32.totalorder %s23, 2
      %p83 = por %p81, %p82
      %p84 = scmp.ne.s32.totalorder %s75, %s76
      %p85 = scmp.eq.s32.totalorder %s23, 0
      %p86 = por %p84, %p85
      %p87 = scmp.ne.s32.totalorder %s75, %s76
      %p88 = scmp.eq.s32.totalorder %s24, 2
      %p89 = por %p87, %p88
      %p91 = scmp.ne.s32.totalorder %s76, %s90
      %p92 = scmp.eq.s32.totalorder %s24, 0
      %p93 = por %p91, %p92
      %s95 = sadd.s32 %s94, 1
      %p98 = scmp.eq.s32.totalorder %s18, 2
      %p99 = scmp.ne.s32.totalorder %s94, %s96
      %p100 = scmp.eq.s32.totalorder %s18, 0
      %p101 = por %p99, %p100
      %p102 = scmp.ne.s32.totalorder %s94, %s96
      %p103 = scmp.eq.s32.totalorder %s23, 2
      %p104 = por %p102, %p103
      %p105 = scmp.ne.s32.totalorder %s96, %s97
      %p106 = scmp.eq.s32.totalorder %s23, 0
      %p107 = por %p105, %p106
      %p108 = scmp.ne.s32.totalorder %s96, %s97
      %p109 = scmp.eq.s32.totalorder %s24, 2
      %p110 = por %p108, %p109
      %p112 = scmp.ne.s32.totalorder %s97, %s111
      %p113 = scmp.eq.s32.totalorder %s24, 0
      %p114 = por %p112, %p113
      %s116 = sadd.s32 %s115, 1
      %p119 = scmp.eq.s32.totalorder %s18, 2
      %p120 = scmp.ne.s32.totalorder %s115, %s117
      %p121 = scmp.eq.s32.totalorder %s18, 0
      %p122 = por %p120, %p121
      %p123 = scmp.ne.s32.totalorder %s115, %s117
      %p124 = scmp.eq.s32.totalorder %s23, 2
      %p125 = por %p123, %p124
      %p126 = scmp.ne.s32.totalorder %s117, %s118
      %p127 = scmp.eq.s32.totalorder %s23, 0
      %p128 = por %p126, %p127
      %p129 = scmp.ne.s32.totalorder %s117, %s118
      %p130 = scmp.eq.s32.totalorder %s24, 2
      %p131 = por %p129, %p130
      %p133 = scmp.ne.s32.totalorder %s118, %s132
      %p134 = scmp.eq.s32.totalorder %s24, 0
      %p135 = por %p133, %p134
      %s137 = sadd.s32 %s136, 1
      %p140 = scmp.eq.s32.totalorder %s18, 2
      %p141 = scmp.ne.s32.totalorder %s136, %s138
      %p142 = scmp.eq.s32.totalorder %s18, 0
      %p143 = por %p141, %p142
      %p144 = scmp.ne.s32.totalorder %s136, %s138
      %p145 = scmp.eq.s32.totalorder %s23, 2
      %p146 = por %p144, %p145
      %p147 = scmp.ne.s32.totalorder %s138, %s139
      %p148 = scmp.eq.s32.totalorder %s23, 0
      %p149 = por %p147, %p148
      %p150 = scmp.ne.s32.totalorder %s138, %s139
      %p151 = scmp.eq.s32.totalorder %s24, 2
      %p152 = por %p150, %p151
      %p154 = scmp.ne.s32.totalorder %s139, %s153
      %p155 = scmp.eq.s32.totalorder %s24, 0
      %p156 = por %p154, %p155
      %s158 = sadd.s32 %s157, 1
      %p161 = scmp.eq.s32.totalorder %s18, 2
      %p162 = scmp.ne.s32.totalorder %s157, %s159
      %p163 = scmp.eq.s32.totalorder %s18, 0
      %p164 = por %p162, %p163
      %p165 = scmp.ne.s32.totalorder %s157, %s159
      %p166 = scmp.eq.s32.totalorder %s23, 2
      %p167 = por %p165, %p166
      %p168 = scmp.ne.s32.totalorder %s159, %s160
      %p169 = scmp.eq.s32.totalorder %s23, 0
      %p170 = por %p168, %p169
      %p171 = scmp.ne.s32.totalorder %s159, %s160
      %p172 = scmp.eq.s32.totalorder %s24, 2
      %p173 = por %p171, %p172
      %p175 = scmp.ne.s32.totalorder %s160, %s174
      %p176 = scmp.eq.s32.totalorder %s24, 0
      %p177 = por %p175, %p176
      %s178 = ssub.s32 %s18, %s25
      %p179 = scmp.eq.s32.totalorder %s178, 0
      %s181 = sadd.s32 %s180, 1
      %s182 = scalar_select %p179, %s180, %s181
      %p185 = pneg %p179
      %p186 = scmp.eq.s32.totalorder %s18, 2
      %p187 = por %p185, %p186
      %p188 = scmp.ne.s32.totalorder %s180, %s183
      %p189 = scmp.eq.s32.totalorder %s18, 0
      %p190 = por %p188, %p189
      %p191 = scmp.ne.s32.totalorder %s180, %s183
      %p192 = scmp.eq.s32.totalorder %s23, 2
      %p193 = por %p191, %p192
      %p194 = scmp.ne.s32.totalorder %s183, %s184
      %p195 = scmp.eq.s32.totalorder %s23, 0
      %p196 = por %p194, %p195
      %p197 = scmp.ne.s32.totalorder %s183, %s184
      %p198 = scmp.eq.s32.totalorder %s24, 2
      %p199 = por %p197, %p198
      %p201 = scmp.ne.s32.totalorder %s184, %s200
      %p202 = scmp.eq.s32.totalorder %s24, 0
      %p203 = por %p201, %p202
      %p204 = scmp.le.s32.totalorder 1, %s18
      %p205 = scmp.lt.s32.totalorder %s18, 4
      %p206 = pnand %p204, %p205
      %p207 = pneg %p206
      // Predicated region
      $region9: #{tpu_custom_call.1} parent=5 // pred_check
        _
      $region10: #{tpu_custom_call.1} parent=5 // pred_check_branch
        %209 = sbr.rel (%p206) target = $region12
      $region11: #{tpu_custom_call.1} parent=5 // pred_region
        %s210 = ssub.s32 %s18, 1
        // Predicated region
        $region13: #{tpu_custom_call.1} parent=11 // pred_check
          %p211 = pneg %p65
        $region14: #{tpu_custom_call.1} parent=11 // pred_check_branch
          %213 = sbr.rel (%p211) target = $region16
        $region15: #{tpu_custom_call.1} parent=11 // pred_region
          _
        $region16: #{tpu_custom_call.1} parent=11 // pred_fallthru
          _
        // Predicated region
        $region17: #{tpu_custom_call.1} parent=11 // pred_check
          %p214 = pneg %p86
        $region18: #{tpu_custom_call.1} parent=11 // pred_check_branch
          %216 = sbr.rel (%p214) target = $region20
        $region19: #{tpu_custom_call.1} parent=11 // pred_region
          _
        $region20: #{tpu_custom_call.1} parent=11 // pred_fallthru
          _
        // Predicated region
        $region21: #{tpu_custom_call.1} parent=11 // pred_check
          %p217 = pneg %p107
        $region22: #{tpu_custom_call.1} parent=11 // pred_check_branch
          %219 = sbr.rel (%p217) target = $region24
        $region23: #{tpu_custom_call.1} parent=11 // pred_region
          _
        $region24: #{tpu_custom_call.1} parent=11 // pred_fallthru
          _
        // Predicated region
        $region25: #{tpu_custom_call.1} parent=11 // pred_check
          %p220 = pneg %p128
        $region26: #{tpu_custom_call.1} parent=11 // pred_check_branch
          %222 = sbr.rel (%p220) target = $region28
        $region27: #{tpu_custom_call.1} parent=11 // pred_region
          _
        $region28: #{tpu_custom_call.1} parent=11 // pred_fallthru
          _
        // Predicated region
        $region29: #{tpu_custom_call.1} parent=11 // pred_check
          %p223 = pneg %p149
        $region30: #{tpu_custom_call.1} parent=11 // pred_check_branch
          %225 = sbr.rel (%p223) target = $region32
        $region31: #{tpu_custom_call.1} parent=11 // pred_region
          _
        $region32: #{tpu_custom_call.1} parent=11 // pred_fallthru
          _
        // Predicated region
        $region33: #{tpu_custom_call.1} parent=11 // pred_check
          %p226 = pneg %p170
        $region34: #{tpu_custom_call.1} parent=11 // pred_check_branch
          %228 = sbr.rel (%p226) target = $region36
        $region35: #{tpu_custom_call.1} parent=11 // pred_region
          _
        $region36: #{tpu_custom_call.1} parent=11 // pred_fallthru
          _
      $region12: #{tpu_custom_call.1} parent=5 // pred_fallthru
        _
      %p229 = scmp.lt.s32.totalorder %s18, 3
      // Predicated region
      $region37: #{tpu_custom_call.1} parent=5 // pred_check
        %p230 = pneg %p229
      $region38: #{tpu_custom_call.1} parent=5 // pred_check_branch
        %232 = sbr.rel (%p230) target = $region40
      $region39: #{tpu_custom_call.1} parent=5 // pred_region
        // Predicated region
        $region41: #{tpu_custom_call.1} parent=39 // pred_check
          %p233 = pneg %p38
        $region42: #{tpu_custom_call.1} parent=39 // pred_check_branch
          %235 = sbr.rel (%p233) target = $region44
        $region43: #{tpu_custom_call.1} parent=39 // pred_region
          %s236 = sand.u32 %s28, 1
          %s237 = scalar_lea.sflag [#allocation4], %s236
          %s238 = sand.u32 %s28, 1
          %s239 = smul.addr %s238, 128
          %s240 = scalar_lea.vmem [#allocation3], %s239
          %s241 = smul.u32 16, %s18
          %s242 = ssub.s32 38, %s241
          %p243 = scmp.lt.s32.totalorder %s242, 16
          %s244 = scalar_select %p243, %s242, 16
          %s245 = smul.u32 128, %s244
          %s247 = ssub.s32 2048, %s245
          %248 = vsyncadd %s237, %s247
          %p249 = scmp.ne.s32.totalorder 0, %s245
          %s250 = smul.addr %s241, 128
          %s251 = scalar_lea.hbm %s0, %s250
          %s252 = smul.u32 8, %s244
          %s253 = sshll.u32 %s240, 4
          %s254 = int_to_ptr.vmem [resolvable:$true] %s253
          %s255 = sshll.u32 %s252, 4
          %259 = dma.hbm_to_vmem [thread:$0]  (%p249), %s251, %s255, %s254, %s237, 128, 128, 8
        $region44: #{tpu_custom_call.1} parent=39 // pred_fallthru
          _
      $region40: #{tpu_custom_call.1} parent=5 // pred_fallthru
        _
      %p260 = scmp.le.s32.totalorder 1, %s18
      %p261 = scmp.lt.s32.totalorder %s18, 4
      %p262 = pnand %p260, %p261
      %p263 = pneg %p262
      // Predicated region
      $region45: #{tpu_custom_call.1} parent=5 // pred_check
        _
      $region46: #{tpu_custom_call.1} parent=5 // pred_check_branch
        %265 = sbr.rel (%p262) target = $region48
      $region47: #{tpu_custom_call.1} parent=5 // pred_region
        %s266 = ssub.s32 %s18, 1
        %s267 = sand.u32 %s31, 1
        %s268 = scalar_lea.sflag [#allocation4], %s267
        %s269 = sand.u32 %s31, 1
        %s270 = smul.addr %s269, 128
        %s271 = scalar_lea.vmem [#allocation3], %s270
        // Predicated region
        $region49: #{tpu_custom_call.1} parent=47 // pred_check
          %p272 = pneg %p44
        $region50: #{tpu_custom_call.1} parent=47 // pred_check_branch
          %274 = sbr.rel (%p272) target = $region52
        $region51: #{tpu_custom_call.1} parent=47 // pred_region
          %275 = dma.done %s268, 2048
        $region52: #{tpu_custom_call.1} parent=47 // pred_fallthru
          _
        %s276 = sand.u32 %s31, 1
        %s277 = scalar_lea.sflag [#allocation4], %s276
        %s278 = sand.u32 %s31, 1
        %s279 = smul.addr %s278, 128
        %s280 = scalar_lea.vmem [#allocation3], %s279
        %p281 = pneg %p44
        %p282 = pneg %p41
        %p283 = pneg %p65
        %p284 = pneg %p62
        %p285 = pneg %p86
        %p286 = pneg %p83
        %p287 = pneg %p107
        %p288 = pneg %p104
        %p289 = pneg %p128
        %p290 = pneg %p125
        %p291 = pneg %p149
        %p292 = pneg %p146
        %p293 = pneg %p170
        %p294 = pneg %p167
        %p295 = pneg %p196
        %p296 = pneg %p193
        %s297 = sand.u32 %s183, 1
        %s298 = sand.u32 %s183, 1
        %s299 = smul.addr %s298, 128
        %s300 = scalar_lea.vmem [#allocation5], %s299
        %s301 = smul.u32 16, %s23
        %s302 = ssub.s32 38, %s301
        %p303 = scmp.lt.s32.totalorder %s302, 16
        %s304 = scalar_select %p303, %s302, 16
        %s305 = smul.u32 128, %s304
        %s306 = smul.u32 16, %s23
        %s307 = ssub.s32 38, %s306
        %p308 = scmp.lt.s32.totalorder %s307, 16
        %s309 = scalar_select %p308, %s307, 16
        %s310 = smul.u32 128, %s309
        %v311 = vld [vmem:[%s271] sm:$0xff]
        %v312 = vld [vmem:[%s271 + $0x8] sm:$0xff]
        %v313 = vld [vmem:[%s271 + $0x10] sm:$0xff]
        %v314 = vld [vmem:[%s271 + $0x18] sm:$0xff]
        %v315 = vld [vmem:[%s271 + $0x20] sm:$0xff]
        %v316 = vld [vmem:[%s271 + $0x28] sm:$0xff]
        %v317 = vld [vmem:[%s271 + $0x30] sm:$0xff]
        %v318 = vld [vmem:[%s271 + $0x38] sm:$0xff]
        %v319 = vld [vmem:[%s271 + $0x40] sm:$0xff]
        %v320 = vld [vmem:[%s271 + $0x48] sm:$0xff]
        %v321 = vld [vmem:[%s271 + $0x50] sm:$0xff]
        %v322 = vld [vmem:[%s271 + $0x58] sm:$0xff]
        %v323 = vld [vmem:[%s271 + $0x60] sm:$0xff]
        %v324 = vld [vmem:[%s271 + $0x68] sm:$0xff]
        %v325 = vld [vmem:[%s271 + $0x70] sm:$0xff]
        %v326 = vld [vmem:[%s271 + $0x78] sm:$0xff]
        %v327 = vld [vmem:[%s1] sm:$0xff]
        %v328 = vld [vmem:[%s1 + $0x8] sm:$0xff]
        %v329 = vld [vmem:[%s1 + $0x10] sm:$0xff]
        %v330 = vld [vmem:[%s1 + $0x18] sm:$0xff]
        %v331 = vld [vmem:[%s1 + $0x20] sm:$0xff]
        %v332 = vld [vmem:[%s1 + $0x28] sm:$0xff]
        %v333 = vld [vmem:[%s1 + $0x30] sm:$0xff]
        %v334 = vld [vmem:[%s1 + $0x38] sm:$0xff]
        %v335 = vld [vmem:[%s1 + $0x40] sm:$0xff]
        %v336 = vld [vmem:[%s1 + $0x48] sm:$0xff]
        %v337 = vld [vmem:[%s1 + $0x50] sm:$0xff]
        %v338 = vld [vmem:[%s1 + $0x58] sm:$0xff]
        %v339 = vld [vmem:[%s1 + $0x60] sm:$0xf]
        %v340 = vld [vmem:[%s2] sm:$0x1]
        %v342 = vlaneseq
        %v343 = vshrl.u32 %v342, 7
        %v344 = vsub.s32 0, %v343
        %v345 = vrot.slane %v340, %v344
        %vm347 = vcmask 818176
        %v349 = vsel %vm347, %v311, 0
        %v352 = vsel %vm347, %v312, 0
        %v355 = vsel %vm347, %v313, 0
        %v358 = vsel %vm347, %v314, 0
        %v361 = vsel %vm347, %v315, 0
        %v364 = vsel %vm347, %v316, 0
        %v367 = vsel %vm347, %v317, 0
        %v370 = vsel %vm347, %v318, 0
        %v373 = vsel %vm347, %v319, 0
        %v376 = vsel %vm347, %v320, 0
        %v379 = vsel %vm347, %v321, 0
        %v382 = vsel %vm347, %v322, 0
        %v385 = vsel %vm347, %v323, 0
        %v388 = vsel %vm347, %v324, 0
        %v391 = vsel %vm347, %v325, 0
        %v394 = vsel %vm347, %v326, 0
        %vm396 = vcmask 1043456
        %v398 = vsel %vm396, %v339, 0
        %400 = vmatprep.subr.mxu0 0.0
        %v401 = vand.u32 %v327, 4294901760
        %402 = vmatpush1.msra.mxu0 %v401
        %403 = vmatprep.subr.mxu0 0.0
        %v404 = vand.u32 %v328, 4294901760
        %405 = vmatpush1.msra.mxu0 %v404
        %406 = vmatprep.subr.mxu0 0.0
        %v407 = vand.u32 %v329, 4294901760
        %408 = vmatpush1.msra.mxu0 %v407
        %409 = vmatprep.subr.mxu0 0.0
        %v410 = vand.u32 %v330, 4294901760
        %411 = vmatpush1.msra.mxu0 %v410
        %412 = vmatprep.subr.mxu0 0.0
        %v413 = vand.u32 %v331, 4294901760
        %414 = vmatpush1.msra.mxu0 %v413
        %415 = vmatprep.subr.mxu0 0.0
        %v416 = vand.u32 %v332, 4294901760
        %417 = vmatpush1.msra.mxu0 %v416
        %418 = vmatprep.subr.mxu0 0.0
        %v419 = vand.u32 %v333, 4294901760
        %420 = vmatpush1.msra.mxu0 %v419
        %421 = vmatprep.subr.mxu0 0.0
        %v422 = vand.u32 %v334, 4294901760
        %423 = vmatpush1.msra.mxu0 %v422
        %424 = vmatprep.subr.mxu0 0.0
        %v425 = vand.u32 %v335, 4294901760
        %426 = vmatpush1.msra.mxu0 %v425
        %427 = vmatprep.subr.mxu0 0.0
        %v428 = vand.u32 %v336, 4294901760
        %429 = vmatpush1.msra.mxu0 %v428
        %430 = vmatprep.subr.mxu0 0.0
        %v431 = vand.u32 %v337, 4294901760
        %432 = vmatpush1.msra.mxu0 %v431
        %433 = vmatprep.subr.mxu0 0.0
        %v434 = vand.u32 %v338, 4294901760
        %435 = vmatpush1.msra.mxu0 %v434
        %436 = vmatprep.subr.mxu0 0.0
        %v437 = vand.u32 %v398, 4294901760
        %438 = vmatpush1.msra.mxu0 %v437
        %439 = vmatprep.subr.mxu0 0.0
        %440 = vmatpush1.msra.mxu0 0.0
        %441 = vmatprep.subr.mxu0 0.0
        %442 = vmatpush1.msra.mxu0 0.0
        %443 = vmatprep.subr.mxu0 0.0
        %444 = vmatpush1.msra.mxu0 0.0
        %445 = vmatprep.subr.mxu0 0.0
        %446 = vmatpush1.msra.mxu0 0.0
        %447 = vmatprep.subr.mxu0 0.0
        %448 = vmatpush1.msra.mxu0 0.0
        %449 = vmatprep.subr.mxu0 0.0
        %450 = vmatpush1.msra.mxu0 0.0
        %451 = vmatprep.subr.mxu0 0.0
        %452 = vmatpush1.msra.mxu0 0.0
        %453 = vmatprep.subr.mxu0 0.0
        %454 = vmatpush1.msra.mxu0 0.0
        %455 = vmatprep.subr.mxu0 0.0
        %456 = vmatpush1.msra.mxu0 0.0
        %457 = vmatprep.subr.mxu0 0.0
        %458 = vmatpush1.msra.mxu0 0.0
        %459 = vmatprep.subr.mxu0 0.0
        %460 = vmatpush1.msra.mxu0 0.0
        %461 = vmatprep.subr.mxu0 0.0
        %462 = vmatpush1.msra.mxu0 0.0
        %463 = vmatprep.subr.mxu0 0.0
        %464 = vmatpush1.msra.mxu0 0.0
        %465 = vmatprep.subr.mxu0 0.0
        %466 = vmatpush1.msra.mxu0 0.0
        %467 = vmatprep.subr.mxu0 0.0
        %468 = vmatpush1.msra.mxu0 0.0
        %469 = vmatprep.subr.mxu0 0.0
        %470 = vmatpush1.msra.mxu0 0.0
        %471 = vmatprep.subr.mxu0 0.0
        %472 = vmatpush1.msra.mxu0 0.0
        %473 = vmatprep.subr.mxu0 0.0
        %474 = vmatpush1.msra.mxu0 0.0
        %475 = vmatprep.subr.mxu0 0.0
        %476 = vmatpush1.msra.mxu0 0.0
        %477 = vmatprep.mubr.f32.mxu0 0.0
        %v478 = vand.u32 %v349, 4294901760
        %v479 = vsub.f32 %v349, %v478
        %v480 = vand.u32 %v479, 4294901760
        %v481 = vsub.f32 %v479, %v480
        %v482 = vand.u32 %v481, 4294901760
        %483 = vmatmul.mubr.f32.gmra.mrb[0].mxu0 %v482
        %v484 = vpop.f32.mrb[0].mxu0
        %v485 = vadd.f32 %v345, %v484
        %v486 = vpop.f32.mrb[0].mxu0
        %487 = vmatprep.mubr.f32.mxu0 0.0
        %v488 = vand.u32 %v352, 4294901760
        %v489 = vsub.f32 %v352, %v488
        %v490 = vand.u32 %v489, 4294901760
        %v491 = vsub.f32 %v489, %v490
        %v492 = vand.u32 %v491, 4294901760
        %493 = vmatmul.mubr.f32.gmra.mrb[0].mxu0 %v492
        %v494 = vpop.f32.mrb[0].mxu0
        %v495 = vadd.f32 %v345, %v494
        %v496 = vpop.f32.mrb[0].mxu0
        %497 = vmatprep.mubr.f32.mxu0 0.0
        %v498 = vand.u32 %v355, 4294901760
        %v499 = vsub.f32 %v355, %v498
        %v500 = vand.u32 %v499, 4294901760
        %v501 = vsub.f32 %v499, %v500
        %v502 = vand.u32 %v501, 4294901760
        %503 = vmatmul.mubr.f32.gmra.mrb[0].mxu0 %v502
        %v504 = vpop.f32.mrb[0].mxu0
        %v505 = vadd.f32 %v345, %v504
        %v506 = vpop.f32.mrb[0].mxu0
        %507 = vmatprep.mubr.f32.mxu0 0.0
        %v508 = vand.u32 %v358, 4294901760
        %v509 = vsub.f32 %v358, %v508
        %v510 = vand.u32 %v509, 4294901760
        %v511 = vsub.f32 %v509, %v510
        %v512 = vand.u32 %v511, 4294901760
        %513 = vmatmul.mubr.f32.gmra.mrb[0].mxu0 %v512
        %v514 = vpop.f32.mrb[0].mxu0
        %v515 = vadd.f32 %v345, %v514
        %v516 = vpop.f32.mrb[0].mxu0
        %517 = vmatprep.mubr.f32.mxu0 0.0
        %v518 = vand.u32 %v361, 4294901760
        %v519 = vsub.f32 %v361, %v518
        %v520 = vand.u32 %v519, 4294901760
        %v521 = vsub.f32 %v519, %v520
        %v522 = vand.u32 %v521, 4294901760
        %523 = vmatmul.mubr.f32.gmra.mrb[0].mxu0 %v522
        %v524 = vpop.f32.mrb[0].mxu0
        %v525 = vadd.f32 %v345, %v524
        %v526 = vpop.f32.mrb[0].mxu0
        %527 = vmatprep.mubr.f32.mxu0 0.0
        %v528 = vand.u32 %v364, 4294901760
        %v529 = vsub.f32 %v364, %v528
        %v530 = vand.u32 %v529, 4294901760
        %v531 = vsub.f32 %v529, %v530
        %v532 = vand.u32 %v531, 4294901760
        %533 = vmatmul.mubr.f32.gmra.mrb[0].mxu0 %v532
        %v534 = vpop.f32.mrb[0].mxu0
        %v535 = vadd.f32 %v345, %v534
        %v536 = vpop.f32.mrb[0].mxu0
        %537 = vmatprep.mubr.f32.mxu0 0.0
        %v538 = vand.u32 %v367, 4294901760
        %v539 = vsub.f32 %v367, %v538
        %v540 = vand.u32 %v539, 4294901760
        %v541 = vsub.f32 %v539, %v540
        %v542 = vand.u32 %v541, 4294901760
        %543 = vmatmul.mubr.f32.gmra.mrb[0].mxu0 %v542
        %v544 = vpop.f32.mrb[0].mxu0
        %v545 = vadd.f32 %v345, %v544
        %v546 = vpop.f32.mrb[0].mxu0
        %547 = vmatprep.mubr.f32.mxu0 0.0
        %v548 = vand.u32 %v370, 4294901760
        %v549 = vsub.f32 %v370, %v548
        %v550 = vand.u32 %v549, 4294901760
        %v551 = vsub.f32 %v549, %v550
        %v552 = vand.u32 %v551, 4294901760
        %553 = vmatmul.mubr.f32.gmra.mrb[0].mxu0 %v552
        %v554 = vpop.f32.mrb[0].mxu0
        %v555 = vadd.f32 %v345, %v554
        %v556 = vpop.f32.mrb[0].mxu0
        %557 = vmatprep.mubr.f32.mxu0 0.0
        %v558 = vand.u32 %v373, 4294901760
        %v559 = vsub.f32 %v373, %v558
        %v560 = vand.u32 %v559, 4294901760
        %v561 = vsub.f32 %v559, %v560
        %v562 = vand.u32 %v561, 4294901760
        %563 = vmatmul.mubr.f32.gmra.mrb[0].mxu0 %v562
        %v564 = vpop.f32.mrb[0].mxu0
        %v565 = vadd.f32 %v345, %v564
        %v566 = vpop.f32.mrb[0].mxu0
        %567 = vmatprep.mubr.f32.mxu0 0.0
        %v568 = vand.u32 %v376, 4294901760
        %v569 = vsub.f32 %v376, %v568
        %v570 = vand.u32 %v569, 4294901760
        %v571 = vsub.f32 %v569, %v570
        %v572 = vand.u32 %v571, 4294901760
        %573 = vmatmul.mubr.f32.gmra.mrb[0].mxu0 %v572
        %v574 = vpop.f32.mrb[0].mxu0
        %v575 = vadd.f32 %v345, %v574
        %v576 = vpop.f32.mrb[0].mxu0
        %577 = vmatprep.mubr.f32.mxu0 0.0
        %v578 = vand.u32 %v379, 4294901760
        %v579 = vsub.f32 %v379, %v578
        %v580 = vand.u32 %v579, 4294901760
        %v581 = vsub.f32 %v579, %v580
        %v582 = vand.u32 %v581, 4294901760
        %583 = vmatmul.mubr.f32.gmra.mrb[0].mxu0 %v582
        %v584 = vpop.f32.mrb[0].mxu0
        %v585 = vadd.f32 %v345, %v584
        %v586 = vpop.f32.mrb[0].mxu0
        %587 = vmatprep.mubr.f32.mxu0 0.0
        %v588 = vand.u32 %v382, 4294901760
        %v589 = vsub.f32 %v382, %v588
        %v590 = vand.u32 %v589, 4294901760
        %v591 = vsub.f32 %v589, %v590
        %v592 = vand.u32 %v591, 4294901760
        %593 = vmatmul.mubr.f32.gmra.mrb[0].mxu0 %v592
        %v594 = vpop.f32.mrb[0].mxu0
        %v595 = vadd.f32 %v345, %v594
        %v596 = vpop.f32.mrb[0].mxu0
        %597 = vmatprep.mubr.f32.mxu0 0.0
        %v598 = vand.u32 %v385, 4294901760
        %v599 = vsub.f32 %v385, %v598
        %v600 = vand.u32 %v599, 4294901760
        %v601 = vsub.f32 %v599, %v600
        %v602 = vand.u32 %v601, 4294901760
        %603 = vmatmul.mubr.f32.gmra.mrb[0].mxu0 %v602
        %v604 = vpop.f32.mrb[0].mxu0
        %v605 = vadd.f32 %v345, %v604
        %v606 = vpop.f32.mrb[0].mxu0
        %607 = vmatprep.mubr.f32.mxu0 0.0
        %v608 = vand.u32 %v388, 4294901760
        %v609 = vsub.f32 %v388, %v608
        %v610 = vand.u32 %v609, 4294901760
        %v611 = vsub.f32 %v609, %v610
        %v612 = vand.u32 %v611, 4294901760
        %613 = vmatmul.mubr.f32.gmra.mrb[0].mxu0 %v612
        %v614 = vpop.f32.mrb[0].mxu0
        %v615 = vadd.f32 %v345, %v614
        %v616 = vpop.f32.mrb[0].mxu0
        %617 = vmatprep.mubr.f32.mxu0 0.0
        %v618 = vand.u32 %v391, 4294901760
        %v619 = vsub.f32 %v391, %v618
        %v620 = vand.u32 %v619, 4294901760
        %v621 = vsub.f32 %v619, %v620
        %v622 = vand.u32 %v621, 4294901760
        %623 = vmatmul.mubr.f32.gmra.mrb[0].mxu0 %v622
        %v624 = vpop.f32.mrb[0].mxu0
        %v625 = vadd.f32 %v345, %v624
        %v626 = vpop.f32.mrb[0].mxu0
        %627 = vmatprep.mubr.f32.mxu0 0.0
        %v628 = vand.u32 %v394, 4294901760
        %v629 = vsub.f32 %v394, %v628
        %v630 = vand.u32 %v629, 4294901760
        %v631 = vsub.f32 %v629, %v630
        %v632 = vand.u32 %v631, 4294901760
        %633 = vmatmul.mubr.f32.gmra.mrb[0].mxu0 %v632
        %v634 = vpop.f32.mrb[0].mxu0
        %v635 = vadd.f32 %v345, %v634
        %v636 = vpop.f32.mrb[0].mxu0
        %637 = vdwg.mxu0
        %638 = vmatprep.subr.mxu0 0.0
        %v639 = vand.u32 %v327, 4294901760
        %v640 = vsub.f32 %v327, %v639
        %v641 = vand.u32 %v640, 4294901760
        %v642 = vsub.f32 %v640, %v641
        %v643 = vand.u32 %v642, 4294901760
        %644 = vmatpush1.msra.mxu0 %v643
        %645 = vmatprep.subr.mxu0 0.0
        %v646 = vand.u32 %v328, 4294901760
        %v647 = vsub.f32 %v328, %v646
        %v648 = vand.u32 %v647, 4294901760
        %v649 = vsub.f32 %v647, %v648
        %v650 = vand.u32 %v649, 4294901760
        %651 = vmatpush1.msra.mxu0 %v650
        %652 = vmatprep.subr.mxu0 0.0
        %v653 = vand.u32 %v329, 4294901760
        %v654 = vsub.f32 %v329, %v653
        %v655 = vand.u32 %v654, 4294901760
        %v656 = vsub.f32 %v654, %v655
        %v657 = vand.u32 %v656, 4294901760
        %658 = vmatpush1.msra.mxu0 %v657
        %659 = vmatprep.subr.mxu0 0.0
        %v660 = vand.u32 %v330, 4294901760
        %v661 = vsub.f32 %v330, %v660
        %v662 = vand.u32 %v661, 4294901760
        %v663 = vsub.f32 %v661, %v662
        %v664 = vand.u32 %v663, 4294901760
        %665 = vmatpush1.msra.mxu0 %v664
        %666 = vmatprep.subr.mxu0 0.0
        %v667 = vand.u32 %v331, 4294901760
        %v668 = vsub.f32 %v331, %v667
        %v669 = vand.u32 %v668, 4294901760
        %v670 = vsub.f32 %v668, %v669
        %v671 = vand.u32 %v670, 4294901760
        %672 = vmatpush1.msra.mxu0 %v671
        %673 = vmatprep.subr.mxu0 0.0
        %v674 = vand.u32 %v332, 4294901760
        %v675 = vsub.f32 %v332, %v674
        %v676 = vand.u32 %v675, 4294901760
        %v677 = vsub.f32 %v675, %v676
        %v678 = vand.u32 %v677, 4294901760
        %679 = vmatpush1.msra.mxu0 %v678
        %680 = vmatprep.subr.mxu0 0.0
        %v681 = vand.u32 %v333, 4294901760
        %v682 = vsub.f32 %v333, %v681
        %v683 = vand.u32 %v682, 4294901760
        %v684 = vsub.f32 %v682, %v683
        %v685 = vand.u32 %v684, 4294901760
        %686 = vmatpush1.msra.mxu0 %v685
        %687 = vmatprep.subr.mxu0 0.0
        %v688 = vand.u32 %v334, 4294901760
        %v689 = vsub.f32 %v334, %v688
        %v690 = vand.u32 %v689, 4294901760
        %v691 = vsub.f32 %v689, %v690
        %v692 = vand.u32 %v691, 4294901760
        %693 = vmatpush1.msra.mxu0 %v692
        %694 = vmatprep.subr.mxu0 0.0
        %v695 = vand.u32 %v335, 4294901760
        %v696 = vsub.f32 %v335, %v695
        %v697 = vand.u32 %v696, 4294901760
        %v698 = vsub.f32 %v696, %v697
        %v699 = vand.u32 %v698, 4294901760
        %700 = vmatpush1.msra.mxu0 %v699
        %701 = vmatprep.subr.mxu0 0.0
        %v702 = vand.u32 %v336, 4294901760
        %v703 = vsub.f32 %v336, %v702
        %v704 = vand.u32 %v703, 4294901760
        %v705 = vsub.f32 %v703, %v704
        %v706 = vand.u32 %v705, 4294901760
        %707 = vmatpush1.msra.mxu0 %v706
        %708 = vmatprep.subr.mxu0 0.0
        %v709 = vand.u32 %v337, 4294901760
        %v710 = vsub.f32 %v337, %v709
        %v711 = vand.u32 %v710, 4294901760
        %v712 = vsub.f32 %v710, %v711
        %v713 = vand.u32 %v712, 4294901760
        %714 = vmatpush1.msra.mxu0 %v713
        %715 = vmatprep.subr.mxu0 0.0
        %v716 = vand.u32 %v338, 4294901760
        %v717 = vsub.f32 %v338, %v716
        %v718 = vand.u32 %v717, 4294901760
        %v719 = vsub.f32 %v717, %v718
        %v720 = vand.u32 %v719, 4294901760
        %721 = vmatpush1.msra.mxu0 %v720
        %722 = vmatprep.subr.mxu0 0.0
        %v723 = vand.u32 %v398, 4294901760
        %v724 = vsub.f32 %v398, %v723
        %v725 = vand.u32 %v724, 4294901760
        %v726 = vsub.f32 %v724, %v725
        %v727 = vand.u32 %v726, 4294901760
        %728 = vmatpush1.msra.mxu0 %v727
        %729 = vmatprep.subr.mxu0 0.0
        %730 = vmatpush1.msra.mxu0 0.0
        %731 = vmatprep.subr.mxu0 0.0
        %732 = vmatpush1.msra.mxu0 0.0
        %733 = vmatprep.subr.mxu0 0.0
        %734 = vmatpush1.msra.mxu0 0.0
        %735 = vmatprep.subr.mxu0 0.0
        %736 = vmatpush1.msra.mxu0 0.0
        %737 = vmatprep.subr.mxu0 0.0
        %738 = vmatpush1.msra.mxu0 0.0
        %739 = vmatprep.subr.mxu0 0.0
        %740 = vmatpush1.msra.mxu0 0.0
        %741 = vmatprep.subr.mxu0 0.0
        %742 = vmatpush1.msra.mxu0 0.0
        %743 = vmatprep.subr.mxu0 0.0
        %744 = vmatpush1.msra.mxu0 0.0
        %745 = vmatprep.subr.mxu0 0.0
        %746 = vmatpush1.msra.mxu0 0.0
        %747 = vmatprep.subr.mxu0 0.0
        %748 = vmatpush1.msra.mxu0 0.0
        %749 = vmatprep.subr.mxu0 0.0
        %750 = vmatpush1.msra.mxu0 0.0
        %751 = vmatprep.subr.mxu0 0.0
        %752 = vmatpush1.msra.mxu0 0.0
        %753 = vmatprep.subr.mxu0 0.0
        %754 = vmatpush1.msra.mxu0 0.0
        %755 = vmatprep.subr.mxu0 0.0
        %756 = vmatpush1.msra.mxu0 0.0
        %757 = vmatprep.subr.mxu0 0.0
        %758 = vmatpush1.msra.mxu0 0.0
        %759 = vmatprep.subr.mxu0 0.0
        %760 = vmatpush1.msra.mxu0 0.0
        %761 = vmatprep.subr.mxu0 0.0
        %762 = vmatpush1.msra.mxu0 0.0
        %763 = vmatprep.subr.mxu0 0.0
        %764 = vmatpush1.msra.mxu0 0.0
        %765 = vmatprep.subr.mxu0 0.0
        %766 = vmatpush1.msra.mxu0 0.0
        %767 = vmatprep.mubr.f32.mxu0 0.0
        %v768 = vand.u32 %v349, 4294901760
        %769 = vmatmul.mubr.f32.gmra.mrb[0].mxu0 %v768
        %v770 = vpop.f32.mrb[0].mxu0
        %v771 = vadd.f32 %v485, %v770
        %v772 = vpop.f32.mrb[0].mxu0
        %773 = vmatprep.mubr.f32.mxu0 0.0
        %v774 = vand.u32 %v352, 4294901760
        %775 = vmatmul.mubr.f32.gmra.mrb[0].mxu0 %v774
        %v776 = vpop.f32.mrb[0].mxu0
        %v777 = vadd.f32 %v495, %v776
        %v778 = vpop.f32.mrb[0].mxu0
        %779 = vmatprep.mubr.f32.mxu0 0.0
        %v780 = vand.u32 %v355, 4294901760
        %781 = vmatmul.mubr.f32.gmra.mrb[0].mxu0 %v780
        %v782 = vpop.f32.mrb[0].mxu0
        %v783 = vadd.f32 %v505, %v782
        %v784 = vpop.f32.mrb[0].mxu0
        %785 = vmatprep.mubr.f32.mxu0 0.0
        %v786 = vand.u32 %v358, 4294901760
        %787 = vmatmul.mubr.f32.gmra.mrb[0].mxu0 %v786
        %v788 = vpop.f32.mrb[0].mxu0
        %v789 = vadd.f32 %v515, %v788
        %v790 = vpop.f32.mrb[0].mxu0
        %791 = vmatprep.mubr.f32.mxu0 0.0
        %v792 = vand.u32 %v361, 4294901760
        %793 = vmatmul.mubr.f32.gmra.mrb[0].mxu0 %v792
        %v794 = vpop.f32.mrb[0].mxu0
        %v795 = vadd.f32 %v525, %v794
        %v796 = vpop.f32.mrb[0].mxu0
        %797 = vmatprep.mubr.f32.mxu0 0.0
        %v798 = vand.u32 %v364, 4294901760
        %799 = vmatmul.mubr.f32.gmra.mrb[0].mxu0 %v798
        %v800 = vpop.f32.mrb[0].mxu0
        %v801 = vadd.f32 %v535, %v800
        %v802 = vpop.f32.mrb[0].mxu0
        %803 = vmatprep.mubr.f32.mxu0 0.0
        %v804 = vand.u32 %v367, 4294901760
        %805 = vmatmul.mubr.f32.gmra.mrb[0].mxu0 %v804
        %v806 = vpop.f32.mrb[0].mxu0
        %v807 = vadd.f32 %v545, %v806
        %v808 = vpop.f32.mrb[0].mxu0
        %809 = vmatprep.mubr.f32.mxu0 0.0
        %v810 = vand.u32 %v370, 4294901760
        %811 = vmatmul.mubr.f32.gmra.mrb[0].mxu0 %v810
        %v812 = vpop.f32.mrb[0].mxu0
        %v813 = vadd.f32 %v555, %v812
        %v814 = vpop.f32.mrb[0].mxu0
        %815 = vmatprep.mubr.f32.mxu0 0.0
        %v816 = vand.u32 %v373, 4294901760
        %817 = vmatmul.mubr.f32.gmra.mrb[0].mxu0 %v816
        %v818 = vpop.f32.mrb[0].mxu0
        %v819 = vadd.f32 %v565, %v818
        %v820 = vpop.f32.mrb[0].mxu0
        %821 = vmatprep.mubr.f32.mxu0 0.0
        %v822 = vand.u32 %v376, 4294901760
        %823 = vmatmul.mubr.f32.gmra.mrb[0].mxu0 %v822
        %v824 = vpop.f32.mrb[0].mxu0
        %v825 = vadd.f32 %v575, %v824
        %v826 = vpop.f32.mrb[0].mxu0
        %827 = vmatprep.mubr.f32.mxu0 0.0
        %v828 = vand.u32 %v379, 4294901760
        %829 = vmatmul.mubr.f32.gmra.mrb[0].mxu0 %v828
        %v830 = vpop.f32.mrb[0].mxu0
        %v831 = vadd.f32 %v585, %v830
        %v832 = vpop.f32.mrb[0].mxu0
        %833 = vmatprep.mubr.f32.mxu0 0.0
        %v834 = vand.u32 %v382, 4294901760
        %835 = vmatmul.mubr.f32.gmra.mrb[0].mxu0 %v834
        %v836 = vpop.f32.mrb[0].mxu0
        %v837 = vadd.f32 %v595, %v836
        %v838 = vpop.f32.mrb[0].mxu0
        %839 = vmatprep.mubr.f32.mxu0 0.0
        %v840 = vand.u32 %v385, 4294901760
        %841 = vmatmul.mubr.f32.gmra.mrb[0].mxu0 %v840
        %v842 = vpop.f32.mrb[0].mxu0
        %v843 = vadd.f32 %v605, %v842
        %v844 = vpop.f32.mrb[0].mxu0
        %845 = vmatprep.mubr.f32.mxu0 0.0
        %v846 = vand.u32 %v388, 4294901760
        %847 = vmatmul.mubr.f32.gmra.mrb[0].mxu0 %v846
        %v848 = vpop.f32.mrb[0].mxu0
        %v849 = vadd.f32 %v615, %v848
        %v850 = vpop.f32.mrb[0].mxu0
        %851 = vmatprep.mubr.f32.mxu0 0.0
        %v852 = vand.u32 %v391, 4294901760
        %853 = vmatmul.mubr.f32.gmra.mrb[0].mxu0 %v852
        %v854 = vpop.f32.mrb[0].mxu0
        %v855 = vadd.f32 %v625, %v854
        %v856 = vpop.f32.mrb[0].mxu0
        %857 = vmatprep.mubr.f32.mxu0 0.0
        %v858 = vand.u32 %v394, 4294901760
        %859 = vmatmul.mubr.f32.gmra.mrb[0].mxu0 %v858
        %v860 = vpop.f32.mrb[0].mxu0
        %v861 = vadd.f32 %v635, %v860
        %v862 = vpop.f32.mrb[0].mxu0
        %863 = vdwg.mxu0
        %864 = vmatprep.subr.mxu0 0.0
        %v865 = vand.u32 %v327, 4294901760
        %v866 = vsub.f32 %v327, %v865
        %867 = vmatpush1.msra.mxu0 %v866
        %868 = vmatprep.subr.mxu0 0.0
        %v869 = vand.u32 %v328, 4294901760
        %v870 = vsub.f32 %v328, %v869
        %871 = vmatpush1.msra.mxu0 %v870
        %872 = vmatprep.subr.mxu0 0.0
        %v873 = vand.u32 %v329, 4294901760
        %v874 = vsub.f32 %v329, %v873
        %875 = vmatpush1.msra.mxu0 %v874
        %876 = vmatprep.subr.mxu0 0.0
        %v877 = vand.u32 %v330, 4294901760
        %v878 = vsub.f32 %v330, %v877
        %879 = vmatpush1.msra.mxu0 %v878
        %880 = vmatprep.subr.mxu0 0.0
        %v881 = vand.u32 %v331, 4294901760
        %v882 = vsub.f32 %v331, %v881
        %883 = vmatpush1.msra.mxu0 %v882
        %884 = vmatprep.subr.mxu0 0.0
        %v885 = vand.u32 %v332, 4294901760
        %v886 = vsub.f32 %v332, %v885
        %887 = vmatpush1.msra.mxu0 %v886
        %888 = vmatprep.subr.mxu0 0.0
        %v889 = vand.u32 %v333, 4294901760
        %v890 = vsub.f32 %v333, %v889
        %891 = vmatpush1.msra.mxu0 %v890
        %892 = vmatprep.subr.mxu0 0.0
        %v893 = vand.u32 %v334, 4294901760
        %v894 = vsub.f32 %v334, %v893
        %895 = vmatpush1.msra.mxu0 %v894
        %896 = vmatprep.subr.mxu0 0.0
        %v897 = vand.u32 %v335, 4294901760
        %v898 = vsub.f32 %v335, %v897
        %899 = vmatpush1.msra.mxu0 %v898
        %900 = vmatprep.subr.mxu0 0.0
        %v901 = vand.u32 %v336, 4294901760
        %v902 = vsub.f32 %v336, %v901
        %903 = vmatpush1.msra.mxu0 %v902
        %904 = vmatprep.subr.mxu0 0.0
        %v905 = vand.u32 %v337, 4294901760
        %v906 = vsub.f32 %v337, %v905
        %907 = vmatpush1.msra.mxu0 %v906
        %908 = vmatprep.subr.mxu0 0.0
        %v909 = vand.u32 %v338, 4294901760
        %v910 = vsub.f32 %v338, %v909
        %911 = vmatpush1.msra.mxu0 %v910
        %912 = vmatprep.subr.mxu0 0.0
        %v913 = vand.u32 %v398, 4294901760
        %v914 = vsub.f32 %v398, %v913
        %915 = vmatpush1.msra.mxu0 %v914
        %916 = vmatprep.subr.mxu0 0.0
        %917 = vmatpush1.msra.mxu0 0.0
        %918 = vmatprep.subr.mxu0 0.0
        %919 = vmatpush1.msra.mxu0 0.0
        %920 = vmatprep.subr.mxu0 0.0
        %921 = vmatpush1.msra.mxu0 0.0
        %922 = vmatprep.subr.mxu0 0.0
        %923 = vmatpush1.msra.mxu0 0.0
        %924 = vmatprep.subr.mxu0 0.0
        %925 = vmatpush1.msra.mxu0 0.0
        %926 = vmatprep.subr.mxu0 0.0
        %927 = vmatpush1.msra.mxu0 0.0
        %928 = vmatprep.subr.mxu0 0.0
        %929 = vmatpush1.msra.mxu0 0.0
        %930 = vmatprep.subr.mxu0 0.0
        %931 = vmatpush1.msra.mxu0 0.0
        %932 = vmatprep.subr.mxu0 0.0
        %933 = vmatpush1.msra.mxu0 0.0
        %934 = vmatprep.subr.mxu0 0.0
        %935 = vmatpush1.msra.mxu0 0.0
        %936 = vmatprep.subr.mxu0 0.0
        %937 = vmatpush1.msra.mxu0 0.0
        %938 = vmatprep.subr.mxu0 0.0
        %939 = vmatpush1.msra.mxu0 0.0
        %940 = vmatprep.subr.mxu0 0.0
        %941 = vmatpush1.msra.mxu0 0.0
        %942 = vmatprep.subr.mxu0 0.0
        %943 = vmatpush1.msra.mxu0 0.0
        %944 = vmatprep.subr.mxu0 0.0
        %945 = vmatpush1.msra.mxu0 0.0
        %946 = vmatprep.subr.mxu0 0.0
        %947 = vmatpush1.msra.mxu0 0.0
        %948 = vmatprep.subr.mxu0 0.0
        %949 = vmatpush1.msra.mxu0 0.0
        %950 = vmatprep.subr.mxu0 0.0
        %951 = vmatpush1.msra.mxu0 0.0
        %952 = vmatprep.subr.mxu0 0.0
        %953 = vmatpush1.msra.mxu0 0.0
        %954 = vmatprep.mubr.f32.mxu0 0.0
        %v955 = vand.u32 %v349, 4294901760
        %v956 = vsub.f32 %v349, %v955
        %957 = vmatmul.mubr.f32.gmra.mrb[0].mxu0 %v956
        %v958 = vpop.f32.mrb[0].mxu0
        %v959 = vadd.f32 %v771, %v958
        %v960 = vpop.f32.mrb[0].mxu0
        %961 = vmatprep.mubr.f32.mxu0 0.0
        %v962 = vand.u32 %v352, 4294901760
        %v963 = vsub.f32 %v352, %v962
        %964 = vmatmul.mubr.f32.gmra.mrb[0].mxu0 %v963
        %v965 = vpop.f32.mrb[0].mxu0
        %v966 = vadd.f32 %v777, %v965
        %v967 = vpop.f32.mrb[0].mxu0
        %968 = vmatprep.mubr.f32.mxu0 0.0
        %v969 = vand.u32 %v355, 4294901760
        %v970 = vsub.f32 %v355, %v969
        %971 = vmatmul.mubr.f32.gmra.mrb[0].mxu0 %v970
        %v972 = vpop.f32.mrb[0].mxu0
        %v973 = vadd.f32 %v783, %v972
        %v974 = vpop.f32.mrb[0].mxu0
        %975 = vmatprep.mubr.f32.mxu0 0.0
        %v976 = vand.u32 %v358, 4294901760
        %v977 = vsub.f32 %v358, %v976
        %978 = vmatmul.mubr.f32.gmra.mrb[0].mxu0 %v977
        %v979 = vpop.f32.mrb[0].mxu0
        %v980 = vadd.f32 %v789, %v979
        %v981 = vpop.f32.mrb[0].mxu0
        %982 = vmatprep.mubr.f32.mxu0 0.0
        %v983 = vand.u32 %v361, 4294901760
        %v984 = vsub.f32 %v361, %v983
        %985 = vmatmul.mubr.f32.gmra.mrb[0].mxu0 %v984
        %v986 = vpop.f32.mrb[0].mxu0
        %v987 = vadd.f32 %v795, %v986
        %v988 = vpop.f32.mrb[0].mxu0
        %989 = vmatprep.mubr.f32.mxu0 0.0
        %v990 = vand.u32 %v364, 4294901760
        %v991 = vsub.f32 %v364, %v990
        %992 = vmatmul.mubr.f32.gmra.mrb[0].mxu0 %v991
        %v993 = vpop.f32.mrb[0].mxu0
        %v994 = vadd.f32 %v801, %v993
        %v995 = vpop.f32.mrb[0].mxu0
        %996 = vmatprep.mubr.f32.mxu0 0.0
        %v997 = vand.u32 %v367, 4294901760
        %v998 = vsub.f32 %v367, %v997
        %999 = vmatmul.mubr.f32.gmra.mrb[0].mxu0 %v998
        %v1000 = vpop.f32.mrb[0].mxu0
        %v1001 = vadd.f32 %v807, %v1000
        %v1002 = vpop.f32.mrb[0].mxu0
        %1003 = vmatprep.mubr.f32.mxu0 0.0
        %v1004 = vand.u32 %v370, 4294901760
        %v1005 = vsub.f32 %v370, %v1004
        %1006 = vmatmul.mubr.f32.gmra.mrb[0].mxu0 %v1005
        %v1007 = vpop.f32.mrb[0].mxu0
        %v1008 = vadd.f32 %v813, %v1007
        %v1009 = vpop.f32.mrb[0].mxu0
        %1010 = vmatprep.mubr.f32.mxu0 0.0
        %v1011 = vand.u32 %v373, 4294901760
        %v1012 = vsub.f32 %v373, %v1011
        %1013 = vmatmul.mubr.f32.gmra.mrb[0].mxu0 %v1012
        %v1014 = vpop.f32.mrb[0].mxu0
        %v1015 = vadd.f32 %v819, %v1014
        %v1016 = vpop.f32.mrb[0].mxu0
        %1017 = vmatprep.mubr.f32.mxu0 0.0
        %v1018 = vand.u32 %v376, 4294901760
        %v1019 = vsub.f32 %v376, %v1018
        %1020 = vmatmul.mubr.f32.gmra.mrb[0].mxu0 %v1019
        %v1021 = vpop.f32.mrb[0].mxu0
        %v1022 = vadd.f32 %v825, %v1021
        %v1023 = vpop.f32.mrb[0].mxu0
        %1024 = vmatprep.mubr.f32.mxu0 0.0
        %v1025 = vand.u32 %v379, 4294901760
        %v1026 = vsub.f32 %v379, %v1025
        %1027 = vmatmul.mubr.f32.gmra.mrb[0].mxu0 %v1026
        %v1028 = vpop.f32.mrb[0].mxu0
        %v1029 = vadd.f32 %v831, %v1028
        %v1030 = vpop.f32.mrb[0].mxu0
        %1031 = vmatprep.mubr.f32.mxu0 0.0
        %v1032 = vand.u32 %v382, 4294901760
        %v1033 = vsub.f32 %v382, %v1032
        %1034 = vmatmul.mubr.f32.gmra.mrb[0].mxu0 %v1033
        %v1035 = vpop.f32.mrb[0].mxu0
        %v1036 = vadd.f32 %v837, %v1035
        %v1037 = vpop.f32.mrb[0].mxu0
        %1038 = vmatprep.mubr.f32.mxu0 0.0
        %v1039 = vand.u32 %v385, 4294901760
        %v1040 = vsub.f32 %v385, %v1039
        %1041 = vmatmul.mubr.f32.gmra.mrb[0].mxu0 %v1040
        %v1042 = vpop.f32.mrb[0].mxu0
        %v1043 = vadd.f32 %v843, %v1042
        %v1044 = vpop.f32.mrb[0].mxu0
        %1045 = vmatprep.mubr.f32.mxu0 0.0
        %v1046 = vand.u32 %v388, 4294901760
        %v1047 = vsub.f32 %v388, %v1046
        %1048 = vmatmul.mubr.f32.gmra.mrb[0].mxu0 %v1047
        %v1049 = vpop.f32.mrb[0].mxu0
        %v1050 = vadd.f32 %v849, %v1049
        %v1051 = vpop.f32.mrb[0].mxu0
        %1052 = vmatprep.mubr.f32.mxu0 0.0
        %v1053 = vand.u32 %v391, 4294901760
        %v1054 = vsub.f32 %v391, %v1053
        %1055 = vmatmul.mubr.f32.gmra.mrb[0].mxu0 %v1054
        %v1056 = vpop.f32.mrb[0].mxu0
        %v1057 = vadd.f32 %v855, %v1056
        %v1058 = vpop.f32.mrb[0].mxu0
        %1059 = vmatprep.mubr.f32.mxu0 0.0
        %v1060 = vand.u32 %v394, 4294901760
        %v1061 = vsub.f32 %v394, %v1060
        %1062 = vmatmul.mubr.f32.gmra.mrb[0].mxu0 %v1061
        %v1063 = vpop.f32.mrb[0].mxu0
        %v1064 = vadd.f32 %v861, %v1063
        %v1065 = vpop.f32.mrb[0].mxu0
        %1066 = vdwg.mxu0
        %1067 = vmatprep.subr.mxu0 0.0
        %v1068 = vand.u32 %v327, 4294901760
        %1069 = vmatpush1.msra.mxu0 %v1068
        %1070 = vmatprep.subr.mxu0 0.0
        %v1071 = vand.u32 %v328, 4294901760
        %1072 = vmatpush1.msra.mxu0 %v1071
        %1073 = vmatprep.subr.mxu0 0.0
        %v1074 = vand.u32 %v329, 4294901760
        %1075 = vmatpush1.msra.mxu0 %v1074
        %1076 = vmatprep.subr.mxu0 0.0
        %v1077 = vand.u32 %v330, 4294901760
        %1078 = vmatpush1.msra.mxu0 %v1077
        %1079 = vmatprep.subr.mxu0 0.0
        %v1080 = vand.u32 %v331, 4294901760
        %1081 = vmatpush1.msra.mxu0 %v1080
        %1082 = vmatprep.subr.mxu0 0.0
        %v1083 = vand.u32 %v332, 4294901760
        %1084 = vmatpush1.msra.mxu0 %v1083
        %1085 = vmatprep.subr.mxu0 0.0
        %v1086 = vand.u32 %v333, 4294901760
        %1087 = vmatpush1.msra.mxu0 %v1086
        %1088 = vmatprep.subr.mxu0 0.0
        %v1089 = vand.u32 %v334, 4294901760
        %1090 = vmatpush1.msra.mxu0 %v1089
        %1091 = vmatprep.subr.mxu0 0.0
        %v1092 = vand.u32 %v335, 4294901760
        %1093 = vmatpush1.msra.mxu0 %v1092
        %1094 = vmatprep.subr.mxu0 0.0
        %v1095 = vand.u32 %v336, 4294901760
        %1096 = vmatpush1.msra.mxu0 %v1095
        %1097 = vmatprep.subr.mxu0 0.0
        %v1098 = vand.u32 %v337, 4294901760
        %1099 = vmatpush1.msra.mxu0 %v1098
        %1100 = vmatprep.subr.mxu0 0.0
        %v1101 = vand.u32 %v338, 4294901760
        %1102 = vmatpush1.msra.mxu0 %v1101
        %1103 = vmatprep.subr.mxu0 0.0
        %v1104 = vand.u32 %v398, 4294901760
        %1105 = vmatpush1.msra.mxu0 %v1104
        %1106 = vmatprep.subr.mxu0 0.0
        %1107 = vmatpush1.msra.mxu0 0.0
        %1108 = vmatprep.subr.mxu0 0.0
        %1109 = vmatpush1.msra.mxu0 0.0
        %1110 = vmatprep.subr.mxu0 0.0
        %1111 = vmatpush1.msra.mxu0 0.0
        %1112 = vmatprep.subr.mxu0 0.0
        %1113 = vmatpush1.msra.mxu0 0.0
        %1114 = vmatprep.subr.mxu0 0.0
        %1115 = vmatpush1.msra.mxu0 0.0
        %1116 = vmatprep.subr.mxu0 0.0
        %1117 = vmatpush1.msra.mxu0 0.0
        %1118 = vmatprep.subr.mxu0 0.0
        %1119 = vmatpush1.msra.mxu0 0.0
        %1120 = vmatprep.subr.mxu0 0.0
        %1121 = vmatpush1.msra.mxu0 0.0
        %1122 = vmatprep.subr.mxu0 0.0
        %1123 = vmatpush1.msra.mxu0 0.0
        %1124 = vmatprep.subr.mxu0 0.0
        %1125 = vmatpush1.msra.mxu0 0.0
        %1126 = vmatprep.subr.mxu0 0.0
        %1127 = vmatpush1.msra.mxu0 0.0
        %1128 = vmatprep.subr.mxu0 0.0
        %1129 = vmatpush1.msra.mxu0 0.0
        %1130 = vmatprep.subr.mxu0 0.0
        %1131 = vmatpush1.msra.mxu0 0.0
        %1132 = vmatprep.subr.mxu0 0.0
        %1133 = vmatpush1.msra.mxu0 0.0
        %1134 = vmatprep.subr.mxu0 0.0
        %1135 = vmatpush1.msra.mxu0 0.0
        %1136 = vmatprep.subr.mxu0 0.0
        %1137 = vmatpush1.msra.mxu0 0.0
        %1138 = vmatprep.subr.mxu0 0.0
        %1139 = vmatpush1.msra.mxu0 0.0
        %1140 = vmatprep.subr.mxu0 0.0
        %1141 = vmatpush1.msra.mxu0 0.0
        %1142 = vmatprep.subr.mxu0 0.0
        %1143 = vmatpush1.msra.mxu0 0.0
        %1144 = vmatprep.mubr.f32.mxu0 0.0
        %v1145 = vand.u32 %v349, 4294901760
        %v1146 = vsub.f32 %v349, %v1145
        %v1147 = vand.u32 %v1146, 4294901760
        %1148 = vmatmul.mubr.f32.gmra.mrb[0].mxu0 %v1147
        %v1149 = vpop.f32.mrb[0].mxu0
        %v1150 = vadd.f32 %v959, %v1149
        %v1151 = vpop.f32.mrb[0].mxu0
        %1152 = vmatprep.mubr.f32.mxu0 0.0
        %v1153 = vand.u32 %v352, 4294901760
        %v1154 = vsub.f32 %v352, %v1153
        %v1155 = vand.u32 %v1154, 4294901760
        %1156 = vmatmul.mubr.f32.gmra.mrb[0].mxu0 %v1155
        %v1157 = vpop.f32.mrb[0].mxu0
        %v1158 = vadd.f32 %v966, %v1157
        %v1159 = vpop.f32.mrb[0].mxu0
        %1160 = vmatprep.mubr.f32.mxu0 0.0
        %v1161 = vand.u32 %v355, 4294901760
        %v1162 = vsub.f32 %v355, %v1161
        %v1163 = vand.u32 %v1162, 4294901760
        %1164 = vmatmul.mubr.f32.gmra.mrb[0].mxu0 %v1163
        %v1165 = vpop.f32.mrb[0].mxu0
        %v1166 = vadd.f32 %v973, %v1165
        %v1167 = vpop.f32.mrb[0].mxu0
        %1168 = vmatprep.mubr.f32.mxu0 0.0
        %v1169 = vand.u32 %v358, 4294901760
        %v1170 = vsub.f32 %v358, %v1169
        %v1171 = vand.u32 %v1170, 4294901760
        %1172 = vmatmul.mubr.f32.gmra.mrb[0].mxu0 %v1171
        %v1173 = vpop.f32.mrb[0].mxu0
        %v1174 = vadd.f32 %v980, %v1173
        %v1175 = vpop.f32.mrb[0].mxu0
        %1176 = vmatprep.mubr.f32.mxu0 0.0
        %v1177 = vand.u32 %v361, 4294901760
        %v1178 = vsub.f32 %v361, %v1177
        %v1179 = vand.u32 %v1178, 4294901760
        %1180 = vmatmul.mubr.f32.gmra.mrb[0].mxu0 %v1179
        %v1181 = vpop.f32.mrb[0].mxu0
        %v1182 = vadd.f32 %v987, %v1181
        %v1183 = vpop.f32.mrb[0].mxu0
        %1184 = vmatprep.mubr.f32.mxu0 0.0
        %v1185 = vand.u32 %v364, 4294901760
        %v1186 = vsub.f32 %v364, %v1185
        %v1187 = vand.u32 %v1186, 4294901760
        %1188 = vmatmul.mubr.f32.gmra.mrb[0].mxu0 %v1187
        %v1189 = vpop.f32.mrb[0].mxu0
        %v1190 = vadd.f32 %v994, %v1189
        %v1191 = vpop.f32.mrb[0].mxu0
        %1192 = vmatprep.mubr.f32.mxu0 0.0
        %v1193 = vand.u32 %v367, 4294901760
        %v1194 = vsub.f32 %v367, %v1193
        %v1195 = vand.u32 %v1194, 4294901760
        %1196 = vmatmul.mubr.f32.gmra.mrb[0].mxu0 %v1195
        %v1197 = vpop.f32.mrb[0].mxu0
        %v1198 = vadd.f32 %v1001, %v1197
        %v1199 = vpop.f32.mrb[0].mxu0
        %1200 = vmatprep.mubr.f32.mxu0 0.0
        %v1201 = vand.u32 %v370, 4294901760
        %v1202 = vsub.f32 %v370, %v1201
        %v1203 = vand.u32 %v1202, 4294901760
        %1204 = vmatmul.mubr.f32.gmra.mrb[0].mxu0 %v1203
        %v1205 = vpop.f32.mrb[0].mxu0
        %v1206 = vadd.f32 %v1008, %v1205
        %v1207 = vpop.f32.mrb[0].mxu0
        %1208 = vmatprep.mubr.f32.mxu0 0.0
        %v1209 = vand.u32 %v373, 4294901760
        %v1210 = vsub.f32 %v373, %v1209
        %v1211 = vand.u32 %v1210, 4294901760
        %1212 = vmatmul.mubr.f32.gmra.mrb[0].mxu0 %v1211
        %v1213 = vpop.f32.mrb[0].mxu0
        %v1214 = vadd.f32 %v1015, %v1213
        %v1215 = vpop.f32.mrb[0].mxu0
        %1216 = vmatprep.mubr.f32.mxu0 0.0
        %v1217 = vand.u32 %v376, 4294901760
        %v1218 = vsub.f32 %v376, %v1217
        %v1219 = vand.u32 %v1218, 4294901760
        %1220 = vmatmul.mubr.f32.gmra.mrb[0].mxu0 %v1219
        %v1221 = vpop.f32.mrb[0].mxu0
        %v1222 = vadd.f32 %v1022, %v1221
        %v1223 = vpop.f32.mrb[0].mxu0
        %1224 = vmatprep.mubr.f32.mxu0 0.0
        %v1225 = vand.u32 %v379, 4294901760
        %v1226 = vsub.f32 %v379, %v1225
        %v1227 = vand.u32 %v1226, 4294901760
        %1228 = vmatmul.mubr.f32.gmra.mrb[0].mxu0 %v1227
        %v1229 = vpop.f32.mrb[0].mxu0
        %v1230 = vadd.f32 %v1029, %v1229
        %v1231 = vpop.f32.mrb[0].mxu0
        %1232 = vmatprep.mubr.f32.mxu0 0.0
        %v1233 = vand.u32 %v382, 4294901760
        %v1234 = vsub.f32 %v382, %v1233
        %v1235 = vand.u32 %v1234, 4294901760
        %1236 = vmatmul.mubr.f32.gmra.mrb[0].mxu0 %v1235
        %v1237 = vpop.f32.mrb[0].mxu0
        %v1238 = vadd.f32 %v1036, %v1237
        %v1239 = vpop.f32.mrb[0].mxu0
        %1240 = vmatprep.mubr.f32.mxu0 0.0
        %v1241 = vand.u32 %v385, 4294901760
        %v1242 = vsub.f32 %v385, %v1241
        %v1243 = vand.u32 %v1242, 4294901760
        %1244 = vmatmul.mubr.f32.gmra.mrb[0].mxu0 %v1243
        %v1245 = vpop.f32.mrb[0].mxu0
        %v1246 = vadd.f32 %v1043, %v1245
        %v1247 = vpop.f32.mrb[0].mxu0
        %1248 = vmatprep.mubr.f32.mxu0 0.0
        %v1249 = vand.u32 %v388, 4294901760
        %v1250 = vsub.f32 %v388, %v1249
        %v1251 = vand.u32 %v1250, 4294901760
        %1252 = vmatmul.mubr.f32.gmra.mrb[0].mxu0 %v1251
        %v1253 = vpop.f32.mrb[0].mxu0
        %v1254 = vadd.f32 %v1050, %v1253
        %v1255 = vpop.f32.mrb[0].mxu0
        %1256 = vmatprep.mubr.f32.mxu0 0.0
        %v1257 = vand.u32 %v391, 4294901760
        %v1258 = vsub.f32 %v391, %v1257
        %v1259 = vand.u32 %v1258, 4294901760
        %1260 = vmatmul.mubr.f32.gmra.mrb[0].mxu0 %v1259
        %v1261 = vpop.f32.mrb[0].mxu0
        %v1262 = vadd.f32 %v1057, %v1261
        %v1263 = vpop.f32.mrb[0].mxu0
        %1264 = vmatprep.mubr.f32.mxu0 0.0
        %v1265 = vand.u32 %v394, 4294901760
        %v1266 = vsub.f32 %v394, %v1265
        %v1267 = vand.u32 %v1266, 4294901760
        %1268 = vmatmul.mubr.f32.gmra.mrb[0].mxu0 %v1267
        %v1269 = vpop.f32.mrb[0].mxu0
        %v1270 = vadd.f32 %v1064, %v1269
        %v1271 = vpop.f32.mrb[0].mxu0
        %1272 = vdwg.mxu0
        %1273 = vmatprep.subr.mxu0 0.0
        %v1274 = vand.u32 %v327, 4294901760
        %v1275 = vsub.f32 %v327, %v1274
        %v1276 = vand.u32 %v1275, 4294901760
        %1277 = vmatpush1.msra.mxu0 %v1276
        %1278 = vmatprep.subr.mxu0 0.0
        %v1279 = vand.u32 %v328, 4294901760
        %v1280 = vsub.f32 %v328, %v1279
        %v1281 = vand.u32 %v1280, 4294901760
        %1282 = vmatpush1.msra.mxu0 %v1281
        %1283 = vmatprep.subr.mxu0 0.0
        %v1284 = vand.u32 %v329, 4294901760
        %v1285 = vsub.f32 %v329, %v1284
        %v1286 = vand.u32 %v1285, 4294901760
        %1287 = vmatpush1.msra.mxu0 %v1286
        %1288 = vmatprep.subr.mxu0 0.0
        %v1289 = vand.u32 %v330, 4294901760
        %v1290 = vsub.f32 %v330, %v1289
        %v1291 = vand.u32 %v1290, 4294901760
        %1292 = vmatpush1.msra.mxu0 %v1291
        %1293 = vmatprep.subr.mxu0 0.0
        %v1294 = vand.u32 %v331, 4294901760
        %v1295 = vsub.f32 %v331, %v1294
        %v1296 = vand.u32 %v1295, 4294901760
        %1297 = vmatpush1.msra.mxu0 %v1296
        %1298 = vmatprep.subr.mxu0 0.0
        %v1299 = vand.u32 %v332, 4294901760
        %v1300 = vsub.f32 %v332, %v1299
        %v1301 = vand.u32 %v1300, 4294901760
        %1302 = vmatpush1.msra.mxu0 %v1301
        %1303 = vmatprep.subr.mxu0 0.0
        %v1304 = vand.u32 %v333, 4294901760
        %v1305 = vsub.f32 %v333, %v1304
        %v1306 = vand.u32 %v1305, 4294901760
        %1307 = vmatpush1.msra.mxu0 %v1306
        %1308 = vmatprep.subr.mxu0 0.0
        %v1309 = vand.u32 %v334, 4294901760
        %v1310 = vsub.f32 %v334, %v1309
        %v1311 = vand.u32 %v1310, 4294901760
        %1312 = vmatpush1.msra.mxu0 %v1311
        %1313 = vmatprep.subr.mxu0 0.0
        %v1314 = vand.u32 %v335, 4294901760
        %v1315 = vsub.f32 %v335, %v1314
        %v1316 = vand.u32 %v1315, 4294901760
        %1317 = vmatpush1.msra.mxu0 %v1316
        %1318 = vmatprep.subr.mxu0 0.0
        %v1319 = vand.u32 %v336, 4294901760
        %v1320 = vsub.f32 %v336, %v1319
        %v1321 = vand.u32 %v1320, 4294901760
        %1322 = vmatpush1.msra.mxu0 %v1321
        %1323 = vmatprep.subr.mxu0 0.0
        %v1324 = vand.u32 %v337, 4294901760
        %v1325 = vsub.f32 %v337, %v1324
        %v1326 = vand.u32 %v1325, 4294901760
        %1327 = vmatpush1.msra.mxu0 %v1326
        %1328 = vmatprep.subr.mxu0 0.0
        %v1329 = vand.u32 %v338, 4294901760
        %v1330 = vsub.f32 %v338, %v1329
        %v1331 = vand.u32 %v1330, 4294901760
        %1332 = vmatpush1.msra.mxu0 %v1331
        %1333 = vmatprep.subr.mxu0 0.0
        %v1334 = vand.u32 %v398, 4294901760
        %v1335 = vsub.f32 %v398, %v1334
        %v1336 = vand.u32 %v1335, 4294901760
        %1337 = vmatpush1.msra.mxu0 %v1336
        %1338 = vmatprep.subr.mxu0 0.0
        %1339 = vmatpush1.msra.mxu0 0.0
        %1340 = vmatprep.subr.mxu0 0.0
        %1341 = vmatpush1.msra.mxu0 0.0
        %1342 = vmatprep.subr.mxu0 0.0
        %1343 = vmatpush1.msra.mxu0 0.0
        %1344 = vmatprep.subr.mxu0 0.0
        %1345 = vmatpush1.msra.mxu0 0.0
        %1346 = vmatprep.subr.mxu0 0.0
        %1347 = vmatpush1.msra.mxu0 0.0
        %1348 = vmatprep.subr.mxu0 0.0
        %1349 = vmatpush1.msra.mxu0 0.0
        %1350 = vmatprep.subr.mxu0 0.0
        %1351 = vmatpush1.msra.mxu0 0.0
        %1352 = vmatprep.subr.mxu0 0.0
        %1353 = vmatpush1.msra.mxu0 0.0
        %1354 = vmatprep.subr.mxu0 0.0
        %1355 = vmatpush1.msra.mxu0 0.0
        %1356 = vmatprep.subr.mxu0 0.0
        %1357 = vmatpush1.msra.mxu0 0.0
        %1358 = vmatprep.subr.mxu0 0.0
        %1359 = vmatpush1.msra.mxu0 0.0
        %1360 = vmatprep.subr.mxu0 0.0
        %1361 = vmatpush1.msra.mxu0 0.0
        %1362 = vmatprep.subr.mxu0 0.0
        %1363 = vmatpush1.msra.mxu0 0.0
        %1364 = vmatprep.subr.mxu0 0.0
        %1365 = vmatpush1.msra.mxu0 0.0
        %1366 = vmatprep.subr.mxu0 0.0
        %1367 = vmatpush1.msra.mxu0 0.0
        %1368 = vmatprep.subr.mxu0 0.0
        %1369 = vmatpush1.msra.mxu0 0.0
        %1370 = vmatprep.subr.mxu0 0.0
        %1371 = vmatpush1.msra.mxu0 0.0
        %1372 = vmatprep.subr.mxu0 0.0
        %1373 = vmatpush1.msra.mxu0 0.0
        %1374 = vmatprep.subr.mxu0 0.0
        %1375 = vmatpush1.msra.mxu0 0.0
        %1376 = vmatprep.mubr.f32.mxu0 0.0
        %v1377 = vand.u32 %v349, 4294901760
        %1378 = vmatmul.mubr.f32.gmra.mrb[0].mxu0 %v1377
        %v1379 = vpop.f32.mrb[0].mxu0
        %v1380 = vadd.f32 %v1150, %v1379
        %v1381 = vpop.f32.mrb[0].mxu0
        %1382 = vmatprep.mubr.f32.mxu0 0.0
        %v1383 = vand.u32 %v352, 4294901760
        %1384 = vmatmul.mubr.f32.gmra.mrb[0].mxu0 %v1383
        %v1385 = vpop.f32.mrb[0].mxu0
        %v1386 = vadd.f32 %v1158, %v1385
        %v1387 = vpop.f32.mrb[0].mxu0
        %1388 = vmatprep.mubr.f32.mxu0 0.0
        %v1389 = vand.u32 %v355, 4294901760
        %1390 = vmatmul.mubr.f32.gmra.mrb[0].mxu0 %v1389
        %v1391 = vpop.f32.mrb[0].mxu0
        %v1392 = vadd.f32 %v1166, %v1391
        %v1393 = vpop.f32.mrb[0].mxu0
        %1394 = vmatprep.mubr.f32.mxu0 0.0
        %v1395 = vand.u32 %v358, 4294901760
        %1396 = vmatmul.mubr.f32.gmra.mrb[0].mxu0 %v1395
        %v1397 = vpop.f32.mrb[0].mxu0
        %v1398 = vadd.f32 %v1174, %v1397
        %v1399 = vpop.f32.mrb[0].mxu0
        %1400 = vmatprep.mubr.f32.mxu0 0.0
        %v1401 = vand.u32 %v361, 4294901760
        %1402 = vmatmul.mubr.f32.gmra.mrb[0].mxu0 %v1401
        %v1403 = vpop.f32.mrb[0].mxu0
        %v1404 = vadd.f32 %v1182, %v1403
        %v1405 = vpop.f32.mrb[0].mxu0
        %1406 = vmatprep.mubr.f32.mxu0 0.0
        %v1407 = vand.u32 %v364, 4294901760
        %1408 = vmatmul.mubr.f32.gmra.mrb[0].mxu0 %v1407
        %v1409 = vpop.f32.mrb[0].mxu0
        %v1410 = vadd.f32 %v1190, %v1409
        %v1411 = vpop.f32.mrb[0].mxu0
        %1412 = vmatprep.mubr.f32.mxu0 0.0
        %v1413 = vand.u32 %v367, 4294901760
        %1414 = vmatmul.mubr.f32.gmra.mrb[0].mxu0 %v1413
        %v1415 = vpop.f32.mrb[0].mxu0
        %v1416 = vadd.f32 %v1198, %v1415
        %v1417 = vpop.f32.mrb[0].mxu0
        %1418 = vmatprep.mubr.f32.mxu0 0.0
        %v1419 = vand.u32 %v370, 4294901760
        %1420 = vmatmul.mubr.f32.gmra.mrb[0].mxu0 %v1419
        %v1421 = vpop.f32.mrb[0].mxu0
        %v1422 = vadd.f32 %v1206, %v1421
        %v1423 = vpop.f32.mrb[0].mxu0
        %1424 = vmatprep.mubr.f32.mxu0 0.0
        %v1425 = vand.u32 %v373, 4294901760
        %1426 = vmatmul.mubr.f32.gmra.mrb[0].mxu0 %v1425
        %v1427 = vpop.f32.mrb[0].mxu0
        %v1428 = vadd.f32 %v1214, %v1427
        %v1429 = vpop.f32.mrb[0].mxu0
        %1430 = vmatprep.mubr.f32.mxu0 0.0
        %v1431 = vand.u32 %v376, 4294901760
        %1432 = vmatmul.mubr.f32.gmra.mrb[0].mxu0 %v1431
        %v1433 = vpop.f32.mrb[0].mxu0
        %v1434 = vadd.f32 %v1222, %v1433
        %v1435 = vpop.f32.mrb[0].mxu0
        %1436 = vmatprep.mubr.f32.mxu0 0.0
        %v1437 = vand.u32 %v379, 4294901760
        %1438 = vmatmul.mubr.f32.gmra.mrb[0].mxu0 %v1437
        %v1439 = vpop.f32.mrb[0].mxu0
        %v1440 = vadd.f32 %v1230, %v1439
        %v1441 = vpop.f32.mrb[0].mxu0
        %1442 = vmatprep.mubr.f32.mxu0 0.0
        %v1443 = vand.u32 %v382, 4294901760
        %1444 = vmatmul.mubr.f32.gmra.mrb[0].mxu0 %v1443
        %v1445 = vpop.f32.mrb[0].mxu0
        %v1446 = vadd.f32 %v1238, %v1445
        %v1447 = vpop.f32.mrb[0].mxu0
        %1448 = vmatprep.mubr.f32.mxu0 0.0
        %v1449 = vand.u32 %v385, 4294901760
        %1450 = vmatmul.mubr.f32.gmra.mrb[0].mxu0 %v1449
        %v1451 = vpop.f32.mrb[0].mxu0
        %v1452 = vadd.f32 %v1246, %v1451
        %v1453 = vpop.f32.mrb[0].mxu0
        %1454 = vmatprep.mubr.f32.mxu0 0.0
        %v1455 = vand.u32 %v388, 4294901760
        %1456 = vmatmul.mubr.f32.gmra.mrb[0].mxu0 %v1455
        %v1457 = vpop.f32.mrb[0].mxu0
        %v1458 = vadd.f32 %v1254, %v1457
        %v1459 = vpop.f32.mrb[0].mxu0
        %1460 = vmatprep.mubr.f32.mxu0 0.0
        %v1461 = vand.u32 %v391, 4294901760
        %1462 = vmatmul.mubr.f32.gmra.mrb[0].mxu0 %v1461
        %v1463 = vpop.f32.mrb[0].mxu0
        %v1464 = vadd.f32 %v1262, %v1463
        %v1465 = vpop.f32.mrb[0].mxu0
        %1466 = vmatprep.mubr.f32.mxu0 0.0
        %v1467 = vand.u32 %v394, 4294901760
        %1468 = vmatmul.mubr.f32.gmra.mrb[0].mxu0 %v1467
        %v1469 = vpop.f32.mrb[0].mxu0
        %v1470 = vadd.f32 %v1270, %v1469
        %v1471 = vpop.f32.mrb[0].mxu0
        %1472 = vdwg.mxu0
        %1473 = vmatprep.subr.mxu0 0.0
        %v1474 = vand.u32 %v327, 4294901760
        %1475 = vmatpush1.msra.mxu0 %v1474
        %1476 = vmatprep.subr.mxu0 0.0
        %v1477 = vand.u32 %v328, 4294901760
        %1478 = vmatpush1.msra.mxu0 %v1477
        %1479 = vmatprep.subr.mxu0 0.0
        %v1480 = vand.u32 %v329, 4294901760
        %1481 = vmatpush1.msra.mxu0 %v1480
        %1482 = vmatprep.subr.mxu0 0.0
        %v1483 = vand.u32 %v330, 4294901760
        %1484 = vmatpush1.msra.mxu0 %v1483
        %1485 = vmatprep.subr.mxu0 0.0
        %v1486 = vand.u32 %v331, 4294901760
        %1487 = vmatpush1.msra.mxu0 %v1486
        %1488 = vmatprep.subr.mxu0 0.0
        %v1489 = vand.u32 %v332, 4294901760
        %1490 = vmatpush1.msra.mxu0 %v1489
        %1491 = vmatprep.subr.mxu0 0.0
        %v1492 = vand.u32 %v333, 4294901760
        %1493 = vmatpush1.msra.mxu0 %v1492
        %1494 = vmatprep.subr.mxu0 0.0
        %v1495 = vand.u32 %v334, 4294901760
        %1496 = vmatpush1.msra.mxu0 %v1495
        %1497 = vmatprep.subr.mxu0 0.0
        %v1498 = vand.u32 %v335, 4294901760
        %1499 = vmatpush1.msra.mxu0 %v1498
        %1500 = vmatprep.subr.mxu0 0.0
        %v1501 = vand.u32 %v336, 4294901760
        %1502 = vmatpush1.msra.mxu0 %v1501
        %1503 = vmatprep.subr.mxu0 0.0
        %v1504 = vand.u32 %v337, 4294901760
        %1505 = vmatpush1.msra.mxu0 %v1504
        %1506 = vmatprep.subr.mxu0 0.0
        %v1507 = vand.u32 %v338, 4294901760
        %1508 = vmatpush1.msra.mxu0 %v1507
        %1509 = vmatprep.subr.mxu0 0.0
        %v1510 = vand.u32 %v398, 4294901760
        %1511 = vmatpush1.msra.mxu0 %v1510
        %1512 = vmatprep.subr.mxu0 0.0
        %1513 = vmatpush1.msra.mxu0 0.0
        %1514 = vmatprep.subr.mxu0 0.0
        %1515 = vmatpush1.msra.mxu0 0.0
        %1516 = vmatprep.subr.mxu0 0.0
        %1517 = vmatpush1.msra.mxu0 0.0
        %1518 = vmatprep.subr.mxu0 0.0
        %1519 = vmatpush1.msra.mxu0 0.0
        %1520 = vmatprep.subr.mxu0 0.0
        %1521 = vmatpush1.msra.mxu0 0.0
        %1522 = vmatprep.subr.mxu0 0.0
        %1523 = vmatpush1.msra.mxu0 0.0
        %1524 = vmatprep.subr.mxu0 0.0
        %1525 = vmatpush1.msra.mxu0 0.0
        %1526 = vmatprep.subr.mxu0 0.0
        %1527 = vmatpush1.msra.mxu0 0.0
        %1528 = vmatprep.subr.mxu0 0.0
        %1529 = vmatpush1.msra.mxu0 0.0
        %1530 = vmatprep.subr.mxu0 0.0
        %1531 = vmatpush1.msra.mxu0 0.0
        %1532 = vmatprep.subr.mxu0 0.0
        %1533 = vmatpush1.msra.mxu0 0.0
        %1534 = vmatprep.subr.mxu0 0.0
        %1535 = vmatpush1.msra.mxu0 0.0
        %1536 = vmatprep.subr.mxu0 0.0
        %1537 = vmatpush1.msra.mxu0 0.0
        %1538 = vmatprep.subr.mxu0 0.0
        %1539 = vmatpush1.msra.mxu0 0.0
        %1540 = vmatprep.subr.mxu0 0.0
        %1541 = vmatpush1.msra.mxu0 0.0
        %1542 = vmatprep.subr.mxu0 0.0
        %1543 = vmatpush1.msra.mxu0 0.0
        %1544 = vmatprep.subr.mxu0 0.0
        %1545 = vmatpush1.msra.mxu0 0.0
        %1546 = vmatprep.subr.mxu0 0.0
        %1547 = vmatpush1.msra.mxu0 0.0
        %1548 = vmatprep.subr.mxu0 0.0
        %1549 = vmatpush1.msra.mxu0 0.0
        %1550 = vmatprep.mubr.f32.mxu0 0.0
        %v1551 = vand.u32 %v349, 4294901760
        %1552 = vmatmul.mubr.f32.gmra.mrb[0].mxu0 %v1551
        %v1553 = vpop.f32.mrb[0].mxu0
        %v1554 = vadd.f32 %v1380, %v1553
        %v1555 = vpop.f32.mrb[0].mxu0
        %1556 = vmatprep.mubr.f32.mxu0 0.0
        %v1557 = vand.u32 %v352, 4294901760
        %1558 = vmatmul.mubr.f32.gmra.mrb[0].mxu0 %v1557
        %v1559 = vpop.f32.mrb[0].mxu0
        %v1560 = vadd.f32 %v1386, %v1559
        %v1561 = vpop.f32.mrb[0].mxu0
        %1562 = vmatprep.mubr.f32.mxu0 0.0
        %v1563 = vand.u32 %v355, 4294901760
        %1564 = vmatmul.mubr.f32.gmra.mrb[0].mxu0 %v1563
        %v1565 = vpop.f32.mrb[0].mxu0
        %v1566 = vadd.f32 %v1392, %v1565
        %v1567 = vpop.f32.mrb[0].mxu0
        %1568 = vmatprep.mubr.f32.mxu0 0.0
        %v1569 = vand.u32 %v358, 4294901760
        %1570 = vmatmul.mubr.f32.gmra.mrb[0].mxu0 %v1569
        %v1571 = vpop.f32.mrb[0].mxu0
        %v1572 = vadd.f32 %v1398, %v1571
        %v1573 = vpop.f32.mrb[0].mxu0
        %1574 = vmatprep.mubr.f32.mxu0 0.0
        %v1575 = vand.u32 %v361, 4294901760
        %1576 = vmatmul.mubr.f32.gmra.mrb[0].mxu0 %v1575
        %v1577 = vpop.f32.mrb[0].mxu0
        %v1578 = vadd.f32 %v1404, %v1577
        %v1579 = vpop.f32.mrb[0].mxu0
        %1580 = vmatprep.mubr.f32.mxu0 0.0
        %v1581 = vand.u32 %v364, 4294901760
        %1582 = vmatmul.mubr.f32.gmra.mrb[0].mxu0 %v1581
        %v1583 = vpop.f32.mrb[0].mxu0
        %v1584 = vadd.f32 %v1410, %v1583
        %v1585 = vpop.f32.mrb[0].mxu0
        %1586 = vmatprep.mubr.f32.mxu0 0.0
        %v1587 = vand.u32 %v367, 4294901760
        %1588 = vmatmul.mubr.f32.gmra.mrb[0].mxu0 %v1587
        %v1589 = vpop.f32.mrb[0].mxu0
        %v1590 = vadd.f32 %v1416, %v1589
        %v1591 = vpop.f32.mrb[0].mxu0
        %1592 = vmatprep.mubr.f32.mxu0 0.0
        %v1593 = vand.u32 %v370, 4294901760
        %1594 = vmatmul.mubr.f32.gmra.mrb[0].mxu0 %v1593
        %v1595 = vpop.f32.mrb[0].mxu0
        %v1596 = vadd.f32 %v1422, %v1595
        %v1597 = vpop.f32.mrb[0].mxu0
        %1598 = vmatprep.mubr.f32.mxu0 0.0
        %v1599 = vand.u32 %v373, 4294901760
        %1600 = vmatmul.mubr.f32.gmra.mrb[0].mxu0 %v1599
        %v1601 = vpop.f32.mrb[0].mxu0
        %v1602 = vadd.f32 %v1428, %v1601
        %v1603 = vpop.f32.mrb[0].mxu0
        %1604 = vmatprep.mubr.f32.mxu0 0.0
        %v1605 = vand.u32 %v376, 4294901760
        %1606 = vmatmul.mubr.f32.gmra.mrb[0].mxu0 %v1605
        %v1607 = vpop.f32.mrb[0].mxu0
        %v1608 = vadd.f32 %v1434, %v1607
        %v1609 = vpop.f32.mrb[0].mxu0
        %1610 = vmatprep.mubr.f32.mxu0 0.0
        %v1611 = vand.u32 %v379, 4294901760
        %1612 = vmatmul.mubr.f32.gmra.mrb[0].mxu0 %v1611
        %v1613 = vpop.f32.mrb[0].mxu0
        %v1614 = vadd.f32 %v1440, %v1613
        %v1615 = vpop.f32.mrb[0].mxu0
        %1616 = vmatprep.mubr.f32.mxu0 0.0
        %v1617 = vand.u32 %v382, 4294901760
        %1618 = vmatmul.mubr.f32.gmra.mrb[0].mxu0 %v1617
        %v1619 = vpop.f32.mrb[0].mxu0
        %v1620 = vadd.f32 %v1446, %v1619
        %v1621 = vpop.f32.mrb[0].mxu0
        %1622 = vmatprep.mubr.f32.mxu0 0.0
        %v1623 = vand.u32 %v385, 4294901760
        %1624 = vmatmul.mubr.f32.gmra.mrb[0].mxu0 %v1623
        %v1625 = vpop.f32.mrb[0].mxu0
        %v1626 = vadd.f32 %v1452, %v1625
        %v1627 = vpop.f32.mrb[0].mxu0
        %1628 = vmatprep.mubr.f32.mxu0 0.0
        %v1629 = vand.u32 %v388, 4294901760
        %1630 = vmatmul.mubr.f32.gmra.mrb[0].mxu0 %v1629
        %v1631 = vpop.f32.mrb[0].mxu0
        %v1632 = vadd.f32 %v1458, %v1631
        %v1633 = vpop.f32.mrb[0].mxu0
        %1634 = vmatprep.mubr.f32.mxu0 0.0
        %v1635 = vand.u32 %v391, 4294901760
        %1636 = vmatmul.mubr.f32.gmra.mrb[0].mxu0 %v1635
        %v1637 = vpop.f32.mrb[0].mxu0
        %v1638 = vadd.f32 %v1464, %v1637
        %v1639 = vpop.f32.mrb[0].mxu0
        %1640 = vmatprep.mubr.f32.mxu0 0.0
        %v1641 = vand.u32 %v394, 4294901760
        %1642 = vmatmul.mubr.f32.gmra.mrb[0].mxu0 %v1641
        %v1643 = vpop.f32.mrb[0].mxu0
        %v1644 = vadd.f32 %v1470, %v1643
        %v1645 = vpop.f32.mrb[0].mxu0
        %1646 = vdwg.mxu0
        %v1647 = vmax.f32 %v1554, 0.0
        %v1648 = vmax.f32 %v1560, 0.0
        %v1649 = vmax.f32 %v1566, 0.0
        %v1650 = vmax.f32 %v1572, 0.0
        %v1651 = vmax.f32 %v1578, 0.0
        %v1652 = vmax.f32 %v1584, 0.0
        %v1653 = vmax.f32 %v1590, 0.0
        %v1654 = vmax.f32 %v1596, 0.0
        %v1655 = vmax.f32 %v1602, 0.0
        %v1656 = vmax.f32 %v1608, 0.0
        %v1657 = vmax.f32 %v1614, 0.0
        %v1658 = vmax.f32 %v1620, 0.0
        %v1659 = vmax.f32 %v1626, 0.0
        %v1660 = vmax.f32 %v1632, 0.0
        %v1661 = vmax.f32 %v1638, 0.0
        %v1662 = vmax.f32 %v1644, 0.0
        %v1663 = vld [vmem:[%s3] sm:$0xff]
        %v1664 = vld [vmem:[%s3 + $0x8] sm:$0xff]
        %v1665 = vld [vmem:[%s3 + $0x10] sm:$0xf]
        %v1666 = vld [vmem:[%s4] sm:$0x1]
        %v1668 = vlaneseq
        %v1669 = vshrl.u32 %v1668, 7
        %v1670 = vsub.s32 0, %v1669
        %v1671 = vrot.slane %v1666, %v1670
        %vm1673 = vcmask 162816
        %v1675 = vsel %vm1673, %v1647, 0
        %v1678 = vsel %vm1673, %v1648, 0
        %v1681 = vsel %vm1673, %v1649, 0
        %v1684 = vsel %vm1673, %v1650, 0
        %v1687 = vsel %vm1673, %v1651, 0
        %v1690 = vsel %vm1673, %v1652, 0
        %v1693 = vsel %vm1673, %v1653, 0
        %v1696 = vsel %vm1673, %v1654, 0
        %v1699 = vsel %vm1673, %v1655, 0
        %v1702 = vsel %vm1673, %v1656, 0
        %v1705 = vsel %vm1673, %v1657, 0
        %v1708 = vsel %vm1673, %v1658, 0
        %v1711 = vsel %vm1673, %v1659, 0
        %v1714 = vsel %vm1673, %v1660, 0
        %v1717 = vsel %vm1673, %v1661, 0
        %v1720 = vsel %vm1673, %v1662, 0
        %v1723 = vsel %vm396, %v1665, 0
        %1725 = vmatprep.subr.mxu0 0.0
        %v1726 = vand.u32 %v1663, 4294901760
        %1727 = vmatpush1.msra.mxu0 %v1726
        %1728 = vmatprep.subr.mxu0 0.0
        %v1729 = vand.u32 %v1664, 4294901760
        %1730 = vmatpush1.msra.mxu0 %v1729
        %1731 = vmatprep.subr.mxu0 0.0
        %v1732 = vand.u32 %v1723, 4294901760
        %1733 = vmatpush1.msra.mxu0 %v1732
        %1734 = vmatprep.subr.mxu0 0.0
        %1735 = vmatpush1.msra.mxu0 0.0
        %1736 = vmatprep.subr.mxu0 0.0
        %1737 = vmatpush1.msra.mxu0 0.0
        %1738 = vmatprep.subr.mxu0 0.0
        %1739 = vmatpush1.msra.mxu0 0.0
        %1740 = vmatprep.subr.mxu0 0.0
        %1741 = vmatpush1.msra.mxu0 0.0
        %1742 = vmatprep.subr.mxu0 0.0
        %1743 = vmatpush1.msra.mxu0 0.0
        %1744 = vmatprep.subr.mxu0 0.0
        %1745 = vmatpush1.msra.mxu0 0.0
        %1746 = vmatprep.subr.mxu0 0.0
        %1747 = vmatpush1.msra.mxu0 0.0
        %1748 = vmatprep.subr.mxu0 0.0
        %1749 = vmatpush1.msra.mxu0 0.0
        %1750 = vmatprep.subr.mxu0 0.0
        %1751 = vmatpush1.msra.mxu0 0.0
        %1752 = vmatprep.subr.mxu0 0.0
        %1753 = vmatpush1.msra.mxu0 0.0
        %1754 = vmatprep.subr.mxu0 0.0
        %1755 = vmatpush1.msra.mxu0 0.0
        %1756 = vmatprep.subr.mxu0 0.0
        %1757 = vmatpush1.msra.mxu0 0.0
        %1758 = vmatprep.subr.mxu0 0.0
        %1759 = vmatpush1.msra.mxu0 0.0
        %1760 = vmatprep.subr.mxu0 0.0
        %1761 = vmatpush1.msra.mxu0 0.0
        %1762 = vmatprep.subr.mxu0 0.0
        %1763 = vmatpush1.msra.mxu0 0.0
        %1764 = vmatprep.subr.mxu0 0.0
        %1765 = vmatpush1.msra.mxu0 0.0
        %1766 = vmatprep.subr.mxu0 0.0
        %1767 = vmatpush1.msra.mxu0 0.0
        %1768 = vmatprep.subr.mxu0 0.0
        %1769 = vmatpush1.msra.mxu0 0.0
        %1770 = vmatprep.subr.mxu0 0.0
        %1771 = vmatpush1.msra.mxu0 0.0
        %1772 = vmatprep.subr.mxu0 0.0
        %1773 = vmatpush1.msra.mxu0 0.0
        %1774 = vmatprep.subr.mxu0 0.0
        %1775 = vmatpush1.msra.mxu0 0.0
        %1776 = vmatprep.subr.mxu0 0.0
        %1777 = vmatpush1.msra.mxu0 0.0
        %1778 = vmatprep.subr.mxu0 0.0
        %1779 = vmatpush1.msra.mxu0 0.0
        %1780 = vmatprep.subr.mxu0 0.0
        %1781 = vmatpush1.msra.mxu0 0.0
        %1782 = vmatprep.subr.mxu0 0.0
        %1783 = vmatpush1.msra.mxu0 0.0
        %1784 = vmatprep.subr.mxu0 0.0
        %1785 = vmatpush1.msra.mxu0 0.0
        %1786 = vmatprep.subr.mxu0 0.0
        %1787 = vmatpush1.msra.mxu0 0.0
        %1788 = vmatprep.subr.mxu0 0.0
        %1789 = vmatpush1.msra.mxu0 0.0
        %1790 = vmatprep.subr.mxu0 0.0
        %1791 = vmatpush1.msra.mxu0 0.0
        %1792 = vmatprep.mubr.f32.mxu0 0.0
        %v1793 = vand.u32 %v1675, 4294901760
        %v1794 = vsub.f32 %v1675, %v1793
        %v1795 = vand.u32 %v1794, 4294901760
        %v1796 = vsub.f32 %v1794, %v1795
        %v1797 = vand.u32 %v1796, 4294901760
        %1798 = vmatmul.mubr.f32.gmra.mrb[0].mxu0 %v1797
        %v1799 = vpop.f32.mrb[0].mxu0
        %v1800 = vadd.f32 %v1671, %v1799
        %v1801 = vpop.f32.mrb[0].mxu0
        %1802 = vmatprep.mubr.f32.mxu0 0.0
        %v1803 = vand.u32 %v1678, 4294901760
        %v1804 = vsub.f32 %v1678, %v1803
        %v1805 = vand.u32 %v1804, 4294901760
        %v1806 = vsub.f32 %v1804, %v1805
        %v1807 = vand.u32 %v1806, 4294901760
        %1808 = vmatmul.mubr.f32.gmra.mrb[0].mxu0 %v1807
        %v1809 = vpop.f32.mrb[0].mxu0
        %v1810 = vadd.f32 %v1671, %v1809
        %v1811 = vpop.f32.mrb[0].mxu0
        %1812 = vmatprep.mubr.f32.mxu0 0.0
        %v1813 = vand.u32 %v1681, 4294901760
        %v1814 = vsub.f32 %v1681, %v1813
        %v1815 = vand.u32 %v1814, 4294901760
        %v1816 = vsub.f32 %v1814, %v1815
        %v1817 = vand.u32 %v1816, 4294901760
        %1818 = vmatmul.mubr.f32.gmra.mrb[0].mxu0 %v1817
        %v1819 = vpop.f32.mrb[0].mxu0
        %v1820 = vadd.f32 %v1671, %v1819
        %v1821 = vpop.f32.mrb[0].mxu0
        %1822 = vmatprep.mubr.f32.mxu0 0.0
        %v1823 = vand.u32 %v1684, 4294901760
        %v1824 = vsub.f32 %v1684, %v1823
        %v1825 = vand.u32 %v1824, 4294901760
        %v1826 = vsub.f32 %v1824, %v1825
        %v1827 = vand.u32 %v1826, 4294901760
        %1828 = vmatmul.mubr.f32.gmra.mrb[0].mxu0 %v1827
        %v1829 = vpop.f32.mrb[0].mxu0
        %v1830 = vadd.f32 %v1671, %v1829
        %v1831 = vpop.f32.mrb[0].mxu0
        %1832 = vmatprep.mubr.f32.mxu0 0.0
        %v1833 = vand.u32 %v1687, 4294901760
        %v1834 = vsub.f32 %v1687, %v1833
        %v1835 = vand.u32 %v1834, 4294901760
        %v1836 = vsub.f32 %v1834, %v1835
        %v1837 = vand.u32 %v1836, 4294901760
        %1838 = vmatmul.mubr.f32.gmra.mrb[0].mxu0 %v1837
        %v1839 = vpop.f32.mrb[0].mxu0
        %v1840 = vadd.f32 %v1671, %v1839
        %v1841 = vpop.f32.mrb[0].mxu0
        %1842 = vmatprep.mubr.f32.mxu0 0.0
        %v1843 = vand.u32 %v1690, 4294901760
        %v1844 = vsub.f32 %v1690, %v1843
        %v1845 = vand.u32 %v1844, 4294901760
        %v1846 = vsub.f32 %v1844, %v1845
        %v1847 = vand.u32 %v1846, 4294901760
        %1848 = vmatmul.mubr.f32.gmra.mrb[0].mxu0 %v1847
        %v1849 = vpop.f32.mrb[0].mxu0
        %v1850 = vadd.f32 %v1671, %v1849
        %v1851 = vpop.f32.mrb[0].mxu0
        %1852 = vmatprep.mubr.f32.mxu0 0.0
        %v1853 = vand.u32 %v1693, 4294901760
        %v1854 = vsub.f32 %v1693, %v1853
        %v1855 = vand.u32 %v1854, 4294901760
        %v1856 = vsub.f32 %v1854, %v1855
        %v1857 = vand.u32 %v1856, 4294901760
        %1858 = vmatmul.mubr.f32.gmra.mrb[0].mxu0 %v1857
        %v1859 = vpop.f32.mrb[0].mxu0
        %v1860 = vadd.f32 %v1671, %v1859
        %v1861 = vpop.f32.mrb[0].mxu0
        %1862 = vmatprep.mubr.f32.mxu0 0.0
        %v1863 = vand.u32 %v1696, 4294901760
        %v1864 = vsub.f32 %v1696, %v1863
        %v1865 = vand.u32 %v1864, 4294901760
        %v1866 = vsub.f32 %v1864, %v1865
        %v1867 = vand.u32 %v1866, 4294901760
        %1868 = vmatmul.mubr.f32.gmra.mrb[0].mxu0 %v1867
        %v1869 = vpop.f32.mrb[0].mxu0
        %v1870 = vadd.f32 %v1671, %v1869
        %v1871 = vpop.f32.mrb[0].mxu0
        %1872 = vmatprep.mubr.f32.mxu0 0.0
        %v1873 = vand.u32 %v1699, 4294901760
        %v1874 = vsub.f32 %v1699, %v1873
        %v1875 = vand.u32 %v1874, 4294901760
        %v1876 = vsub.f32 %v1874, %v1875
        %v1877 = vand.u32 %v1876, 4294901760
        %1878 = vmatmul.mubr.f32.gmra.mrb[0].mxu0 %v1877
        %v1879 = vpop.f32.mrb[0].mxu0
        %v1880 = vadd.f32 %v1671, %v1879
        %v1881 = vpop.f32.mrb[0].mxu0
        %1882 = vmatprep.mubr.f32.mxu0 0.0
        %v1883 = vand.u32 %v1702, 4294901760
        %v1884 = vsub.f32 %v1702, %v1883
        %v1885 = vand.u32 %v1884, 4294901760
        %v1886 = vsub.f32 %v1884, %v1885
        %v1887 = vand.u32 %v1886, 4294901760
        %1888 = vmatmul.mubr.f32.gmra.mrb[0].mxu0 %v1887
        %v1889 = vpop.f32.mrb[0].mxu0
        %v1890 = vadd.f32 %v1671, %v1889
        %v1891 = vpop.f32.mrb[0].mxu0
        %1892 = vmatprep.mubr.f32.mxu0 0.0
        %v1893 = vand.u32 %v1705, 4294901760
        %v1894 = vsub.f32 %v1705, %v1893
        %v1895 = vand.u32 %v1894, 4294901760
        %v1896 = vsub.f32 %v1894, %v1895
        %v1897 = vand.u32 %v1896, 4294901760
        %1898 = vmatmul.mubr.f32.gmra.mrb[0].mxu0 %v1897
        %v1899 = vpop.f32.mrb[0].mxu0
        %v1900 = vadd.f32 %v1671, %v1899
        %v1901 = vpop.f32.mrb[0].mxu0
        %1902 = vmatprep.mubr.f32.mxu0 0.0
        %v1903 = vand.u32 %v1708, 4294901760
        %v1904 = vsub.f32 %v1708, %v1903
        %v1905 = vand.u32 %v1904, 4294901760
        %v1906 = vsub.f32 %v1904, %v1905
        %v1907 = vand.u32 %v1906, 4294901760
        %1908 = vmatmul.mubr.f32.gmra.mrb[0].mxu0 %v1907
        %v1909 = vpop.f32.mrb[0].mxu0
        %v1910 = vadd.f32 %v1671, %v1909
        %v1911 = vpop.f32.mrb[0].mxu0
        %1912 = vmatprep.mubr.f32.mxu0 0.0
        %v1913 = vand.u32 %v1711, 4294901760
        %v1914 = vsub.f32 %v1711, %v1913
        %v1915 = vand.u32 %v1914, 4294901760
        %v1916 = vsub.f32 %v1914, %v1915
        %v1917 = vand.u32 %v1916, 4294901760
        %1918 = vmatmul.mubr.f32.gmra.mrb[0].mxu0 %v1917
        %v1919 = vpop.f32.mrb[0].mxu0
        %v1920 = vadd.f32 %v1671, %v1919
        %v1921 = vpop.f32.mrb[0].mxu0
        %1922 = vmatprep.mubr.f32.mxu0 0.0
        %v1923 = vand.u32 %v1714, 4294901760
        %v1924 = vsub.f32 %v1714, %v1923
        %v1925 = vand.u32 %v1924, 4294901760
        %v1926 = vsub.f32 %v1924, %v1925
        %v1927 = vand.u32 %v1926, 4294901760
        %1928 = vmatmul.mubr.f32.gmra.mrb[0].mxu0 %v1927
        %v1929 = vpop.f32.mrb[0].mxu0
        %v1930 = vadd.f32 %v1671, %v1929
        %v1931 = vpop.f32.mrb[0].mxu0
        %1932 = vmatprep.mubr.f32.mxu0 0.0
        %v1933 = vand.u32 %v1717, 4294901760
        %v1934 = vsub.f32 %v1717, %v1933
        %v1935 = vand.u32 %v1934, 4294901760
        %v1936 = vsub.f32 %v1934, %v1935
        %v1937 = vand.u32 %v1936, 4294901760
        %1938 = vmatmul.mubr.f32.gmra.mrb[0].mxu0 %v1937
        %v1939 = vpop.f32.mrb[0].mxu0
        %v1940 = vadd.f32 %v1671, %v1939
        %v1941 = vpop.f32.mrb[0].mxu0
        %1942 = vmatprep.mubr.f32.mxu0 0.0
        %v1943 = vand.u32 %v1720, 4294901760
        %v1944 = vsub.f32 %v1720, %v1943
        %v1945 = vand.u32 %v1944, 4294901760
        %v1946 = vsub.f32 %v1944, %v1945
        %v1947 = vand.u32 %v1946, 4294901760
        %1948 = vmatmul.mubr.f32.gmra.mrb[0].mxu0 %v1947
        %v1949 = vpop.f32.mrb[0].mxu0
        %v1950 = vadd.f32 %v1671, %v1949
        %v1951 = vpop.f32.mrb[0].mxu0
        %1952 = vdwg.mxu0
        %1953 = vmatprep.subr.mxu0 0.0
        %v1954 = vand.u32 %v1663, 4294901760
        %v1955 = vsub.f32 %v1663, %v1954
        %v1956 = vand.u32 %v1955, 4294901760
        %v1957 = vsub.f32 %v1955, %v1956
        %v1958 = vand.u32 %v1957, 4294901760
        %1959 = vmatpush1.msra.mxu0 %v1958
        %1960 = vmatprep.subr.mxu0 0.0
        %v1961 = vand.u32 %v1664, 4294901760
        %v1962 = vsub.f32 %v1664, %v1961
        %v1963 = vand.u32 %v1962, 4294901760
        %v1964 = vsub.f32 %v1962, %v1963
        %v1965 = vand.u32 %v1964, 4294901760
        %1966 = vmatpush1.msra.mxu0 %v1965
        %1967 = vmatprep.subr.mxu0 0.0
        %v1968 = vand.u32 %v1723, 4294901760
        %v1969 = vsub.f32 %v1723, %v1968
        %v1970 = vand.u32 %v1969, 4294901760
        %v1971 = vsub.f32 %v1969, %v1970
        %v1972 = vand.u32 %v1971, 4294901760
        %1973 = vmatpush1.msra.mxu0 %v1972
        %1974 = vmatprep.subr.mxu0 0.0
        %1975 = vmatpush1.msra.mxu0 0.0
        %1976 = vmatprep.subr.mxu0 0.0
        %1977 = vmatpush1.msra.mxu0 0.0
        %1978 = vmatprep.subr.mxu0 0.0
        %1979 = vmatpush1.msra.mxu0 0.0
        %1980 = vmatprep.subr.mxu0 0.0
        %1981 = vmatpush1.msra.mxu0 0.0
        %1982 = vmatprep.subr.mxu0 0.0
        %1983 = vmatpush1.msra.mxu0 0.0
        %1984 = vmatprep.subr.mxu0 0.0
        %1985 = vmatpush1.msra.mxu0 0.0
        %1986 = vmatprep.subr.mxu0 0.0
        %1987 = vmatpush1.msra.mxu0 0.0
        %1988 = vmatprep.subr.mxu0 0.0
        %1989 = vmatpush1.msra.mxu0 0.0
        %1990 = vmatprep.subr.mxu0 0.0
        %1991 = vmatpush1.msra.mxu0 0.0
        %1992 = vmatprep.subr.mxu0 0.0
        %1993 = vmatpush1.msra.mxu0 0.0
        %1994 = vmatprep.subr.mxu0 0.0
        %1995 = vmatpush1.msra.mxu0 0.0
        %1996 = vmatprep.subr.mxu0 0.0
        %1997 = vmatpush1.msra.mxu0 0.0
        %1998 = vmatprep.subr.mxu0 0.0
        %1999 = vmatpush1.msra.mxu0 0.0
        %2000 = vmatprep.subr.mxu0 0.0
        %2001 = vmatpush1.msra.mxu0 0.0
        %2002 = vmatprep.subr.mxu0 0.0
        %2003 = vmatpush1.msra.mxu0 0.0
        %2004 = vmatprep.subr.mxu0 0.0
        %2005 = vmatpush1.msra.mxu0 0.0
        %2006 = vmatprep.subr.mxu0 0.0
        %2007 = vmatpush1.msra.mxu0 0.0
        %2008 = vmatprep.subr.mxu0 0.0
        %2009 = vmatpush1.msra.mxu0 0.0
        %2010 = vmatprep.subr.mxu0 0.0
        %2011 = vmatpush1.msra.mxu0 0.0
        %2012 = vmatprep.subr.mxu0 0.0
        %2013 = vmatpush1.msra.mxu0 0.0
        %2014 = vmatprep.subr.mxu0 0.0
        %2015 = vmatpush1.msra.mxu0 0.0
        %2016 = vmatprep.subr.mxu0 0.0
        %2017 = vmatpush1.msra.mxu0 0.0
        %2018 = vmatprep.subr.mxu0 0.0
        %2019 = vmatpush1.msra.mxu0 0.0
        %2020 = vmatprep.subr.mxu0 0.0
        %2021 = vmatpush1.msra.mxu0 0.0
        %2022 = vmatprep.subr.mxu0 0.0
        %2023 = vmatpush1.msra.mxu0 0.0
        %2024 = vmatprep.subr.mxu0 0.0
        %2025 = vmatpush1.msra.mxu0 0.0
        %2026 = vmatprep.subr.mxu0 0.0
        %2027 = vmatpush1.msra.mxu0 0.0
        %2028 = vmatprep.subr.mxu0 0.0
        %2029 = vmatpush1.msra.mxu0 0.0
        %2030 = vmatprep.subr.mxu0 0.0
        %2031 = vmatpush1.msra.mxu0 0.0
        %2032 = vmatprep.mubr.f32.mxu0 0.0
        %v2033 = vand.u32 %v1675, 4294901760
        %2034 = vmatmul.mubr.f32.gmra.mrb[0].mxu0 %v2033
        %v2035 = vpop.f32.mrb[0].mxu0
        %v2036 = vadd.f32 %v1800, %v2035
        %v2037 = vpop.f32.mrb[0].mxu0
        %2038 = vmatprep.mubr.f32.mxu0 0.0
        %v2039 = vand.u32 %v1678, 4294901760
        %2040 = vmatmul.mubr.f32.gmra.mrb[0].mxu0 %v2039
        %v2041 = vpop.f32.mrb[0].mxu0
        %v2042 = vadd.f32 %v1810, %v2041
        %v2043 = vpop.f32.mrb[0].mxu0
        %2044 = vmatprep.mubr.f32.mxu0 0.0
        %v2045 = vand.u32 %v1681, 4294901760
        %2046 = vmatmul.mubr.f32.gmra.mrb[0].mxu0 %v2045
        %v2047 = vpop.f32.mrb[0].mxu0
        %v2048 = vadd.f32 %v1820, %v2047
        %v2049 = vpop.f32.mrb[0].mxu0
        %2050 = vmatprep.mubr.f32.mxu0 0.0
        %v2051 = vand.u32 %v1684, 4294901760
        %2052 = vmatmul.mubr.f32.gmra.mrb[0].mxu0 %v2051
        %v2053 = vpop.f32.mrb[0].mxu0
        %v2054 = vadd.f32 %v1830, %v2053
        %v2055 = vpop.f32.mrb[0].mxu0
        %2056 = vmatprep.mubr.f32.mxu0 0.0
        %v2057 = vand.u32 %v1687, 4294901760
        %2058 = vmatmul.mubr.f32.gmra.mrb[0].mxu0 %v2057
        %v2059 = vpop.f32.mrb[0].mxu0
        %v2060 = vadd.f32 %v1840, %v2059
        %v2061 = vpop.f32.mrb[0].mxu0
        %2062 = vmatprep.mubr.f32.mxu0 0.0
        %v2063 = vand.u32 %v1690, 4294901760
        %2064 = vmatmul.mubr.f32.gmra.mrb[0].mxu0 %v2063
        %v2065 = vpop.f32.mrb[0].mxu0
        %v2066 = vadd.f32 %v1850, %v2065
        %v2067 = vpop.f32.mrb[0].mxu0
        %2068 = vmatprep.mubr.f32.mxu0 0.0
        %v2069 = vand.u32 %v1693, 4294901760
        %2070 = vmatmul.mubr.f32.gmra.mrb[0].mxu0 %v2069
        %v2071 = vpop.f32.mrb[0].mxu0
        %v2072 = vadd.f32 %v1860, %v2071
        %v2073 = vpop.f32.mrb[0].mxu0
        %2074 = vmatprep.mubr.f32.mxu0 0.0
        %v2075 = vand.u32 %v1696, 4294901760
        %2076 = vmatmul.mubr.f32.gmra.mrb[0].mxu0 %v2075
        %v2077 = vpop.f32.mrb[0].mxu0
        %v2078 = vadd.f32 %v1870, %v2077
        %v2079 = vpop.f32.mrb[0].mxu0
        %2080 = vmatprep.mubr.f32.mxu0 0.0
        %v2081 = vand.u32 %v1699, 4294901760
        %2082 = vmatmul.mubr.f32.gmra.mrb[0].mxu0 %v2081
        %v2083 = vpop.f32.mrb[0].mxu0
        %v2084 = vadd.f32 %v1880, %v2083
        %v2085 = vpop.f32.mrb[0].mxu0
        %2086 = vmatprep.mubr.f32.mxu0 0.0
        %v2087 = vand.u32 %v1702, 4294901760
        %2088 = vmatmul.mubr.f32.gmra.mrb[0].mxu0 %v2087
        %v2089 = vpop.f32.mrb[0].mxu0
        %v2090 = vadd.f32 %v1890, %v2089
        %v2091 = vpop.f32.mrb[0].mxu0
        %2092 = vmatprep.mubr.f32.mxu0 0.0
        %v2093 = vand.u32 %v1705, 4294901760
        %2094 = vmatmul.mubr.f32.gmra.mrb[0].mxu0 %v2093
        %v2095 = vpop.f32.mrb[0].mxu0
        %v2096 = vadd.f32 %v1900, %v2095
        %v2097 = vpop.f32.mrb[0].mxu0
        %2098 = vmatprep.mubr.f32.mxu0 0.0
        %v2099 = vand.u32 %v1708, 4294901760
        %2100 = vmatmul.mubr.f32.gmra.mrb[0].mxu0 %v2099
        %v2101 = vpop.f32.mrb[0].mxu0
        %v2102 = vadd.f32 %v1910, %v2101
        %v2103 = vpop.f32.mrb[0].mxu0
        %2104 = vmatprep.mubr.f32.mxu0 0.0
        %v2105 = vand.u32 %v1711, 4294901760
        %2106 = vmatmul.mubr.f32.gmra.mrb[0].mxu0 %v2105
        %v2107 = vpop.f32.mrb[0].mxu0
        %v2108 = vadd.f32 %v1920, %v2107
        %v2109 = vpop.f32.mrb[0].mxu0
        %2110 = vmatprep.mubr.f32.mxu0 0.0
        %v2111 = vand.u32 %v1714, 4294901760
        %2112 = vmatmul.mubr.f32.gmra.mrb[0].mxu0 %v2111
        %v2113 = vpop.f32.mrb[0].mxu0
        %v2114 = vadd.f32 %v1930, %v2113
        %v2115 = vpop.f32.mrb[0].mxu0
        %2116 = vmatprep.mubr.f32.mxu0 0.0
        %v2117 = vand.u32 %v1717, 4294901760
        %2118 = vmatmul.mubr.f32.gmra.mrb[0].mxu0 %v2117
        %v2119 = vpop.f32.mrb[0].mxu0
        %v2120 = vadd.f32 %v1940, %v2119
        %v2121 = vpop.f32.mrb[0].mxu0
        %2122 = vmatprep.mubr.f32.mxu0 0.0
        %v2123 = vand.u32 %v1720, 4294901760
        %2124 = vmatmul.mubr.f32.gmra.mrb[0].mxu0 %v2123
        %v2125 = vpop.f32.mrb[0].mxu0
        %v2126 = vadd.f32 %v1950, %v2125
        %v2127 = vpop.f32.mrb[0].mxu0
        %2128 = vdwg.mxu0
        %2129 = vmatprep.subr.mxu0 0.0
        %v2130 = vand.u32 %v1663, 4294901760
        %v2131 = vsub.f32 %v1663, %v2130
        %2132 = vmatpush1.msra.mxu0 %v2131
        %2133 = vmatprep.subr.mxu0 0.0
        %v2134 = vand.u32 %v1664, 4294901760
        %v2135 = vsub.f32 %v1664, %v2134
        %2136 = vmatpush1.msra.mxu0 %v2135
        %2137 = vmatprep.subr.mxu0 0.0
        %v2138 = vand.u32 %v1723, 4294901760
        %v2139 = vsub.f32 %v1723, %v2138
        %2140 = vmatpush1.msra.mxu0 %v2139
        %2141 = vmatprep.subr.mxu0 0.0
        %2142 = vmatpush1.msra.mxu0 0.0
        %2143 = vmatprep.subr.mxu0 0.0
        %2144 = vmatpush1.msra.mxu0 0.0
        %2145 = vmatprep.subr.mxu0 0.0
        %2146 = vmatpush1.msra.mxu0 0.0
        %2147 = vmatprep.subr.mxu0 0.0
        %2148 = vmatpush1.msra.mxu0 0.0
        %2149 = vmatprep.subr.mxu0 0.0
        %2150 = vmatpush1.msra.mxu0 0.0
        %2151 = vmatprep.subr.mxu0 0.0
        %2152 = vmatpush1.msra.mxu0 0.0
        %2153 = vmatprep.subr.mxu0 0.0
        %2154 = vmatpush1.msra.mxu0 0.0
        %2155 = vmatprep.subr.mxu0 0.0
        %2156 = vmatpush1.msra.mxu0 0.0
        %2157 = vmatprep.subr.mxu0 0.0
        %2158 = vmatpush1.msra.mxu0 0.0
        %2159 = vmatprep.subr.mxu0 0.0
        %2160 = vmatpush1.msra.mxu0 0.0
        %2161 = vmatprep.subr.mxu0 0.0
        %2162 = vmatpush1.msra.mxu0 0.0
        %2163 = vmatprep.subr.mxu0 0.0
        %2164 = vmatpush1.msra.mxu0 0.0
        %2165 = vmatprep.subr.mxu0 0.0
        %2166 = vmatpush1.msra.mxu0 0.0
        %2167 = vmatprep.subr.mxu0 0.0
        %2168 = vmatpush1.msra.mxu0 0.0
        %2169 = vmatprep.subr.mxu0 0.0
        %2170 = vmatpush1.msra.mxu0 0.0
        %2171 = vmatprep.subr.mxu0 0.0
        %2172 = vmatpush1.msra.mxu0 0.0
        %2173 = vmatprep.subr.mxu0 0.0
        %2174 = vmatpush1.msra.mxu0 0.0
        %2175 = vmatprep.subr.mxu0 0.0
        %2176 = vmatpush1.msra.mxu0 0.0
        %2177 = vmatprep.subr.mxu0 0.0
        %2178 = vmatpush1.msra.mxu0 0.0
        %2179 = vmatprep.subr.mxu0 0.0
        %2180 = vmatpush1.msra.mxu0 0.0
        %2181 = vmatprep.subr.mxu0 0.0
        %2182 = vmatpush1.msra.mxu0 0.0
        %2183 = vmatprep.subr.mxu0 0.0
        %2184 = vmatpush1.msra.mxu0 0.0
        %2185 = vmatprep.subr.mxu0 0.0
        %2186 = vmatpush1.msra.mxu0 0.0
        %2187 = vmatprep.subr.mxu0 0.0
        %2188 = vmatpush1.msra.mxu0 0.0
        %2189 = vmatprep.subr.mxu0 0.0
        %2190 = vmatpush1.msra.mxu0 0.0
        %2191 = vmatprep.subr.mxu0 0.0
        %2192 = vmatpush1.msra.mxu0 0.0
        %2193 = vmatprep.subr.mxu0 0.0
        %2194 = vmatpush1.msra.mxu0 0.0
        %2195 = vmatprep.subr.mxu0 0.0
        %2196 = vmatpush1.msra.mxu0 0.0
        %2197 = vmatprep.subr.mxu0 0.0
        %2198 = vmatpush1.msra.mxu0 0.0
        %2199 = vmatprep.mubr.f32.mxu0 0.0
        %v2200 = vand.u32 %v1675, 4294901760
        %v2201 = vsub.f32 %v1675, %v2200
        %2202 = vmatmul.mubr.f32.gmra.mrb[0].mxu0 %v2201
        %v2203 = vpop.f32.mrb[0].mxu0
        %v2204 = vadd.f32 %v2036, %v2203
        %v2205 = vpop.f32.mrb[0].mxu0
        %2206 = vmatprep.mubr.f32.mxu0 0.0
        %v2207 = vand.u32 %v1678, 4294901760
        %v2208 = vsub.f32 %v1678, %v2207
        %2209 = vmatmul.mubr.f32.gmra.mrb[0].mxu0 %v2208
        %v2210 = vpop.f32.mrb[0].mxu0
        %v2211 = vadd.f32 %v2042, %v2210
        %v2212 = vpop.f32.mrb[0].mxu0
        %2213 = vmatprep.mubr.f32.mxu0 0.0
        %v2214 = vand.u32 %v1681, 4294901760
        %v2215 = vsub.f32 %v1681, %v2214
        %2216 = vmatmul.mubr.f32.gmra.mrb[0].mxu0 %v2215
        %v2217 = vpop.f32.mrb[0].mxu0
        %v2218 = vadd.f32 %v2048, %v2217
        %v2219 = vpop.f32.mrb[0].mxu0
        %2220 = vmatprep.mubr.f32.mxu0 0.0
        %v2221 = vand.u32 %v1684, 4294901760
        %v2222 = vsub.f32 %v1684, %v2221
        %2223 = vmatmul.mubr.f32.gmra.mrb[0].mxu0 %v2222
        %v2224 = vpop.f32.mrb[0].mxu0
        %v2225 = vadd.f32 %v2054, %v2224
        %v2226 = vpop.f32.mrb[0].mxu0
        %2227 = vmatprep.mubr.f32.mxu0 0.0
        %v2228 = vand.u32 %v1687, 4294901760
        %v2229 = vsub.f32 %v1687, %v2228
        %2230 = vmatmul.mubr.f32.gmra.mrb[0].mxu0 %v2229
        %v2231 = vpop.f32.mrb[0].mxu0
        %v2232 = vadd.f32 %v2060, %v2231
        %v2233 = vpop.f32.mrb[0].mxu0
        %2234 = vmatprep.mubr.f32.mxu0 0.0
        %v2235 = vand.u32 %v1690, 4294901760
        %v2236 = vsub.f32 %v1690, %v2235
        %2237 = vmatmul.mubr.f32.gmra.mrb[0].mxu0 %v2236
        %v2238 = vpop.f32.mrb[0].mxu0
        %v2239 = vadd.f32 %v2066, %v2238
        %v2240 = vpop.f32.mrb[0].mxu0
        %2241 = vmatprep.mubr.f32.mxu0 0.0
        %v2242 = vand.u32 %v1693, 4294901760
        %v2243 = vsub.f32 %v1693, %v2242
        %2244 = vmatmul.mubr.f32.gmra.mrb[0].mxu0 %v2243
        %v2245 = vpop.f32.mrb[0].mxu0
        %v2246 = vadd.f32 %v2072, %v2245
        %v2247 = vpop.f32.mrb[0].mxu0
        %2248 = vmatprep.mubr.f32.mxu0 0.0
        %v2249 = vand.u32 %v1696, 4294901760
        %v2250 = vsub.f32 %v1696, %v2249
        %2251 = vmatmul.mubr.f32.gmra.mrb[0].mxu0 %v2250
        %v2252 = vpop.f32.mrb[0].mxu0
        %v2253 = vadd.f32 %v2078, %v2252
        %v2254 = vpop.f32.mrb[0].mxu0
        %2255 = vmatprep.mubr.f32.mxu0 0.0
        %v2256 = vand.u32 %v1699, 4294901760
        %v2257 = vsub.f32 %v1699, %v2256
        %2258 = vmatmul.mubr.f32.gmra.mrb[0].mxu0 %v2257
        %v2259 = vpop.f32.mrb[0].mxu0
        %v2260 = vadd.f32 %v2084, %v2259
        %v2261 = vpop.f32.mrb[0].mxu0
        %2262 = vmatprep.mubr.f32.mxu0 0.0
        %v2263 = vand.u32 %v1702, 4294901760
        %v2264 = vsub.f32 %v1702, %v2263
        %2265 = vmatmul.mubr.f32.gmra.mrb[0].mxu0 %v2264
        %v2266 = vpop.f32.mrb[0].mxu0
        %v2267 = vadd.f32 %v2090, %v2266
        %v2268 = vpop.f32.mrb[0].mxu0
        %2269 = vmatprep.mubr.f32.mxu0 0.0
        %v2270 = vand.u32 %v1705, 4294901760
        %v2271 = vsub.f32 %v1705, %v2270
        %2272 = vmatmul.mubr.f32.gmra.mrb[0].mxu0 %v2271
        %v2273 = vpop.f32.mrb[0].mxu0
        %v2274 = vadd.f32 %v2096, %v2273
        %v2275 = vpop.f32.mrb[0].mxu0
        %2276 = vmatprep.mubr.f32.mxu0 0.0
        %v2277 = vand.u32 %v1708, 4294901760
        %v2278 = vsub.f32 %v1708, %v2277
        %2279 = vmatmul.mubr.f32.gmra.mrb[0].mxu0 %v2278
        %v2280 = vpop.f32.mrb[0].mxu0
        %v2281 = vadd.f32 %v2102, %v2280
        %v2282 = vpop.f32.mrb[0].mxu0
        %2283 = vmatprep.mubr.f32.mxu0 0.0
        %v2284 = vand.u32 %v1711, 4294901760
        %v2285 = vsub.f32 %v1711, %v2284
        %2286 = vmatmul.mubr.f32.gmra.mrb[0].mxu0 %v2285
        %v2287 = vpop.f32.mrb[0].mxu0
        %v2288 = vadd.f32 %v2108, %v2287
        %v2289 = vpop.f32.mrb[0].mxu0
        %2290 = vmatprep.mubr.f32.mxu0 0.0
        %v2291 = vand.u32 %v1714, 4294901760
        %v2292 = vsub.f32 %v1714, %v2291
        %2293 = vmatmul.mubr.f32.gmra.mrb[0].mxu0 %v2292
        %v2294 = vpop.f32.mrb[0].mxu0
        %v2295 = vadd.f32 %v2114, %v2294
        %v2296 = vpop.f32.mrb[0].mxu0
        %2297 = vmatprep.mubr.f32.mxu0 0.0
        %v2298 = vand.u32 %v1717, 4294901760
        %v2299 = vsub.f32 %v1717, %v2298
        %2300 = vmatmul.mubr.f32.gmra.mrb[0].mxu0 %v2299
        %v2301 = vpop.f32.mrb[0].mxu0
        %v2302 = vadd.f32 %v2120, %v2301
        %v2303 = vpop.f32.mrb[0].mxu0
        %2304 = vmatprep.mubr.f32.mxu0 0.0
        %v2305 = vand.u32 %v1720, 4294901760
        %v2306 = vsub.f32 %v1720, %v2305
        %2307 = vmatmul.mubr.f32.gmra.mrb[0].mxu0 %v2306
        %v2308 = vpop.f32.mrb[0].mxu0
        %v2309 = vadd.f32 %v2126, %v2308
        %v2310 = vpop.f32.mrb[0].mxu0
        %2311 = vdwg.mxu0
        %2312 = vmatprep.subr.mxu0 0.0
        %v2313 = vand.u32 %v1663, 4294901760
        %2314 = vmatpush1.msra.mxu0 %v2313
        %2315 = vmatprep.subr.mxu0 0.0
        %v2316 = vand.u32 %v1664, 4294901760
        %2317 = vmatpush1.msra.mxu0 %v2316
        %2318 = vmatprep.subr.mxu0 0.0
        %v2319 = vand.u32 %v1723, 4294901760
        %2320 = vmatpush1.msra.mxu0 %v2319
        %2321 = vmatprep.subr.mxu0 0.0
        %2322 = vmatpush1.msra.mxu0 0.0
        %2323 = vmatprep.subr.mxu0 0.0
        %2324 = vmatpush1.msra.mxu0 0.0
        %2325 = vmatprep.subr.mxu0 0.0
        %2326 = vmatpush1.msra.mxu0 0.0
        %2327 = vmatprep.subr.mxu0 0.0
        %2328 = vmatpush1.msra.mxu0 0.0
        %2329 = vmatprep.subr.mxu0 0.0
        %2330 = vmatpush1.msra.mxu0 0.0
        %2331 = vmatprep.subr.mxu0 0.0
        %2332 = vmatpush1.msra.mxu0 0.0
        %2333 = vmatprep.subr.mxu0 0.0
        %2334 = vmatpush1.msra.mxu0 0.0
        %2335 = vmatprep.subr.mxu0 0.0
        %2336 = vmatpush1.msra.mxu0 0.0
        %2337 = vmatprep.subr.mxu0 0.0
        %2338 = vmatpush1.msra.mxu0 0.0
        %2339 = vmatprep.subr.mxu0 0.0
        %2340 = vmatpush1.msra.mxu0 0.0
        %2341 = vmatprep.subr.mxu0 0.0
        %2342 = vmatpush1.msra.mxu0 0.0
        %2343 = vmatprep.subr.mxu0 0.0
        %2344 = vmatpush1.msra.mxu0 0.0
        %2345 = vmatprep.subr.mxu0 0.0
        %2346 = vmatpush1.msra.mxu0 0.0
        %2347 = vmatprep.subr.mxu0 0.0
        %2348 = vmatpush1.msra.mxu0 0.0
        %2349 = vmatprep.subr.mxu0 0.0
        %2350 = vmatpush1.msra.mxu0 0.0
        %2351 = vmatprep.subr.mxu0 0.0
        %2352 = vmatpush1.msra.mxu0 0.0
        %2353 = vmatprep.subr.mxu0 0.0
        %2354 = vmatpush1.msra.mxu0 0.0
        %2355 = vmatprep.subr.mxu0 0.0
        %2356 = vmatpush1.msra.mxu0 0.0
        %2357 = vmatprep.subr.mxu0 0.0
        %2358 = vmatpush1.msra.mxu0 0.0
        %2359 = vmatprep.subr.mxu0 0.0
        %2360 = vmatpush1.msra.mxu0 0.0
        %2361 = vmatprep.subr.mxu0 0.0
        %2362 = vmatpush1.msra.mxu0 0.0
        %2363 = vmatprep.subr.mxu0 0.0
        %2364 = vmatpush1.msra.mxu0 0.0
        %2365 = vmatprep.subr.mxu0 0.0
        %2366 = vmatpush1.msra.mxu0 0.0
        %2367 = vmatprep.subr.mxu0 0.0
        %2368 = vmatpush1.msra.mxu0 0.0
        %2369 = vmatprep.subr.mxu0 0.0
        %2370 = vmatpush1.msra.mxu0 0.0
        %2371 = vmatprep.subr.mxu0 0.0
        %2372 = vmatpush1.msra.mxu0 0.0
        %2373 = vmatprep.subr.mxu0 0.0
        %2374 = vmatpush1.msra.mxu0 0.0
        %2375 = vmatprep.subr.mxu0 0.0
        %2376 = vmatpush1.msra.mxu0 0.0
        %2377 = vmatprep.subr.mxu0 0.0
        %2378 = vmatpush1.msra.mxu0 0.0
        %2379 = vmatprep.mubr.f32.mxu0 0.0
        %v2380 = vand.u32 %v1675, 4294901760
        %v2381 = vsub.f32 %v1675, %v2380
        %v2382 = vand.u32 %v2381, 4294901760
        %2383 = vmatmul.mubr.f32.gmra.mrb[0].mxu0 %v2382
        %v2384 = vpop.f32.mrb[0].mxu0
        %v2385 = vadd.f32 %v2204, %v2384
        %v2386 = vpop.f32.mrb[0].mxu0
        %2387 = vmatprep.mubr.f32.mxu0 0.0
        %v2388 = vand.u32 %v1678, 4294901760
        %v2389 = vsub.f32 %v1678, %v2388
        %v2390 = vand.u32 %v2389, 4294901760
        %2391 = vmatmul.mubr.f32.gmra.mrb[0].mxu0 %v2390
        %v2392 = vpop.f32.mrb[0].mxu0
        %v2393 = vadd.f32 %v2211, %v2392
        %v2394 = vpop.f32.mrb[0].mxu0
        %2395 = vmatprep.mubr.f32.mxu0 0.0
        %v2396 = vand.u32 %v1681, 4294901760
        %v2397 = vsub.f32 %v1681, %v2396
        %v2398 = vand.u32 %v2397, 4294901760
        %2399 = vmatmul.mubr.f32.gmra.mrb[0].mxu0 %v2398
        %v2400 = vpop.f32.mrb[0].mxu0
        %v2401 = vadd.f32 %v2218, %v2400
        %v2402 = vpop.f32.mrb[0].mxu0
        %2403 = vmatprep.mubr.f32.mxu0 0.0
        %v2404 = vand.u32 %v1684, 4294901760
        %v2405 = vsub.f32 %v1684, %v2404
        %v2406 = vand.u32 %v2405, 4294901760
        %2407 = vmatmul.mubr.f32.gmra.mrb[0].mxu0 %v2406
        %v2408 = vpop.f32.mrb[0].mxu0
        %v2409 = vadd.f32 %v2225, %v2408
        %v2410 = vpop.f32.mrb[0].mxu0
        %2411 = vmatprep.mubr.f32.mxu0 0.0
        %v2412 = vand.u32 %v1687, 4294901760
        %v2413 = vsub.f32 %v1687, %v2412
        %v2414 = vand.u32 %v2413, 4294901760
        %2415 = vmatmul.mubr.f32.gmra.mrb[0].mxu0 %v2414
        %v2416 = vpop.f32.mrb[0].mxu0
        %v2417 = vadd.f32 %v2232, %v2416
        %v2418 = vpop.f32.mrb[0].mxu0
        %2419 = vmatprep.mubr.f32.mxu0 0.0
        %v2420 = vand.u32 %v1690, 4294901760
        %v2421 = vsub.f32 %v1690, %v2420
        %v2422 = vand.u32 %v2421, 4294901760
        %2423 = vmatmul.mubr.f32.gmra.mrb[0].mxu0 %v2422
        %v2424 = vpop.f32.mrb[0].mxu0
        %v2425 = vadd.f32 %v2239, %v2424
        %v2426 = vpop.f32.mrb[0].mxu0
        %2427 = vmatprep.mubr.f32.mxu0 0.0
        %v2428 = vand.u32 %v1693, 4294901760
        %v2429 = vsub.f32 %v1693, %v2428
        %v2430 = vand.u32 %v2429, 4294901760
        %2431 = vmatmul.mubr.f32.gmra.mrb[0].mxu0 %v2430
        %v2432 = vpop.f32.mrb[0].mxu0
        %v2433 = vadd.f32 %v2246, %v2432
        %v2434 = vpop.f32.mrb[0].mxu0
        %2435 = vmatprep.mubr.f32.mxu0 0.0
        %v2436 = vand.u32 %v1696, 4294901760
        %v2437 = vsub.f32 %v1696, %v2436
        %v2438 = vand.u32 %v2437, 4294901760
        %2439 = vmatmul.mubr.f32.gmra.mrb[0].mxu0 %v2438
        %v2440 = vpop.f32.mrb[0].mxu0
        %v2441 = vadd.f32 %v2253, %v2440
        %v2442 = vpop.f32.mrb[0].mxu0
        %2443 = vmatprep.mubr.f32.mxu0 0.0
        %v2444 = vand.u32 %v1699, 4294901760
        %v2445 = vsub.f32 %v1699, %v2444
        %v2446 = vand.u32 %v2445, 4294901760
        %2447 = vmatmul.mubr.f32.gmra.mrb[0].mxu0 %v2446
        %v2448 = vpop.f32.mrb[0].mxu0
        %v2449 = vadd.f32 %v2260, %v2448
        %v2450 = vpop.f32.mrb[0].mxu0
        %2451 = vmatprep.mubr.f32.mxu0 0.0
        %v2452 = vand.u32 %v1702, 4294901760
        %v2453 = vsub.f32 %v1702, %v2452
        %v2454 = vand.u32 %v2453, 4294901760
        %2455 = vmatmul.mubr.f32.gmra.mrb[0].mxu0 %v2454
        %v2456 = vpop.f32.mrb[0].mxu0
        %v2457 = vadd.f32 %v2267, %v2456
        %v2458 = vpop.f32.mrb[0].mxu0
        %2459 = vmatprep.mubr.f32.mxu0 0.0
        %v2460 = vand.u32 %v1705, 4294901760
        %v2461 = vsub.f32 %v1705, %v2460
        %v2462 = vand.u32 %v2461, 4294901760
        %2463 = vmatmul.mubr.f32.gmra.mrb[0].mxu0 %v2462
        %v2464 = vpop.f32.mrb[0].mxu0
        %v2465 = vadd.f32 %v2274, %v2464
        %v2466 = vpop.f32.mrb[0].mxu0
        %2467 = vmatprep.mubr.f32.mxu0 0.0
        %v2468 = vand.u32 %v1708, 4294901760
        %v2469 = vsub.f32 %v1708, %v2468
        %v2470 = vand.u32 %v2469, 4294901760
        %2471 = vmatmul.mubr.f32.gmra.mrb[0].mxu0 %v2470
        %v2472 = vpop.f32.mrb[0].mxu0
        %v2473 = vadd.f32 %v2281, %v2472
        %v2474 = vpop.f32.mrb[0].mxu0
        %2475 = vmatprep.mubr.f32.mxu0 0.0
        %v2476 = vand.u32 %v1711, 4294901760
        %v2477 = vsub.f32 %v1711, %v2476
        %v2478 = vand.u32 %v2477, 4294901760
        %2479 = vmatmul.mubr.f32.gmra.mrb[0].mxu0 %v2478
        %v2480 = vpop.f32.mrb[0].mxu0
        %v2481 = vadd.f32 %v2288, %v2480
        %v2482 = vpop.f32.mrb[0].mxu0
        %2483 = vmatprep.mubr.f32.mxu0 0.0
        %v2484 = vand.u32 %v1714, 4294901760
        %v2485 = vsub.f32 %v1714, %v2484
        %v2486 = vand.u32 %v2485, 4294901760
        %2487 = vmatmul.mubr.f32.gmra.mrb[0].mxu0 %v2486
        %v2488 = vpop.f32.mrb[0].mxu0
        %v2489 = vadd.f32 %v2295, %v2488
        %v2490 = vpop.f32.mrb[0].mxu0
        %2491 = vmatprep.mubr.f32.mxu0 0.0
        %v2492 = vand.u32 %v1717, 4294901760
        %v2493 = vsub.f32 %v1717, %v2492
        %v2494 = vand.u32 %v2493, 4294901760
        %2495 = vmatmul.mubr.f32.gmra.mrb[0].mxu0 %v2494
        %v2496 = vpop.f32.mrb[0].mxu0
        %v2497 = vadd.f32 %v2302, %v2496
        %v2498 = vpop.f32.mrb[0].mxu0
        %2499 = vmatprep.mubr.f32.mxu0 0.0
        %v2500 = vand.u32 %v1720, 4294901760
        %v2501 = vsub.f32 %v1720, %v2500
        %v2502 = vand.u32 %v2501, 4294901760
        %2503 = vmatmul.mubr.f32.gmra.mrb[0].mxu0 %v2502
        %v2504 = vpop.f32.mrb[0].mxu0
        %v2505 = vadd.f32 %v2309, %v2504
        %v2506 = vpop.f32.mrb[0].mxu0
        %2507 = vdwg.mxu0
        %2508 = vmatprep.subr.mxu0 0.0
        %v2509 = vand.u32 %v1663, 4294901760
        %v2510 = vsub.f32 %v1663, %v2509
        %v2511 = vand.u32 %v2510, 4294901760
        %2512 = vmatpush1.msra.mxu0 %v2511
        %2513 = vmatprep.subr.mxu0 0.0
        %v2514 = vand.u32 %v1664, 4294901760
        %v2515 = vsub.f32 %v1664, %v2514
        %v2516 = vand.u32 %v2515, 4294901760
        %2517 = vmatpush1.msra.mxu0 %v2516
        %2518 = vmatprep.subr.mxu0 0.0
        %v2519 = vand.u32 %v1723, 4294901760
        %v2520 = vsub.f32 %v1723, %v2519
        %v2521 = vand.u32 %v2520, 4294901760
        %2522 = vmatpush1.msra.mxu0 %v2521
        %2523 = vmatprep.subr.mxu0 0.0
        %2524 = vmatpush1.msra.mxu0 0.0
        %2525 = vmatprep.subr.mxu0 0.0
        %2526 = vmatpush1.msra.mxu0 0.0
        %2527 = vmatprep.subr.mxu0 0.0
        %2528 = vmatpush1.msra.mxu0 0.0
        %2529 = vmatprep.subr.mxu0 0.0
        %2530 = vmatpush1.msra.mxu0 0.0
        %2531 = vmatprep.subr.mxu0 0.0
        %2532 = vmatpush1.msra.mxu0 0.0
        %2533 = vmatprep.subr.mxu0 0.0
        %2534 = vmatpush1.msra.mxu0 0.0
        %2535 = vmatprep.subr.mxu0 0.0
        %2536 = vmatpush1.msra.mxu0 0.0
        %2537 = vmatprep.subr.mxu0 0.0
        %2538 = vmatpush1.msra.mxu0 0.0
        %2539 = vmatprep.subr.mxu0 0.0
        %2540 = vmatpush1.msra.mxu0 0.0
        %2541 = vmatprep.subr.mxu0 0.0
        %2542 = vmatpush1.msra.mxu0 0.0
        %2543 = vmatprep.subr.mxu0 0.0
        %2544 = vmatpush1.msra.mxu0 0.0
        %2545 = vmatprep.subr.mxu0 0.0
        %2546 = vmatpush1.msra.mxu0 0.0
        %2547 = vmatprep.subr.mxu0 0.0
        %2548 = vmatpush1.msra.mxu0 0.0
        %2549 = vmatprep.subr.mxu0 0.0
        %2550 = vmatpush1.msra.mxu0 0.0
        %2551 = vmatprep.subr.mxu0 0.0
        %2552 = vmatpush1.msra.mxu0 0.0
        %2553 = vmatprep.subr.mxu0 0.0
        %2554 = vmatpush1.msra.mxu0 0.0
        %2555 = vmatprep.subr.mxu0 0.0
        %2556 = vmatpush1.msra.mxu0 0.0
        %2557 = vmatprep.subr.mxu0 0.0
        %2558 = vmatpush1.msra.mxu0 0.0
        %2559 = vmatprep.subr.mxu0 0.0
        %2560 = vmatpush1.msra.mxu0 0.0
        %2561 = vmatprep.subr.mxu0 0.0
        %2562 = vmatpush1.msra.mxu0 0.0
        %2563 = vmatprep.subr.mxu0 0.0
        %2564 = vmatpush1.msra.mxu0 0.0
        %2565 = vmatprep.subr.mxu0 0.0
        %2566 = vmatpush1.msra.mxu0 0.0
        %2567 = vmatprep.subr.mxu0 0.0
        %2568 = vmatpush1.msra.mxu0 0.0
        %2569 = vmatprep.subr.mxu0 0.0
        %2570 = vmatpush1.msra.mxu0 0.0
        %2571 = vmatprep.subr.mxu0 0.0
        %2572 = vmatpush1.msra.mxu0 0.0
        %2573 = vmatprep.subr.mxu0 0.0
        %2574 = vmatpush1.msra.mxu0 0.0
        %2575 = vmatprep.subr.mxu0 0.0
        %2576 = vmatpush1.msra.mxu0 0.0
        %2577 = vmatprep.subr.mxu0 0.0
        %2578 = vmatpush1.msra.mxu0 0.0
        %2579 = vmatprep.subr.mxu0 0.0
        %2580 = vmatpush1.msra.mxu0 0.0
        %2581 = vmatprep.mubr.f32.mxu0 0.0
        %v2582 = vand.u32 %v1675, 4294901760
        %2583 = vmatmul.mubr.f32.gmra.mrb[0].mxu0 %v2582
        %v2584 = vpop.f32.mrb[0].mxu0
        %v2585 = vadd.f32 %v2385, %v2584
        %v2586 = vpop.f32.mrb[0].mxu0
        %2587 = vmatprep.mubr.f32.mxu0 0.0
        %v2588 = vand.u32 %v1678, 4294901760
        %2589 = vmatmul.mubr.f32.gmra.mrb[0].mxu0 %v2588
        %v2590 = vpop.f32.mrb[0].mxu0
        %v2591 = vadd.f32 %v2393, %v2590
        %v2592 = vpop.f32.mrb[0].mxu0
        %2593 = vmatprep.mubr.f32.mxu0 0.0
        %v2594 = vand.u32 %v1681, 4294901760
        %2595 = vmatmul.mubr.f32.gmra.mrb[0].mxu0 %v2594
        %v2596 = vpop.f32.mrb[0].mxu0
        %v2597 = vadd.f32 %v2401, %v2596
        %v2598 = vpop.f32.mrb[0].mxu0
        %2599 = vmatprep.mubr.f32.mxu0 0.0
        %v2600 = vand.u32 %v1684, 4294901760
        %2601 = vmatmul.mubr.f32.gmra.mrb[0].mxu0 %v2600
        %v2602 = vpop.f32.mrb[0].mxu0
        %v2603 = vadd.f32 %v2409, %v2602
        %v2604 = vpop.f32.mrb[0].mxu0
        %2605 = vmatprep.mubr.f32.mxu0 0.0
        %v2606 = vand.u32 %v1687, 4294901760
        %2607 = vmatmul.mubr.f32.gmra.mrb[0].mxu0 %v2606
        %v2608 = vpop.f32.mrb[0].mxu0
        %v2609 = vadd.f32 %v2417, %v2608
        %v2610 = vpop.f32.mrb[0].mxu0
        %2611 = vmatprep.mubr.f32.mxu0 0.0
        %v2612 = vand.u32 %v1690, 4294901760
        %2613 = vmatmul.mubr.f32.gmra.mrb[0].mxu0 %v2612
        %v2614 = vpop.f32.mrb[0].mxu0
        %v2615 = vadd.f32 %v2425, %v2614
        %v2616 = vpop.f32.mrb[0].mxu0
        %2617 = vmatprep.mubr.f32.mxu0 0.0
        %v2618 = vand.u32 %v1693, 4294901760
        %2619 = vmatmul.mubr.f32.gmra.mrb[0].mxu0 %v2618
        %v2620 = vpop.f32.mrb[0].mxu0
        %v2621 = vadd.f32 %v2433, %v2620
        %v2622 = vpop.f32.mrb[0].mxu0
        %2623 = vmatprep.mubr.f32.mxu0 0.0
        %v2624 = vand.u32 %v1696, 4294901760
        %2625 = vmatmul.mubr.f32.gmra.mrb[0].mxu0 %v2624
        %v2626 = vpop.f32.mrb[0].mxu0
        %v2627 = vadd.f32 %v2441, %v2626
        %v2628 = vpop.f32.mrb[0].mxu0
        %2629 = vmatprep.mubr.f32.mxu0 0.0
        %v2630 = vand.u32 %v1699, 4294901760
        %2631 = vmatmul.mubr.f32.gmra.mrb[0].mxu0 %v2630
        %v2632 = vpop.f32.mrb[0].mxu0
        %v2633 = vadd.f32 %v2449, %v2632
        %v2634 = vpop.f32.mrb[0].mxu0
        %2635 = vmatprep.mubr.f32.mxu0 0.0
        %v2636 = vand.u32 %v1702, 4294901760
        %2637 = vmatmul.mubr.f32.gmra.mrb[0].mxu0 %v2636
        %v2638 = vpop.f32.mrb[0].mxu0
        %v2639 = vadd.f32 %v2457, %v2638
        %v2640 = vpop.f32.mrb[0].mxu0
        %2641 = vmatprep.mubr.f32.mxu0 0.0
        %v2642 = vand.u32 %v1705, 4294901760
        %2643 = vmatmul.mubr.f32.gmra.mrb[0].mxu0 %v2642
        %v2644 = vpop.f32.mrb[0].mxu0
        %v2645 = vadd.f32 %v2465, %v2644
        %v2646 = vpop.f32.mrb[0].mxu0
        %2647 = vmatprep.mubr.f32.mxu0 0.0
        %v2648 = vand.u32 %v1708, 4294901760
        %2649 = vmatmul.mubr.f32.gmra.mrb[0].mxu0 %v2648
        %v2650 = vpop.f32.mrb[0].mxu0
        %v2651 = vadd.f32 %v2473, %v2650
        %v2652 = vpop.f32.mrb[0].mxu0
        %2653 = vmatprep.mubr.f32.mxu0 0.0
        %v2654 = vand.u32 %v1711, 4294901760
        %2655 = vmatmul.mubr.f32.gmra.mrb[0].mxu0 %v2654
        %v2656 = vpop.f32.mrb[0].mxu0
        %v2657 = vadd.f32 %v2481, %v2656
        %v2658 = vpop.f32.mrb[0].mxu0
        %2659 = vmatprep.mubr.f32.mxu0 0.0
        %v2660 = vand.u32 %v1714, 4294901760
        %2661 = vmatmul.mubr.f32.gmra.mrb[0].mxu0 %v2660
        %v2662 = vpop.f32.mrb[0].mxu0
        %v2663 = vadd.f32 %v2489, %v2662
        %v2664 = vpop.f32.mrb[0].mxu0
        %2665 = vmatprep.mubr.f32.mxu0 0.0
        %v2666 = vand.u32 %v1717, 4294901760
        %2667 = vmatmul.mubr.f32.gmra.mrb[0].mxu0 %v2666
        %v2668 = vpop.f32.mrb[0].mxu0
        %v2669 = vadd.f32 %v2497, %v2668
        %v2670 = vpop.f32.mrb[0].mxu0
        %2671 = vmatprep.mubr.f32.mxu0 0.0
        %v2672 = vand.u32 %v1720, 4294901760
        %2673 = vmatmul.mubr.f32.gmra.mrb[0].mxu0 %v2672
        %v2674 = vpop.f32.mrb[0].mxu0
        %v2675 = vadd.f32 %v2505, %v2674
        %v2676 = vpop.f32.mrb[0].mxu0
        %2677 = vdwg.mxu0
        %2678 = vmatprep.subr.mxu0 0.0
        %v2679 = vand.u32 %v1663, 4294901760
        %2680 = vmatpush1.msra.mxu0 %v2679
        %2681 = vmatprep.subr.mxu0 0.0
        %v2682 = vand.u32 %v1664, 4294901760
        %2683 = vmatpush1.msra.mxu0 %v2682
        %2684 = vmatprep.subr.mxu0 0.0
        %v2685 = vand.u32 %v1723, 4294901760
        %2686 = vmatpush1.msra.mxu0 %v2685
        %2687 = vmatprep.subr.mxu0 0.0
        %2688 = vmatpush1.msra.mxu0 0.0
        %2689 = vmatprep.subr.mxu0 0.0
        %2690 = vmatpush1.msra.mxu0 0.0
        %2691 = vmatprep.subr.mxu0 0.0
        %2692 = vmatpush1.msra.mxu0 0.0
        %2693 = vmatprep.subr.mxu0 0.0
        %2694 = vmatpush1.msra.mxu0 0.0
        %2695 = vmatprep.subr.mxu0 0.0
        %2696 = vmatpush1.msra.mxu0 0.0
        %2697 = vmatprep.subr.mxu0 0.0
        %2698 = vmatpush1.msra.mxu0 0.0
        %2699 = vmatprep.subr.mxu0 0.0
        %2700 = vmatpush1.msra.mxu0 0.0
        %2701 = vmatprep.subr.mxu0 0.0
        %2702 = vmatpush1.msra.mxu0 0.0
        %2703 = vmatprep.subr.mxu0 0.0
        %2704 = vmatpush1.msra.mxu0 0.0
        %2705 = vmatprep.subr.mxu0 0.0
        %2706 = vmatpush1.msra.mxu0 0.0
        %2707 = vmatprep.subr.mxu0 0.0
        %2708 = vmatpush1.msra.mxu0 0.0
        %2709 = vmatprep.subr.mxu0 0.0
        %2710 = vmatpush1.msra.mxu0 0.0
        %2711 = vmatprep.subr.mxu0 0.0
        %2712 = vmatpush1.msra.mxu0 0.0
        %2713 = vmatprep.subr.mxu0 0.0
        %2714 = vmatpush1.msra.mxu0 0.0
        %2715 = vmatprep.subr.mxu0 0.0
        %2716 = vmatpush1.msra.mxu0 0.0
        %2717 = vmatprep.subr.mxu0 0.0
        %2718 = vmatpush1.msra.mxu0 0.0
        %2719 = vmatprep.subr.mxu0 0.0
        %2720 = vmatpush1.msra.mxu0 0.0
        %2721 = vmatprep.subr.mxu0 0.0
        %2722 = vmatpush1.msra.mxu0 0.0
        %2723 = vmatprep.subr.mxu0 0.0
        %2724 = vmatpush1.msra.mxu0 0.0
        %2725 = vmatprep.subr.mxu0 0.0
        %2726 = vmatpush1.msra.mxu0 0.0
        %2727 = vmatprep.subr.mxu0 0.0
        %2728 = vmatpush1.msra.mxu0 0.0
        %2729 = vmatprep.subr.mxu0 0.0
        %2730 = vmatpush1.msra.mxu0 0.0
        %2731 = vmatprep.subr.mxu0 0.0
        %2732 = vmatpush1.msra.mxu0 0.0
        %2733 = vmatprep.subr.mxu0 0.0
        %2734 = vmatpush1.msra.mxu0 0.0
        %2735 = vmatprep.subr.mxu0 0.0
        %2736 = vmatpush1.msra.mxu0 0.0
        %2737 = vmatprep.subr.mxu0 0.0
        %2738 = vmatpush1.msra.mxu0 0.0
        %2739 = vmatprep.subr.mxu0 0.0
        %2740 = vmatpush1.msra.mxu0 0.0
        %2741 = vmatprep.subr.mxu0 0.0
        %2742 = vmatpush1.msra.mxu0 0.0
        %2743 = vmatprep.subr.mxu0 0.0
        %2744 = vmatpush1.msra.mxu0 0.0
        %2745 = vmatprep.mubr.f32.mxu0 0.0
        %v2746 = vand.u32 %v1675, 4294901760
        %2747 = vmatmul.mubr.f32.gmra.mrb[0].mxu0 %v2746
        %v2748 = vpop.f32.mrb[0].mxu0
        %v2749 = vadd.f32 %v2585, %v2748
        %v2750 = vpop.f32.mrb[0].mxu0
        %2751 = vmatprep.mubr.f32.mxu0 0.0
        %v2752 = vand.u32 %v1678, 4294901760
        %2753 = vmatmul.mubr.f32.gmra.mrb[0].mxu0 %v2752
        %v2754 = vpop.f32.mrb[0].mxu0
        %v2755 = vadd.f32 %v2591, %v2754
        %v2756 = vpop.f32.mrb[0].mxu0
        %2757 = vmatprep.mubr.f32.mxu0 0.0
        %v2758 = vand.u32 %v1681, 4294901760
        %2759 = vmatmul.mubr.f32.gmra.mrb[0].mxu0 %v2758
        %v2760 = vpop.f32.mrb[0].mxu0
        %v2761 = vadd.f32 %v2597, %v2760
        %v2762 = vpop.f32.mrb[0].mxu0
        %2763 = vmatprep.mubr.f32.mxu0 0.0
        %v2764 = vand.u32 %v1684, 4294901760
        %2765 = vmatmul.mubr.f32.gmra.mrb[0].mxu0 %v2764
        %v2766 = vpop.f32.mrb[0].mxu0
        %v2767 = vadd.f32 %v2603, %v2766
        %v2768 = vpop.f32.mrb[0].mxu0
        %2769 = vmatprep.mubr.f32.mxu0 0.0
        %v2770 = vand.u32 %v1687, 4294901760
        %2771 = vmatmul.mubr.f32.gmra.mrb[0].mxu0 %v2770
        %v2772 = vpop.f32.mrb[0].mxu0
        %v2773 = vadd.f32 %v2609, %v2772
        %v2774 = vpop.f32.mrb[0].mxu0
        %2775 = vmatprep.mubr.f32.mxu0 0.0
        %v2776 = vand.u32 %v1690, 4294901760
        %2777 = vmatmul.mubr.f32.gmra.mrb[0].mxu0 %v2776
        %v2778 = vpop.f32.mrb[0].mxu0
        %v2779 = vadd.f32 %v2615, %v2778
        %v2780 = vpop.f32.mrb[0].mxu0
        %2781 = vmatprep.mubr.f32.mxu0 0.0
        %v2782 = vand.u32 %v1693, 4294901760
        %2783 = vmatmul.mubr.f32.gmra.mrb[0].mxu0 %v2782
        %v2784 = vpop.f32.mrb[0].mxu0
        %v2785 = vadd.f32 %v2621, %v2784
        %v2786 = vpop.f32.mrb[0].mxu0
        %2787 = vmatprep.mubr.f32.mxu0 0.0
        %v2788 = vand.u32 %v1696, 4294901760
        %2789 = vmatmul.mubr.f32.gmra.mrb[0].mxu0 %v2788
        %v2790 = vpop.f32.mrb[0].mxu0
        %v2791 = vadd.f32 %v2627, %v2790
        %v2792 = vpop.f32.mrb[0].mxu0
        %2793 = vmatprep.mubr.f32.mxu0 0.0
        %v2794 = vand.u32 %v1699, 4294901760
        %2795 = vmatmul.mubr.f32.gmra.mrb[0].mxu0 %v2794
        %v2796 = vpop.f32.mrb[0].mxu0
        %v2797 = vadd.f32 %v2633, %v2796
        %v2798 = vpop.f32.mrb[0].mxu0
        %2799 = vmatprep.mubr.f32.mxu0 0.0
        %v2800 = vand.u32 %v1702, 4294901760
        %2801 = vmatmul.mubr.f32.gmra.mrb[0].mxu0 %v2800
        %v2802 = vpop.f32.mrb[0].mxu0
        %v2803 = vadd.f32 %v2639, %v2802
        %v2804 = vpop.f32.mrb[0].mxu0
        %2805 = vmatprep.mubr.f32.mxu0 0.0
        %v2806 = vand.u32 %v1705, 4294901760
        %2807 = vmatmul.mubr.f32.gmra.mrb[0].mxu0 %v2806
        %v2808 = vpop.f32.mrb[0].mxu0
        %v2809 = vadd.f32 %v2645, %v2808
        %v2810 = vpop.f32.mrb[0].mxu0
        %2811 = vmatprep.mubr.f32.mxu0 0.0
        %v2812 = vand.u32 %v1708, 4294901760
        %2813 = vmatmul.mubr.f32.gmra.mrb[0].mxu0 %v2812
        %v2814 = vpop.f32.mrb[0].mxu0
        %v2815 = vadd.f32 %v2651, %v2814
        %v2816 = vpop.f32.mrb[0].mxu0
        %2817 = vmatprep.mubr.f32.mxu0 0.0
        %v2818 = vand.u32 %v1711, 4294901760
        %2819 = vmatmul.mubr.f32.gmra.mrb[0].mxu0 %v2818
        %v2820 = vpop.f32.mrb[0].mxu0
        %v2821 = vadd.f32 %v2657, %v2820
        %v2822 = vpop.f32.mrb[0].mxu0
        %2823 = vmatprep.mubr.f32.mxu0 0.0
        %v2824 = vand.u32 %v1714, 4294901760
        %2825 = vmatmul.mubr.f32.gmra.mrb[0].mxu0 %v2824
        %v2826 = vpop.f32.mrb[0].mxu0
        %v2827 = vadd.f32 %v2663, %v2826
        %v2828 = vpop.f32.mrb[0].mxu0
        %2829 = vmatprep.mubr.f32.mxu0 0.0
        %v2830 = vand.u32 %v1717, 4294901760
        %2831 = vmatmul.mubr.f32.gmra.mrb[0].mxu0 %v2830
        %v2832 = vpop.f32.mrb[0].mxu0
        %v2833 = vadd.f32 %v2669, %v2832
        %v2834 = vpop.f32.mrb[0].mxu0
        %2835 = vmatprep.mubr.f32.mxu0 0.0
        %v2836 = vand.u32 %v1720, 4294901760
        %2837 = vmatmul.mubr.f32.gmra.mrb[0].mxu0 %v2836
        %v2838 = vpop.f32.mrb[0].mxu0
        %v2839 = vadd.f32 %v2675, %v2838
        %v2840 = vpop.f32.mrb[0].mxu0
        %2841 = vdwg.mxu0
        %v2842 = vmax.f32 %v2749, 0.0
        %v2843 = vmax.f32 %v2755, 0.0
        %v2844 = vmax.f32 %v2761, 0.0
        %v2845 = vmax.f32 %v2767, 0.0
        %v2846 = vmax.f32 %v2773, 0.0
        %v2847 = vmax.f32 %v2779, 0.0
        %v2848 = vmax.f32 %v2785, 0.0
        %v2849 = vmax.f32 %v2791, 0.0
        %v2850 = vmax.f32 %v2797, 0.0
        %v2851 = vmax.f32 %v2803, 0.0
        %v2852 = vmax.f32 %v2809, 0.0
        %v2853 = vmax.f32 %v2815, 0.0
        %v2854 = vmax.f32 %v2821, 0.0
        %v2855 = vmax.f32 %v2827, 0.0
        %v2856 = vmax.f32 %v2833, 0.0
        %v2857 = vmax.f32 %v2839, 0.0
        %v2858 = vld [vmem:[%s5] sm:$0x1]
        %v2860 = vlaneseq
        %v2861 = vshrl.u32 %v2860, 7
        %v2862 = vsub.s32 0, %v2861
        %v2863 = vrot.slane %v2858, %v2862
        %v2865 = vmul.f32 %v2842, %v2863
        %v2866 = vmul.f32 %v2843, %v2863
        %v2867 = vmul.f32 %v2844, %v2863
        %v2868 = vmul.f32 %v2845, %v2863
        %v2869 = vmul.f32 %v2846, %v2863
        %v2870 = vmul.f32 %v2847, %v2863
        %v2871 = vmul.f32 %v2848, %v2863
        %v2872 = vmul.f32 %v2849, %v2863
        %v2873 = vmul.f32 %v2850, %v2863
        %v2874 = vmul.f32 %v2851, %v2863
        %v2875 = vmul.f32 %v2852, %v2863
        %v2876 = vmul.f32 %v2853, %v2863
        %v2877 = vmul.f32 %v2854, %v2863
        %v2878 = vmul.f32 %v2855, %v2863
        %v2879 = vmul.f32 %v2856, %v2863
        %v2880 = vmul.f32 %v2857, %v2863
        %vm2881 = vcmask 80896
        %v2882 = vsel %vm2881, %v2865, 0.0
        %2883 = vadd.xlane.f32.xlu0 %v2882
        %v2884 = vpop.xlane.xlu0 %2883
        %v2885 = vsel %vm2881, %v2866, 0.0
        %2886 = vadd.xlane.f32.xlu0 %v2885
        %v2887 = vpop.xlane.xlu0 %2886
        %v2888 = vsel %vm2881, %v2867, 0.0
        %2889 = vadd.xlane.f32.xlu0 %v2888
        %v2890 = vpop.xlane.xlu0 %2889
        %v2891 = vsel %vm2881, %v2868, 0.0
        %2892 = vadd.xlane.f32.xlu0 %v2891
        %v2893 = vpop.xlane.xlu0 %2892
        %v2894 = vsel %vm2881, %v2869, 0.0
        %2895 = vadd.xlane.f32.xlu0 %v2894
        %v2896 = vpop.xlane.xlu0 %2895
        %v2897 = vsel %vm2881, %v2870, 0.0
        %2898 = vadd.xlane.f32.xlu0 %v2897
        %v2899 = vpop.xlane.xlu0 %2898
        %v2900 = vsel %vm2881, %v2871, 0.0
        %2901 = vadd.xlane.f32.xlu0 %v2900
        %v2902 = vpop.xlane.xlu0 %2901
        %v2903 = vsel %vm2881, %v2872, 0.0
        %2904 = vadd.xlane.f32.xlu0 %v2903
        %v2905 = vpop.xlane.xlu0 %2904
        %v2906 = vsel %vm2881, %v2873, 0.0
        %2907 = vadd.xlane.f32.xlu0 %v2906
        %v2908 = vpop.xlane.xlu0 %2907
        %v2909 = vsel %vm2881, %v2874, 0.0
        %2910 = vadd.xlane.f32.xlu0 %v2909
        %v2911 = vpop.xlane.xlu0 %2910
        %v2912 = vsel %vm2881, %v2875, 0.0
        %2913 = vadd.xlane.f32.xlu0 %v2912
        %v2914 = vpop.xlane.xlu0 %2913
        %v2915 = vsel %vm2881, %v2876, 0.0
        %2916 = vadd.xlane.f32.xlu0 %v2915
        %v2917 = vpop.xlane.xlu0 %2916
        %v2918 = vsel %vm2881, %v2877, 0.0
        %2919 = vadd.xlane.f32.xlu0 %v2918
        %v2920 = vpop.xlane.xlu0 %2919
        %v2921 = vsel %vm2881, %v2878, 0.0
        %2922 = vadd.xlane.f32.xlu0 %v2921
        %v2923 = vpop.xlane.xlu0 %2922
        %v2924 = vsel %vm2881, %v2879, 0.0
        %2925 = vadd.xlane.f32.xlu0 %v2924
        %v2926 = vpop.xlane.xlu0 %2925
        %v2927 = vsel %vm2881, %v2880, 0.0
        %2928 = vadd.xlane.f32.xlu0 %v2927
        %v2929 = vpop.xlane.xlu0 %2928
        %v2930 = vld [vmem:[#allocation2] sm:$0x1]
        %v2932 = vlaneseq
        %v2933 = vshrl.u32 %v2932, 7
        %v2934 = vsub.s32 0, %v2933
        %v2935 = vrot.slane %v2930, %v2934
        %v2937 = vadd.f32 %v2884, %v2935
        %v2938 = vadd.f32 %v2887, %v2935
        %v2939 = vadd.f32 %v2890, %v2935
        %v2940 = vadd.f32 %v2893, %v2935
        %v2941 = vadd.f32 %v2896, %v2935
        %v2942 = vadd.f32 %v2899, %v2935
        %v2943 = vadd.f32 %v2902, %v2935
        %v2944 = vadd.f32 %v2905, %v2935
        %v2945 = vadd.f32 %v2908, %v2935
        %v2946 = vadd.f32 %v2911, %v2935
        %v2947 = vadd.f32 %v2914, %v2935
        %v2948 = vadd.f32 %v2917, %v2935
        %v2949 = vadd.f32 %v2920, %v2935
        %v2950 = vadd.f32 %v2923, %v2935
        %v2951 = vadd.f32 %v2926, %v2935
        %v2952 = vadd.f32 %v2929, %v2935
        %vm2953 = vcmask 7168
        %2954 = vst.msk [vmem:[%s300] sm:$0xff] %vm2953, %v2937
        %2955 = vst.msk [vmem:[%s300 + $0x8] sm:$0xff] %vm2953, %v2938
        %2956 = vst.msk [vmem:[%s300 + $0x10] sm:$0xff] %vm2953, %v2939
        %2957 = vst.msk [vmem:[%s300 + $0x18] sm:$0xff] %vm2953, %v2940
        %2958 = vst.msk [vmem:[%s300 + $0x20] sm:$0xff] %vm2953, %v2941
        %2959 = vst.msk [vmem:[%s300 + $0x28] sm:$0xff] %vm2953, %v2942
        %2960 = vst.msk [vmem:[%s300 + $0x30] sm:$0xff] %vm2953, %v2943
        %2961 = vst.msk [vmem:[%s300 + $0x38] sm:$0xff] %vm2953, %v2944
        %2962 = vst.msk [vmem:[%s300 + $0x40] sm:$0xff] %vm2953, %v2945
        %2963 = vst.msk [vmem:[%s300 + $0x48] sm:$0xff] %vm2953, %v2946
        %2964 = vst.msk [vmem:[%s300 + $0x50] sm:$0xff] %vm2953, %v2947
        %2965 = vst.msk [vmem:[%s300 + $0x58] sm:$0xff] %vm2953, %v2948
        %2966 = vst.msk [vmem:[%s300 + $0x60] sm:$0xff] %vm2953, %v2949
        %2967 = vst.msk [vmem:[%s300 + $0x68] sm:$0xff] %vm2953, %v2950
        %2968 = vst.msk [vmem:[%s300 + $0x70] sm:$0xff] %vm2953, %v2951
        %2969 = vst.msk [vmem:[%s300 + $0x78] sm:$0xff] %vm2953, %v2952
        %s2970 = sand.u32 %s183, 1
        %s2971 = sand.u32 %s183, 1
        %s2972 = smul.addr %s2971, 128
        %s2973 = scalar_lea.vmem [#allocation5], %s2972
        // Predicated region
        $region53: #{tpu_custom_call.1} parent=47 // pred_check
          %p2974 = pneg %p193
        $region54: #{tpu_custom_call.1} parent=47 // pred_check_branch
          %2976 = sbr.rel (%p2974) target = $region56
        $region55: #{tpu_custom_call.1} parent=47 // pred_region
          %s2977 = smul.u32 16, %s23
          %s2978 = ssub.s32 38, %s2977
          %p2979 = scmp.lt.s32.totalorder %s2978, 16
          %s2980 = scalar_select %p2979, %s2978, 16
          %s2981 = smul.u32 128, %s2980
          %p2982 = scmp.ne.s32.totalorder 0, %s2981
          %s2983 = smul.addr %s2977, 8
          %s2984 = scalar_lea.vmem %s7, %s2983
          // Predicated region
          $region57: #{tpu_custom_call.1} parent=55 // pred_check
            %p2985 = pneg %p2982
          $region58: #{tpu_custom_call.1} parent=55 // pred_check_branch
            %2987 = sbr.rel (%p2985) target = $region60
          $region59: #{tpu_custom_call.1} parent=55 // pred_region
            // Predicated region
            $region61: #{tpu_custom_call.1} parent=59 // pred_check
              _
            $region62: #{tpu_custom_call.1} parent=59 // pred_check_branch
              %2989 = sbr.rel (0) target = $region64
            $region63: #{tpu_custom_call.1} parent=59 // pred_region
              // Predicated region
              $region83: #{tpu_custom_call.1} parent=63 // pred_check
                _
              $region84: #{tpu_custom_call.1} parent=63 // pred_check_branch
                %3068 = sbr.rel (0) target = $region86
              $region85: #{tpu_custom_call.1} parent=63 // pred_region
                %s3069 = sshrl.u32 %s2980, 4
                // While loop
                $region87: #{tpu_custom_call.1} parent=85 // loop_pre_header
                  _
                $region88: #{tpu_custom_call.1} parent=85 // loop_header
                  %s3071 = sphi 0, %s3073
                  %p3072 = scmp.ge.s32.totalorder %s3071, %s3069
                  %s3076 = sphi 0, %s3113
                  %s3077 = sphi %s2973, %s3116
                  %s3078 = sphi %s2984, %s3117
                $region89: #{tpu_custom_call.1} parent=85 // loop_header_branch
                  %3075 = sbr.rel (%p3072) target = $region93
                $region90: #{tpu_custom_call.1} parent=85 // loop_body
                  %v3079 = vld [vmem:[%s3077] sm:$0xff]
                  %3080 = vst [vmem:[%s3078] sm:$0xff] %v3079
                  %v3081 = vld [vmem:[%s3077 + $0x8] sm:$0xff]
                  %3082 = vst [vmem:[%s3078 + $0x8] sm:$0xff] %v3081
                  %v3083 = vld [vmem:[%s3077 + $0x10] sm:$0xff]
                  %3084 = vst [vmem:[%s3078 + $0x10] sm:$0xff] %v3083
                  %v3085 = vld [vmem:[%s3077 + $0x18] sm:$0xff]
                  %3086 = vst [vmem:[%s3078 + $0x18] sm:$0xff] %v3085
                  %v3087 = vld [vmem:[%s3077 + $0x20] sm:$0xff]
                  %3088 = vst [vmem:[%s3078 + $0x20] sm:$0xff] %v3087
                  %v3089 = vld [vmem:[%s3077 + $0x28] sm:$0xff]
                  %3090 = vst [vmem:[%s3078 + $0x28] sm:$0xff] %v3089
                  %v3091 = vld [vmem:[%s3077 + $0x30] sm:$0xff]
                  %3092 = vst [vmem:[%s3078 + $0x30] sm:$0xff] %v3091
                  %v3093 = vld [vmem:[%s3077 + $0x38] sm:$0xff]
                  %3094 = vst [vmem:[%s3078 + $0x38] sm:$0xff] %v3093
                  %v3095 = vld [vmem:[%s3077 + $0x40] sm:$0xff]
                  %3096 = vst [vmem:[%s3078 + $0x40] sm:$0xff] %v3095
                  %v3097 = vld [vmem:[%s3077 + $0x48] sm:$0xff]
                  %3098 = vst [vmem:[%s3078 + $0x48] sm:$0xff] %v3097
                  %v3099 = vld [vmem:[%s3077 + $0x50] sm:$0xff]
                  %3100 = vst [vmem:[%s3078 + $0x50] sm:$0xff] %v3099
                  %v3101 = vld [vmem:[%s3077 + $0x58] sm:$0xff]
                  %3102 = vst [vmem:[%s3078 + $0x58] sm:$0xff] %v3101
                  %v3103 = vld [vmem:[%s3077 + $0x60] sm:$0xff]
                  %3104 = vst [vmem:[%s3078 + $0x60] sm:$0xff] %v3103
                  %v3105 = vld [vmem:[%s3077 + $0x68] sm:$0xff]
                  %3106 = vst [vmem:[%s3078 + $0x68] sm:$0xff] %v3105
                  %v3107 = vld [vmem:[%s3077 + $0x70] sm:$0xff]
                  %3108 = vst [vmem:[%s3078 + $0x70] sm:$0xff] %v3107
                  %v3109 = vld [vmem:[%s3077 + $0x78] sm:$0xff]
                  %3110 = vst [vmem:[%s3078 + $0x78] sm:$0xff] %v3109
                  %s3111 = sadd.s32 1, %s3076
                  %p3112 = scmp.ge.s32.totalorder %s3111, %s3069
                  %s3113 = scalar_select %p3112, 0, %s3111
                  %s3114 = smul.u32 %s3113, 128
                  %s3115 = smul.u32 %s3113, 128
                  %s3116 = scalar_lea.vmem %s2973, %s3114 [#allocation5]
                  %s3117 = scalar_lea.vmem %s2984, %s3115
                $region91: #{tpu_custom_call.1} parent=85 // loop_footer
                  %s3073 = sadd.s32 %s3071, 1
                $region92: #{tpu_custom_call.1} parent=85 // loop_footer_branch
                  %3070 = sbr.rel target = $region88
                $region93: #{tpu_custom_call.1} parent=85 // loop_exit
                  _
                %s3118 = sshrl.u32 %s2980, 4
                %s3119 = sand.u32 %s2980, 15
                %s3120 = smul.u32 %s3118, 16
                %s3121 = smul.u32 8, %s3120
                %s3122 = scalar_lea.vmem %s2973, %s3121 [#allocation5]
                %s3123 = smul.u32 8, %s3120
                %s3124 = scalar_lea.vmem %s2984, %s3123
                // While loop
                $region94: #{tpu_custom_call.1} parent=85 // loop_pre_header
                  _
                $region95: #{tpu_custom_call.1} parent=85 // loop_header
                  %s3126 = sphi 0, %s3128
                  %p3127 = scmp.ge.s32.totalorder %s3126, %s3119
                  %s3131 = sphi 0, %s3138
                  %s3132 = sphi %s3122, %s3141
                  %s3133 = sphi %s3124, %s3142
                $region96: #{tpu_custom_call.1} parent=85 // loop_header_branch
                  %3130 = sbr.rel (%p3127) target = $region100
                $region97: #{tpu_custom_call.1} parent=85 // loop_body
                  %v3134 = vld [vmem:[%s3132] sm:$0xff]
                  %3135 = vst [vmem:[%s3133] sm:$0xff] %v3134
                  %s3136 = sadd.s32 1, %s3131
                  %p3137 = scmp.ge.s32.totalorder %s3136, %s3119
                  %s3138 = scalar_select %p3137, 0, %s3136
                  %s3139 = smul.u32 %s3138, 8
                  %s3140 = smul.u32 %s3138, 8
                  %s3141 = scalar_lea.vmem %s3122, %s3139 [#allocation5]
                  %s3142 = scalar_lea.vmem %s3124, %s3140
                $region98: #{tpu_custom_call.1} parent=85 // loop_footer
                  %s3128 = sadd.s32 %s3126, 1
                $region99: #{tpu_custom_call.1} parent=85 // loop_footer_branch
                  %3125 = sbr.rel target = $region95
                $region100: #{tpu_custom_call.1} parent=85 // loop_exit
                  _
              $region86: #{tpu_custom_call.1} parent=63 // pred_fallthru
                _
              // Predicated region
              $region101: #{tpu_custom_call.1} parent=63 // pred_check
                _
              $region102: #{tpu_custom_call.1} parent=63 // pred_check_branch
                %3144 = sbr.rel target = $region104
              $region103: #{tpu_custom_call.1} parent=63 // pred_region
                _
              $region104: #{tpu_custom_call.1} parent=63 // pred_fallthru
                _
            $region64: #{tpu_custom_call.1} parent=59 // pred_fallthru
              _
            // Predicated region
            $region65: #{tpu_custom_call.1} parent=59 // pred_check
              _
            $region66: #{tpu_custom_call.1} parent=59 // pred_check_branch
              %2991 = sbr.rel target = $region68
            $region67: #{tpu_custom_call.1} parent=59 // pred_region
              %s2993 = sshrl.u32 %s2980, 4
              // While loop
              $region69: #{tpu_custom_call.1} parent=67 // loop_pre_header
                _
              $region70: #{tpu_custom_call.1} parent=67 // loop_header
                %s2995 = sphi 0, %s2997
                %p2996 = scmp.ge.s32.totalorder %s2995, %s2993
                %s3000 = sphi 0, %s3037
                %s3001 = sphi %s2973, %s3040
                %s3002 = sphi %s2984, %s3041
              $region71: #{tpu_custom_call.1} parent=67 // loop_header_branch
                %2999 = sbr.rel (%p2996) target = $region75
              $region72: #{tpu_custom_call.1} parent=67 // loop_body
                %v3003 = vld [vmem:[%s3001] sm:$0xff]
                %3004 = vst [vmem:[%s3002] sm:$0xff] %v3003
                %v3005 = vld [vmem:[%s3001 + $0x8] sm:$0xff]
                %3006 = vst [vmem:[%s3002 + $0x8] sm:$0xff] %v3005
                %v3007 = vld [vmem:[%s3001 + $0x10] sm:$0xff]
                %3008 = vst [vmem:[%s3002 + $0x10] sm:$0xff] %v3007
                %v3009 = vld [vmem:[%s3001 + $0x18] sm:$0xff]
                %3010 = vst [vmem:[%s3002 + $0x18] sm:$0xff] %v3009
                %v3011 = vld [vmem:[%s3001 + $0x20] sm:$0xff]
                %3012 = vst [vmem:[%s3002 + $0x20] sm:$0xff] %v3011
                %v3013 = vld [vmem:[%s3001 + $0x28] sm:$0xff]
                %3014 = vst [vmem:[%s3002 + $0x28] sm:$0xff] %v3013
                %v3015 = vld [vmem:[%s3001 + $0x30] sm:$0xff]
                %3016 = vst [vmem:[%s3002 + $0x30] sm:$0xff] %v3015
                %v3017 = vld [vmem:[%s3001 + $0x38] sm:$0xff]
                %3018 = vst [vmem:[%s3002 + $0x38] sm:$0xff] %v3017
                %v3019 = vld [vmem:[%s3001 + $0x40] sm:$0xff]
                %3020 = vst [vmem:[%s3002 + $0x40] sm:$0xff] %v3019
                %v3021 = vld [vmem:[%s3001 + $0x48] sm:$0xff]
                %3022 = vst [vmem:[%s3002 + $0x48] sm:$0xff] %v3021
                %v3023 = vld [vmem:[%s3001 + $0x50] sm:$0xff]
                %3024 = vst [vmem:[%s3002 + $0x50] sm:$0xff] %v3023
                %v3025 = vld [vmem:[%s3001 + $0x58] sm:$0xff]
                %3026 = vst [vmem:[%s3002 + $0x58] sm:$0xff] %v3025
                %v3027 = vld [vmem:[%s3001 + $0x60] sm:$0xff]
                %3028 = vst [vmem:[%s3002 + $0x60] sm:$0xff] %v3027
                %v3029 = vld [vmem:[%s3001 + $0x68] sm:$0xff]
                %3030 = vst [vmem:[%s3002 + $0x68] sm:$0xff] %v3029
                %v3031 = vld [vmem:[%s3001 + $0x70] sm:$0xff]
                %3032 = vst [vmem:[%s3002 + $0x70] sm:$0xff] %v3031
                %v3033 = vld [vmem:[%s3001 + $0x78] sm:$0xff]
                %3034 = vst [vmem:[%s3002 + $0x78] sm:$0xff] %v3033
                %s3035 = sadd.s32 1, %s3000
                %p3036 = scmp.ge.s32.totalorder %s3035, %s2993
                %s3037 = scalar_select %p3036, 0, %s3035
                %s3038 = smul.u32 %s3037, 128
                %s3039 = smul.u32 %s3037, 128
                %s3040 = scalar_lea.vmem %s2973, %s3038 [#allocation5]
                %s3041 = scalar_lea.vmem %s2984, %s3039
              $region73: #{tpu_custom_call.1} parent=67 // loop_footer
                %s2997 = sadd.s32 %s2995, 1
              $region74: #{tpu_custom_call.1} parent=67 // loop_footer_branch
                %2994 = sbr.rel target = $region70
              $region75: #{tpu_custom_call.1} parent=67 // loop_exit
                _
              %s3042 = sshrl.u32 %s2980, 4
              %s3043 = sand.u32 %s2980, 15
              %s3044 = smul.u32 %s3042, 16
              %s3045 = smul.u32 8, %s3044
              %s3046 = scalar_lea.vmem %s2973, %s3045 [#allocation5]
              %s3047 = smul.u32 8, %s3044
              %s3048 = scalar_lea.vmem %s2984, %s3047
              // While loop
              $region76: #{tpu_custom_call.1} parent=67 // loop_pre_header
                _
              $region77: #{tpu_custom_call.1} parent=67 // loop_header
                %s3050 = sphi 0, %s3052
                %p3051 = scmp.ge.s32.totalorder %s3050, %s3043
                %s3055 = sphi 0, %s3062
                %s3056 = sphi %s3046, %s3065
                %s3057 = sphi %s3048, %s3066
              $region78: #{tpu_custom_call.1} parent=67 // loop_header_branch
                %3054 = sbr.rel (%p3051) target = $region82
              $region79: #{tpu_custom_call.1} parent=67 // loop_body
                %v3058 = vld [vmem:[%s3056] sm:$0xff]
                %3059 = vst [vmem:[%s3057] sm:$0xff] %v3058
                %s3060 = sadd.s32 1, %s3055
                %p3061 = scmp.ge.s32.totalorder %s3060, %s3043
                %s3062 = scalar_select %p3061, 0, %s3060
                %s3063 = smul.u32 %s3062, 8
                %s3064 = smul.u32 %s3062, 8
                %s3065 = scalar_lea.vmem %s3046, %s3063 [#allocation5]
                %s3066 = scalar_lea.vmem %s3048, %s3064
              $region80: #{tpu_custom_call.1} parent=67 // loop_footer
                %s3052 = sadd.s32 %s3050, 1
              $region81: #{tpu_custom_call.1} parent=67 // loop_footer_branch
                %3049 = sbr.rel target = $region77
              $region82: #{tpu_custom_call.1} parent=67 // loop_exit
                _
            $region68: #{tpu_custom_call.1} parent=59 // pred_fallthru
              _
          $region60: #{tpu_custom_call.1} parent=55 // pred_fallthru
            _
          %3145 = vnop
        $region56: #{tpu_custom_call.1} parent=47 // pred_fallthru
          _
      $region48: #{tpu_custom_call.1} parent=5 // pred_fallthru
        _
      %p3146 = scmp.le.s32.totalorder 2, %s18
      // Predicated region
      $region105: #{tpu_custom_call.1} parent=5 // pred_check
        %p3147 = pneg %p3146
      $region106: #{tpu_custom_call.1} parent=5 // pred_check_branch
        %3149 = sbr.rel (%p3147) target = $region108
      $region107: #{tpu_custom_call.1} parent=5 // pred_region
        %s3150 = ssub.s32 %s18, 2
        // Predicated region
        $region109: #{tpu_custom_call.1} parent=107 // pred_check
          %p3151 = pneg %p199
        $region110: #{tpu_custom_call.1} parent=107 // pred_check_branch
          %3153 = sbr.rel (%p3151) target = $region112
        $region111: #{tpu_custom_call.1} parent=107 // pred_region
          %s3154 = sand.u32 %s184, 1
          %s3155 = sand.u32 %s184, 1
          %s3156 = smul.addr %s3155, 128
          %s3157 = scalar_lea.vmem [#allocation5], %s3156
        $region112: #{tpu_custom_call.1} parent=107 // pred_fallthru
          _
      $region108: #{tpu_custom_call.1} parent=5 // pred_fallthru
        _
    $region6: #{tpu_custom_call.1} parent=1 // loop_footer
      %s22 = sadd.s32 1, %s18
    $region7: #{tpu_custom_call.1} parent=1 // loop_footer_branch
      %17 = sbr.rel target = $region3
    $region8: #{tpu_custom_call.1} parent=1 // loop_exit
      _
    %3158 = vsyncpa [#allocation4], 1
    %s3159 = scalar_lea.sflag [#allocation4], 1
    %3160 = vsyncpa %s3159, 1

</llo_original>
